<compile_context>
chip_gen: v7x
topology: tpu7x:2x2x1
jax: 0.10.0
libtpu: 0.0.40
codegen_flags: <defaults>
</compile_context>

<pallas_src>
import functools
import math

import numpy as np
import jax
import jax.numpy as jnp
from jax import lax
from jax.experimental import pallas as pl
from jax.experimental.pallas import tpu as pltpu


# ----------------------------------------------------------------------------
# Pallas kernels
# ----------------------------------------------------------------------------

def _decoder_layer_kernel(
    x_ref, enc_ref, tmask_ref, smask_ref,
    sa_wq_ref, sa_wk_ref, sa_wv_ref, sa_wo_ref, sa_bo_ref,
    n0_g_ref, n0_b_ref,
    ca_wq_ref, ca_wk_ref, ca_wv_ref, ca_wo_ref, ca_bo_ref,
    n1_g_ref, n1_b_ref,
    ff_w1_ref, ff_b1_ref, ff_w2_ref, ff_b2_ref,
    n2_g_ref, n2_b_ref,
    o_ref,
    *, heads, head_dim, scale, eps):
  """One batch element of a full DecoderBlock (fused)."""

  def mha(q, kv, mask, wq_ref, wk_ref, wv_ref, wo_ref, bo_ref):
    # q: (Lq, E) f32, kv: (Lk, E) f32, mask: (Lq, Lk) f32 (0 == masked)
    wq = wq_ref[...]      # (hd, hd) bf16, shared across heads (as in PyTorch)
    wk = wk_ref[...]
    wv = wv_ref[...]
    acc = jnp.zeros(q.shape, jnp.float32)          # lane-dense accumulator
    for h in range(heads):                         # static unroll
      lo = h * head_dim
      hi = lo + head_dim
      qh = jnp.dot(q[:, lo:hi].astype(jnp.bfloat16), wq,
                   preferred_element_type=jnp.float32)
      kh = jnp.dot(kv[:, lo:hi].astype(jnp.bfloat16), wk,
                   preferred_element_type=jnp.float32)
      vh = jnp.dot(kv[:, lo:hi].astype(jnp.bfloat16), wv,
                   preferred_element_type=jnp.float32)
      # energy = q_h @ k_h^T   (contract the head dim, no explicit transpose)
      e = lax.dot_general(qh.astype(jnp.bfloat16), kh.astype(jnp.bfloat16),
                          (((1,), (1,)), ((), ())),
                          preferred_element_type=jnp.float32)   # (Lq, Lk)
      e = jnp.where(mask == 0.0, jnp.float32(-1e20), e) * scale
      e = e - jnp.max(e, axis=-1, keepdims=True)
      p = jnp.exp(e)
      denom = jnp.sum(p, axis=-1, keepdims=True)
      if hasattr(pl, "reciprocal"):
        p = p * pl.reciprocal(denom, approx=True)  # EUP slot
      else:
        p = p / denom
      ctx = jnp.dot(p.astype(jnp.bfloat16), vh.astype(jnp.bfloat16),
                    preferred_element_type=jnp.float32)          # (Lq, hd)
      # out projection split over the head (K) dim: identical to concat+matmul,
      # but keeps every store lane-dense (no vst.msk into a scratch).
      acc = acc + jnp.dot(ctx.astype(jnp.bfloat16), wo_ref[lo:hi, :],
                          preferred_element_type=jnp.float32)
    return acc + bo_ref[...]

  def layer_norm(v, g_ref, b_ref):                 # f32 statistics (v5e-safe)
    mu = jnp.mean(v, axis=-1, keepdims=True)
    vc = v - mu
    var = jnp.mean(vc * vc, axis=-1, keepdims=True)
    return vc * lax.rsqrt(var + eps) * g_ref[...] + b_ref[...]

  x = x_ref[0].astype(jnp.float32)       # (L, E)
  enc = enc_ref[0].astype(jnp.float32)   # (Ls, E)
  tmask = tmask_ref[0]                   # (L, L)
  smask = smask_ref[0]                   # (L, Ls)

  # self attention + residual + LN
  attn = mha(x, x, tmask, sa_wq_ref, sa_wk_ref, sa_wv_ref, sa_wo_ref, sa_bo_ref)
  query = layer_norm(attn + x, n0_g_ref, n0_b_ref)

  # cross attention + residual + LN
  attn2 = mha(query, enc, smask, ca_wq_ref, ca_wk_ref, ca_wv_ref, ca_wo_ref,
              ca_bo_ref)
  x2 = layer_norm(attn2 + query, n1_g_ref, n1_b_ref)

  # feed-forward + residual + LN
  h1 = jnp.dot(x2.astype(jnp.bfloat16), ff_w1_ref[...],
               preferred_element_type=jnp.float32) + ff_b1_ref[...]
  h1 = jnp.maximum(h1, 0.0)
  ff = jnp.dot(h1.astype(jnp.bfloat16), ff_w2_ref[...],
               preferred_element_type=jnp.float32) + ff_b2_ref[...]
  out = layer_norm(ff + x2, n2_g_ref, n2_b_ref)

  o_ref[0] = out.astype(o_ref.dtype)


def decoder_layer(x, enc, trg_mask, src_mask, lp, *, heads):
  """One fused pallas_call for a full DecoderBlock, gridded over batch."""
  N, L, E = x.shape
  Ls = enc.shape[1]
  hd = E // heads
  H = lp['ff_w1'].shape[1]
  bf = lambda a: a.astype(jnp.bfloat16)
  sa, ca = lp['self_attn'], lp['cross_attn']

  def cspec(shape):   # weight blocks: whole array, constant index map
    if len(shape) == 2:
      return pl.BlockSpec(shape, lambda i: (0, 0))
    return pl.BlockSpec(shape, lambda i: (0, 0, 0))

  kernel = functools.partial(_decoder_layer_kernel, heads=heads, head_dim=hd,
                             scale=1.0 / math.sqrt(E), eps=1e-5)

  in_specs = [
      pl.BlockSpec((1, L, E), lambda i: (i, 0, 0)),     # x
      pl.BlockSpec((1, Ls, E), lambda i: (i, 0, 0)),    # enc_out
      pl.BlockSpec((1, L, L), lambda i: (i, 0, 0)),     # trg_mask
      pl.BlockSpec((1, L, Ls), lambda i: (i, 0, 0)),    # src_mask
      cspec((hd, hd)), cspec((hd, hd)), cspec((hd, hd)),    # self-attn q/k/v
      cspec((E, E)), cspec((1, E)),                         # self-attn wo/bo
      cspec((1, E)), cspec((1, E)),                         # norm
      cspec((hd, hd)), cspec((hd, hd)), cspec((hd, hd)),    # cross-attn q/k/v
      cspec((E, E)), cspec((1, E)),                         # cross-attn wo/bo
      cspec((1, E)), cspec((1, E)),                         # norm1
      cspec((E, H)), cspec((1, H)), cspec((H, E)), cspec((1, E)),   # FFN
      cspec((1, E)), cspec((1, E)),                         # norm2
  ]
  args = (x, enc, trg_mask, src_mask,
          bf(sa['wq']), bf(sa['wk']), bf(sa['wv']), bf(sa['wo']), sa['bo'],
          lp['norm']['gamma'], lp['norm']['beta'],
          bf(ca['wq']), bf(ca['wk']), bf(ca['wv']), bf(ca['wo']), ca['bo'],
          lp['norm1']['gamma'], lp['norm1']['beta'],
          bf(lp['ff_w1']), lp['ff_b1'], bf(lp['ff_w2']), lp['ff_b2'],
          lp['norm2']['gamma'], lp['norm2']['beta'])

  return pl.pallas_call(
      kernel,
      out_shape=jax.ShapeDtypeStruct((N, L, E), x.dtype),
      grid_spec=pltpu.PrefetchScalarGridSpec(
          num_scalar_prefetch=0, grid=(N,),
          in_specs=in_specs,
          out_specs=pl.BlockSpec((1, L, E), lambda i: (i, 0, 0)),
      ),
      compiler_params=pltpu.CompilerParams(dimension_semantics=("parallel",)),
  )(*args)


def _embed_kernel(w_ref, p_ref, pe_ref, o_ref, *, sqrt_e):
  o_ref[0] = (w_ref[0] + p_ref[0] * sqrt_e + pe_ref[0]).astype(o_ref.dtype)


def embed_combine(word, pos, pe, *, sqrt_e):
  N, L, E = word.shape
  kernel = functools.partial(_embed_kernel, sqrt_e=sqrt_e)
  return pl.pallas_call(
      kernel,
      out_shape=jax.ShapeDtypeStruct((N, L, E), word.dtype),
      grid_spec=pltpu.PrefetchScalarGridSpec(
          num_scalar_prefetch=0, grid=(N,),
          in_specs=[
              pl.BlockSpec((1, L, E), lambda i: (i, 0, 0)),
              pl.BlockSpec((1, L, E), lambda i: (i, 0, 0)),
              pl.BlockSpec((1, L, E), lambda i: (0, 0, 0)),
          ],
          out_specs=pl.BlockSpec((1, L, E), lambda i: (i, 0, 0)),
      ),
      compiler_params=pltpu.CompilerParams(dimension_semantics=("parallel",)),
  )(word, pos, pe)


def _linear_kernel(x_ref, w_ref, b_ref, o_ref):
  x = x_ref[...].astype(jnp.bfloat16)
  y = jnp.dot(x, w_ref[...], preferred_element_type=jnp.float32) + b_ref[...]
  o_ref[...] = y.astype(o_ref.dtype)


def vocab_projection(x, w, b):
  """Final fc_out: flatten (N, L) so the matmul M-dim is as large as possible."""
  N, L, E = x.shape
  V = w.shape[1]
  NL = N * L
  xf = x.reshape(NL, E)
  tm = NL if NL <= 256 else 256
  out = pl.pallas_call(
      _linear_kernel,
      out_shape=jax.ShapeDtypeStruct((NL, V), x.dtype),
      grid_spec=pltpu.PrefetchScalarGridSpec(
          num_scalar_prefetch=0, grid=(pl.cdiv(NL, tm),),
          in_specs=[
              pl.BlockSpec((tm, E), lambda i: (i, 0)),
              pl.BlockSpec((E, V), lambda i: (0, 0)),
              pl.BlockSpec((1, V), lambda i: (0, 0)),
          ],
          out_specs=pl.BlockSpec((tm, V), lambda i: (i, 0)),
      ),
      compiler_params=pltpu.CompilerParams(dimension_semantics=("parallel",)),
  )(xf, w.astype(jnp.bfloat16), b)
  return out.reshape(N, L, V)


# ----------------------------------------------------------------------------
# Parameters / buffers (deterministic synthetic init) and glue
# ----------------------------------------------------------------------------

def make_pe(max_length, E):
  # Reproduces the PositionalEncoder buffer exactly (note the 2*i exponent).
  pe = np.zeros((max_length, E), dtype=np.float32)
  for pos in range(max_length):
    for i in range(0, E, 2):
      pe[pos, i] = math.sin(pos / 10000 ** (2 * i / E))
      pe[pos, i + 1] = math.cos(pos / 10000 ** (2 * i / E))
  return jnp.asarray(pe)[None]  # (1, max_length, E)


def init_params(key, *, V, E, H, heads, num_layers, max_length):
  hd = E // heads
  keys = iter(jax.random.split(key, 128))

  def nrm(shape, scale=0.05):
    return scale * jax.random.normal(next(keys), shape, jnp.float32)

  def attn_params():
    # One shared (head_dim, head_dim) Linear per projection (as in PyTorch),
    # stored matmul-ready (in, out).
    return {'wq': nrm((hd, hd)), 'wk': nrm((hd, hd)), 'wv': nrm((hd, hd)),
            'wo': nrm((E, E)), 'bo': nrm((1, E))}

  def ln_params():
    return {'gamma': 1.0 + nrm((1, E), 0.1), 'beta': nrm((1, E), 0.1)}

  params = {
      'word_emb': nrm((V, E), 0.1),
      'pos_emb': nrm((max_length, E), 0.1),
      'fc_out_w': nrm((E, V)),
      'fc_out_b': nrm((1, V)),
      'layers': [],
  }
  for _ in range(num_layers):
    params['layers'].append({
        'self_attn': attn_params(),
        'norm': ln_params(),
        'cross_attn': attn_params(),
        'norm1': ln_params(),
        'norm2': ln_params(),
        'ff_w1': nrm((E, H)),
        'ff_b1': nrm((1, H)),
        'ff_w2': nrm((H, E)),
        'ff_b2': nrm((1, E)),
    })
  return params


def decoder_forward(params, pe_buf, token_ids, enc_out, src_mask, trg_mask,
                    *, heads):
  N, L = token_ids.shape
  E = params['word_emb'].shape[1]
  # Embedding gathers are glue (memory gather, not the hot compute path).
  word = jnp.take(params['word_emb'], token_ids, axis=0)               # (N,L,E)
  pos_ids = jnp.broadcast_to(jnp.arange(L, dtype=jnp.int32), (N, L))
  pos = jnp.take(params['pos_emb'], pos_ids, axis=0)                   # (N,L,E)
  pe = pe_buf[:, :L]                                                   # (1,L,E)
  x = embed_combine(word, pos, pe, sqrt_e=math.sqrt(E))
  for lp in params['layers']:
    x = decoder_layer(x, enc_out, trg_mask, src_mask, lp, heads=heads)
  return vocab_projection(x, params['fc_out_w'], params['fc_out_b'])


# ----------------------------------------------------------------------------
# Pure-JAX reference (mirrors the PyTorch forward, dropout = identity)
# ----------------------------------------------------------------------------

def _ref_attention(q, kv, mask, p, heads):
  N, Lq, E = q.shape
  Lk = kv.shape[1]
  hd = E // heads
  qh = q.reshape(N, Lq, heads, hd) @ p['wq']
  kh = kv.reshape(N, Lk, heads, hd) @ p['wk']
  vh = kv.reshape(N, Lk, heads, hd) @ p['wv']
  e = jnp.einsum('nqhd,nkhd->nhqk', qh, kh)
  e = jnp.where(mask[:, None] == 0.0, -1e20, e)
  a = jax.nn.softmax(e / math.sqrt(E), axis=-1)
  out = jnp.einsum('nhqk,nkhd->nqhd', a, vh).reshape(N, Lq, E)
  return out @ p['wo'] + p['bo']


def _ref_ln(x, lnp, eps=1e-5):
  mu = jnp.mean(x, axis=-1, keepdims=True)
  var = jnp.mean((x - mu) ** 2, axis=-1, keepdims=True)
  return (x - mu) / jnp.sqrt(var + eps) * lnp['gamma'] + lnp['beta']


def ref_decoder_forward(params, pe_buf, token_ids, enc_out, src_mask, trg_mask,
                        *, heads):
  N, L = token_ids.shape
  E = params['word_emb'].shape[1]
  word = jnp.take(params['word_emb'], token_ids, axis=0)
  pos = jnp.take(params['pos_emb'],
                 jnp.broadcast_to(jnp.arange(L), (N, L)), axis=0)
  x = word + pos * math.sqrt(E) + pe_buf[:, :L]
  for lp in params['layers']:
    attn = _ref_attention(x, x, trg_mask, lp['self_attn'], heads)
    query = _ref_ln(attn + x, lp['norm'])
    attn2 = _ref_attention(query, enc_out, src_mask, lp['cross_attn'], heads)
    x2 = _ref_ln(attn2 + query, lp['norm1'])
    ff = jnp.maximum(x2 @ lp['ff_w1'] + lp['ff_b1'], 0.0) @ lp['ff_w2'] + lp['ff_b2']
    x = _ref_ln(ff + x2, lp['norm2'])
  return x @ params['fc_out_w'] + params['fc_out_b']


# ----------------------------------------------------------------------------

if __name__ == "__main__":
  N, L, Ls = 2, 8, 8          # batch, target seq len, source (encoder) seq len
  V, E, heads = 16, 32, 4     # vocab, embed size, heads (head_dim = 8)
  forward_expansion, num_layers, max_length = 4, 2, 16
  H = forward_expansion * E

  key = jax.random.PRNGKey(0)
  kp, kx, ke = jax.random.split(key, 3)
  params = init_params(kp, V=V, E=E, H=H, heads=heads,
                       num_layers=num_layers, max_length=max_length)
  pe_buf = make_pe(max_length, E)

  token_ids = jax.random.randint(kx, (N, L), 0, V)
  enc_out = jax.random.normal(ke, (N, Ls, E), jnp.float32)
  trg_mask = jnp.broadcast_to(jnp.tril(jnp.ones((L, L), jnp.float32)),
                              (N, L, L))            # causal decoder mask
  src_mask = jnp.ones((N, L, Ls), jnp.float32)       # no source padding

  fwd = jax.jit(functools.partial(decoder_forward, heads=heads))
  out = fwd(params, pe_buf, token_ids, enc_out, src_mask, trg_mask)
  out = jax.block_until_ready(out)

  ref = ref_decoder_forward(params, pe_buf, token_ids, enc_out,
                            src_mask, trg_mask, heads=heads)
  assert out.shape == (N, L, V), out.shape
  np.testing.assert_allclose(np.asarray(out), np.asarray(ref),
                             rtol=5e-2, atol=5e-2)
  print("KERNEL_OK")
</pallas_src>

<mosaic_0001>
module attributes {stable_mosaic.version = 11 : i64} {
  func.func @_embed_kernel(%arg0: i32, %arg1: memref<1x8x32xf32, #tpu.memory_space<vmem>>, %arg2: memref<1x8x32xf32, #tpu.memory_space<vmem>>, %arg3: memref<1x8x32xf32, #tpu.memory_space<vmem>>, %arg4: memref<1x8x32xf32, #tpu.memory_space<vmem>>) attributes {dimension_semantics = [#tpu.dimension_semantics<parallel>], iteration_bounds = array<i64: 2>, scalar_prefetch = 0 : i64, scratch_operands = 0 : i64, tpu.core_type = #tpu.core_type<tc>, window_params = [{transform_indices = @transform_0, window_bounds = array<i64: 1, 8, 32>}, {transform_indices = @transform_1, window_bounds = array<i64: 1, 8, 32>}, {pipeline_mode = #tpu.pipeline_mode<synchronous>, transform_indices = @transform_2, window_bounds = array<i64: 1, 8, 32>}, {transform_indices = @transform_3, window_bounds = array<i64: 1, 8, 32>}]} {
    %c0 = arith.constant 0 : index
    %c0_0 = arith.constant 0 : index
    %c0_1 = arith.constant 0 : index
    %0 = vector.load %arg1[%c0, %c0_0, %c0_1] : memref<1x8x32xf32, #tpu.memory_space<vmem>>, vector<1x8x32xf32>
    %1 = vector.shape_cast %0 : vector<1x8x32xf32> to vector<8x32xf32>
    %c0_2 = arith.constant 0 : index
    %c0_3 = arith.constant 0 : index
    %c0_4 = arith.constant 0 : index
    %2 = vector.load %arg2[%c0_2, %c0_3, %c0_4] : memref<1x8x32xf32, #tpu.memory_space<vmem>>, vector<1x8x32xf32>
    %3 = vector.shape_cast %2 : vector<1x8x32xf32> to vector<8x32xf32>
    %cst = arith.constant 5.65685415 : f32
    %4 = vector.broadcast %cst : f32 to vector<8x32xf32>
    %5 = arith.mulf %3, %4 : vector<8x32xf32>
    %6 = arith.addf %1, %5 : vector<8x32xf32>
    %c0_5 = arith.constant 0 : index
    %c0_6 = arith.constant 0 : index
    %c0_7 = arith.constant 0 : index
    %7 = vector.load %arg3[%c0_5, %c0_6, %c0_7] : memref<1x8x32xf32, #tpu.memory_space<vmem>>, vector<1x8x32xf32>
    %8 = vector.shape_cast %7 : vector<1x8x32xf32> to vector<8x32xf32>
    %9 = arith.addf %6, %8 : vector<8x32xf32>
    %c0_8 = arith.constant 0 : index
    %c0_9 = arith.constant 0 : index
    %c0_10 = arith.constant 0 : index
    %10 = vector.load %arg4[%c0_8, %c0_9, %c0_10] : memref<1x8x32xf32, #tpu.memory_space<vmem>>, vector<1x8x32xf32>
    %11 = vector.shape_cast %10 : vector<1x8x32xf32> to vector<8x32xf32>
    %12 = vector.shape_cast %9 : vector<8x32xf32> to vector<1x8x32xf32>
    tpu.vector_store %arg4[%c0_8, %c0_9, %c0_10], %12 {strides = array<i32>} : memref<1x8x32xf32, #tpu.memory_space<vmem>>, vector<1x8x32xf32>,
    return
  }
  func.func @transform_0(%arg0: i32) -> (i32, i32, i32) {
    %c0_i32 = arith.constant 0 : i32
    %c0_i32_0 = arith.constant 0 : i32
    %c0_i32_1 = arith.constant 0 : i32
    return %arg0, %c0_i32, %c0_i32_0 : i32, i32, i32
  }
  func.func @transform_1(%arg0: i32) -> (i32, i32, i32) {
    %c0_i32 = arith.constant 0 : i32
    %c0_i32_0 = arith.constant 0 : i32
    %c0_i32_1 = arith.constant 0 : i32
    return %arg0, %c0_i32, %c0_i32_0 : i32, i32, i32
  }
  func.func @transform_2(%arg0: i32) -> (i32, i32, i32) {
    %c0_i32 = arith.constant 0 : i32
    %c0_i32_0 = arith.constant 0 : i32
    %c0_i32_1 = arith.constant 0 : i32
    %c0_i32_2 = arith.constant 0 : i32
    return %c0_i32, %c0_i32_0, %c0_i32_1 : i32, i32, i32
  }
  func.func @transform_3(%arg0: i32) -> (i32, i32, i32) {
    %c0_i32 = arith.constant 0 : i32
    %c0_i32_0 = arith.constant 0 : i32
    %c0_i32_1 = arith.constant 0 : i32
    return %arg0, %c0_i32, %c0_i32_0 : i32, i32, i32
  }
}

module attributes {stable_mosaic.version = 11 : i64} {
  func.func @_decoder_layer_kernel(%arg0: i32, %arg1: memref<1x8x32xf32, #tpu.memory_space<vmem>>, %arg2: memref<1x8x32xf32, #tpu.memory_space<vmem>>, %arg3: memref<1x8x8xf32, #tpu.memory_space<vmem>>, %arg4: memref<1x8x8xf32, #tpu.memory_space<vmem>>, %arg5: memref<8x8xbf16, #tpu.memory_space<vmem>>, %arg6: memref<8x8xbf16, #tpu.memory_space<vmem>>, %arg7: memref<8x8xbf16, #tpu.memory_space<vmem>>, %arg8: memref<32x32xbf16, #tpu.memory_space<vmem>>, %arg9: memref<1x32xf32, #tpu.memory_space<vmem>>, %arg10: memref<1x32xf32, #tpu.memory_space<vmem>>, %arg11: memref<1x32xf32, #tpu.memory_space<vmem>>, %arg12: memref<8x8xbf16, #tpu.memory_space<vmem>>, %arg13: memref<8x8xbf16, #tpu.memory_space<vmem>>, %arg14: memref<8x8xbf16, #tpu.memory_space<vmem>>, %arg15: memref<32x32xbf16, #tpu.memory_space<vmem>>, %arg16: memref<1x32xf32, #tpu.memory_space<vmem>>, %arg17: memref<1x32xf32, #tpu.memory_space<vmem>>, %arg18: memref<1x32xf32, #tpu.memory_space<vmem>>, %arg19: memref<32x128xbf16, #tpu.memory_space<vmem>>, %arg20: memref<1x128xf32, #tpu.memory_space<vmem>>, %arg21: memref<128x32xbf16, #tpu.memory_space<vmem>>, %arg22: memref<1x32xf32, #tpu.memory_space<vmem>>, %arg23: memref<1x32xf32, #tpu.memory_space<vmem>>, %arg24: memref<1x32xf32, #tpu.memory_space<vmem>>, %arg25: memref<1x8x32xf32, #tpu.memory_space<vmem>>) attributes {dimension_semantics = [#tpu.dimension_semantics<parallel>], iteration_bounds = array<i64: 2>, scalar_prefetch = 0 : i64, scratch_operands = 0 : i64, tpu.core_type = #tpu.core_type<tc>, window_params = [{transform_indices = @transform_0, window_bounds = array<i64: 1, 8, 32>}, {transform_indices = @transform_1, window_bounds = array<i64: 1, 8, 32>}, {transform_indices = @transform_2, window_bounds = array<i64: 1, 8, 8>}, {transform_indices = @transform_3, window_bounds = array<i64: 1, 8, 8>}, {pipeline_mode = #tpu.pipeline_mode<synchronous>, transform_indices = @transform_4, window_bounds = array<i64: 8, 8>}, {pipeline_mode = #tpu.pipeline_mode<synchronous>, transform_indices = @transform_5, window_bounds = array<i64: 8, 8>}, {pipeline_mode = #tpu.pipeline_mode<synchronous>, transform_indices = @transform_6, window_bounds = array<i64: 8, 8>}, {pipeline_mode = #tpu.pipeline_mode<synchronous>, transform_indices = @transform_7, window_bounds = array<i64: 32, 32>}, {pipeline_mode = #tpu.pipeline_mode<synchronous>, transform_indices = @transform_8, window_bounds = array<i64: 1, 32>}, {pipeline_mode = #tpu.pipeline_mode<synchronous>, transform_indices = @transform_9, window_bounds = array<i64: 1, 32>}, {pipeline_mode = #tpu.pipeline_mode<synchronous>, transform_indices = @transform_10, window_bounds = array<i64: 1, 32>}, {pipeline_mode = #tpu.pipeline_mode<synchronous>, transform_indices = @transform_11, window_bounds = array<i64: 8, 8>}, {pipeline_mode = #tpu.pipeline_mode<synchronous>, transform_indices = @transform_12, window_bounds = array<i64: 8, 8>}, {pipeline_mode = #tpu.pipeline_mode<synchronous>, transform_indices = @transform_13, window_bounds = array<i64: 8, 8>}, {pipeline_mode = #tpu.pipeline_mode<synchronous>, transform_indices = @transform_14, window_bounds = array<i64: 32, 32>}, {pipeline_mode = #tpu.pipeline_mode<synchronous>, transform_indices = @transform_15, window_bounds = array<i64: 1, 32>}, {pipeline_mode = #tpu.pipeline_mode<synchronous>, transform_indices = @transform_16, window_bounds = array<i64: 1, 32>}, {pipeline_mode = #tpu.pipeline_mode<synchronous>, transform_indices = @transform_17, window_bounds = array<i64: 1, 32>}, {pipeline_mode = #tpu.pipeline_mode<synchronous>, transform_indices = @transform_18, window_bounds = array<i64: 32, 128>}, {pipeline_mode = #tpu.pipeline_mode<synchronous>, transform_indices = @transform_19, window_bounds = array<i64: 1, 128>}, {pipeline_mode = #tpu.pipeline_mode<synchronous>, transform_indices = @transform_20, window_bounds = array<i64: 128, 32>}, {pipeline_mode = #tpu.pipeline_mode<synchronous>, transform_indices = @transform_21, window_bounds = array<i64: 1, 32>}, {pipeline_mode = #tpu.pipeline_mode<synchronous>, transform_indices = @transform_22, window_bounds = array<i64: 1, 32>}, {pipeline_mode = #tpu.pipeline_mode<synchronous>, transform_indices = @transform_23, window_bounds = array<i64: 1, 32>}, {transform_indices = @transform_24, window_bounds = array<i64: 1, 8, 32>}]} {
    %c0 = arith.constant 0 : index
    %c0_0 = arith.constant 0 : index
    %c0_1 = arith.constant 0 : index
    %0 = vector.load %arg1[%c0, %c0_0, %c0_1] : memref<1x8x32xf32, #tpu.memory_space<vmem>>, vector<1x8x32xf32>
    %1 = vector.shape_cast %0 : vector<1x8x32xf32> to vector<8x32xf32>
    %c0_2 = arith.constant 0 : index
    %c0_3 = arith.constant 0 : index
    %c0_4 = arith.constant 0 : index
    %2 = vector.load %arg2[%c0_2, %c0_3, %c0_4] : memref<1x8x32xf32, #tpu.memory_space<vmem>>, vector<1x8x32xf32>
    %3 = vector.shape_cast %2 : vector<1x8x32xf32> to vector<8x32xf32>
    %c0_5 = arith.constant 0 : index
    %c0_6 = arith.constant 0 : index
    %c0_7 = arith.constant 0 : index
    %4 = vector.load %arg3[%c0_5, %c0_6, %c0_7] : memref<1x8x8xf32, #tpu.memory_space<vmem>>, vector<1x8x8xf32>
    %5 = vector.shape_cast %4 : vector<1x8x8xf32> to vector<8x8xf32>
    %c0_8 = arith.constant 0 : index
    %c0_9 = arith.constant 0 : index
    %c0_10 = arith.constant 0 : index
    %6 = vector.load %arg4[%c0_8, %c0_9, %c0_10] : memref<1x8x8xf32, #tpu.memory_space<vmem>>, vector<1x8x8xf32>
    %7 = vector.shape_cast %6 : vector<1x8x8xf32> to vector<8x8xf32>
    %c0_11 = arith.constant 0 : index
    %c0_12 = arith.constant 0 : index
    %8 = vector.load %arg5[%c0_11, %c0_12] : memref<8x8xbf16, #tpu.memory_space<vmem>>, vector<8x8xbf16>
    %c0_13 = arith.constant 0 : index
    %c0_14 = arith.constant 0 : index
    %9 = vector.load %arg6[%c0_13, %c0_14] : memref<8x8xbf16, #tpu.memory_space<vmem>>, vector<8x8xbf16>
    %c0_15 = arith.constant 0 : index
    %c0_16 = arith.constant 0 : index
    %10 = vector.load %arg7[%c0_15, %c0_16] : memref<8x8xbf16, #tpu.memory_space<vmem>>, vector<8x8xbf16>
    %cst = arith.constant 0.000000e+00 : f32
    %11 = vector.broadcast %cst : f32 to vector<8x32xf32>
    %12 = vector.extract_strided_slice %1 {offsets = [0, 0], sizes = [8, 8], strides = [1, 1]} : vector<8x32xf32> to vector<8x8xf32>
    %13 = arith.truncf %12 : vector<8x8xf32> to vector<8x8xbf16>
    %cst_17 = arith.constant dense<0.000000e+00> : vector<8x8xf32>
    %14 = tpu.matmul %13, %8, %cst_17 {dimension_numbers = #tpu.dot_dimension_numbers<[1], [0], [0], [1], [0, 0, 1, 1], [], []>} : vector<8x8xbf16>, vector<8x8xbf16>, vector<8x8xf32> -> vector<8x8xf32>
    %15 = vector.extract_strided_slice %1 {offsets = [0, 0], sizes = [8, 8], strides = [1, 1]} : vector<8x32xf32> to vector<8x8xf32>
    %16 = arith.truncf %15 : vector<8x8xf32> to vector<8x8xbf16>
    %cst_18 = arith.constant dense<0.000000e+00> : vector<8x8xf32>
    %17 = tpu.matmul %16, %9, %cst_18 {dimension_numbers = #tpu.dot_dimension_numbers<[1], [0], [0], [1], [0, 0, 1, 1], [], []>} : vector<8x8xbf16>, vector<8x8xbf16>, vector<8x8xf32> -> vector<8x8xf32>
    %18 = vector.extract_strided_slice %1 {offsets = [0, 0], sizes = [8, 8], strides = [1, 1]} : vector<8x32xf32> to vector<8x8xf32>
    %19 = arith.truncf %18 : vector<8x8xf32> to vector<8x8xbf16>
    %cst_19 = arith.constant dense<0.000000e+00> : vector<8x8xf32>
    %20 = tpu.matmul %19, %10, %cst_19 {dimension_numbers = #tpu.dot_dimension_numbers<[1], [0], [0], [1], [0, 0, 1, 1], [], []>} : vector<8x8xbf16>, vector<8x8xbf16>, vector<8x8xf32> -> vector<8x8xf32>
    %21 = arith.truncf %14 : vector<8x8xf32> to vector<8x8xbf16>
    %22 = arith.truncf %17 : vector<8x8xf32> to vector<8x8xbf16>
    %cst_20 = arith.constant dense<0.000000e+00> : vector<8x8xf32>
    %23 = tpu.matmul %21, %22, %cst_20 {dimension_numbers = #tpu.dot_dimension_numbers<[1], [1], [0], [0], [0, 0, 1, 0], [], []>} : vector<8x8xbf16>, vector<8x8xbf16>, vector<8x8xf32> -> vector<8x8xf32>
    %cst_21 = arith.constant 0.000000e+00 : f32
    %24 = vector.broadcast %cst_21 : f32 to vector<8x8xf32>
    %25 = arith.cmpf oeq, %5, %24 : vector<8x8xf32>
    %cst_22 = arith.constant -1.000000e+20 : f32
    %26 = vector.broadcast %cst_22 : f32 to vector<8x8xf32>
    %27 = arith.select %25, %26, %23 : vector<8x8xi1>, vector<8x8xf32>
    %cst_23 = arith.constant 0.176776692 : f32
    %28 = vector.broadcast %cst_23 : f32 to vector<8x8xf32>
    %29 = arith.mulf %27, %28 : vector<8x8xf32>
    %cst_24 = arith.constant dense<0xFF800000> : vector<8xf32>
    %30 = vector.multi_reduction <maximumf>, %29, %cst_24 [1] : vector<8x8xf32> to vector<8xf32>
    %31 = vector.shape_cast %30 : vector<8xf32> to vector<8x1xf32>
    %32 = vector.broadcast %31 : vector<8x1xf32> to vector<8x8xf32>
    %33 = arith.subf %29, %32 : vector<8x8xf32>
    %34 = math.exp %33 : vector<8x8xf32>
    %cst_25 = arith.constant dense<0.000000e+00> : vector<8xf32>
    %35 = vector.multi_reduction <add>, %34, %cst_25 [1] : vector<8x8xf32> to vector<8xf32>
    %36 = vector.shape_cast %35 : vector<8xf32> to vector<8x1xf32>
    %37 = tpu.reciprocal %36 {approx = true} : vector<8x1xf32> -> vector<8x1xf32>
    %38 = vector.broadcast %37 : vector<8x1xf32> to vector<8x8xf32>
    %39 = arith.mulf %34, %38 : vector<8x8xf32>
    %40 = arith.truncf %39 : vector<8x8xf32> to vector<8x8xbf16>
    %41 = arith.truncf %20 : vector<8x8xf32> to vector<8x8xbf16>
    %cst_26 = arith.constant dense<0.000000e+00> : vector<8x8xf32>
    %42 = tpu.matmul %40, %41, %cst_26 {dimension_numbers = #tpu.dot_dimension_numbers<[1], [0], [0], [1], [0, 0, 1, 1], [], []>} : vector<8x8xbf16>, vector<8x8xbf16>, vector<8x8xf32> -> vector<8x8xf32>
    %43 = arith.truncf %42 : vector<8x8xf32> to vector<8x8xbf16>
    %c0_27 = arith.constant 0 : index
    %c0_28 = arith.constant 0 : index
    %44 = vector.load %arg8[%c0_27, %c0_28] : memref<32x32xbf16, #tpu.memory_space<vmem>>, vector<8x32xbf16>
    %cst_29 = arith.constant dense<0.000000e+00> : vector<8x32xf32>
    %45 = tpu.matmul %43, %44, %cst_29 {dimension_numbers = #tpu.dot_dimension_numbers<[1], [0], [0], [1], [0, 0, 1, 1], [], []>} : vector<8x8xbf16>, vector<8x32xbf16>, vector<8x32xf32> -> vector<8x32xf32>
    %46 = arith.addf %11, %45 : vector<8x32xf32>
    %47 = vector.extract_strided_slice %1 {offsets = [0, 8], sizes = [8, 8], strides = [1, 1]} : vector<8x32xf32> to vector<8x8xf32>
    %48 = arith.truncf %47 : vector<8x8xf32> to vector<8x8xbf16>
    %cst_30 = arith.constant dense<0.000000e+00> : vector<8x8xf32>
    %49 = tpu.matmul %48, %8, %cst_30 {dimension_numbers = #tpu.dot_dimension_numbers<[1], [0], [0], [1], [0, 0, 1, 1], [], []>} : vector<8x8xbf16>, vector<8x8xbf16>, vector<8x8xf32> -> vector<8x8xf32>
    %50 = vector.extract_strided_slice %1 {offsets = [0, 8], sizes = [8, 8], strides = [1, 1]} : vector<8x32xf32> to vector<8x8xf32>
    %51 = arith.truncf %50 : vector<8x8xf32> to vector<8x8xbf16>
    %cst_31 = arith.constant dense<0.000000e+00> : vector<8x8xf32>
    %52 = tpu.matmul %51, %9, %cst_31 {dimension_numbers = #tpu.dot_dimension_numbers<[1], [0], [0], [1], [0, 0, 1, 1], [], []>} : vector<8x8xbf16>, vector<8x8xbf16>, vector<8x8xf32> -> vector<8x8xf32>
    %53 = vector.extract_strided_slice %1 {offsets = [0, 8], sizes = [8, 8], strides = [1, 1]} : vector<8x32xf32> to vector<8x8xf32>
    %54 = arith.truncf %53 : vector<8x8xf32> to vector<8x8xbf16>
    %cst_32 = arith.constant dense<0.000000e+00> : vector<8x8xf32>
    %55 = tpu.matmul %54, %10, %cst_32 {dimension_numbers = #tpu.dot_dimension_numbers<[1], [0], [0], [1], [0, 0, 1, 1], [], []>} : vector<8x8xbf16>, vector<8x8xbf16>, vector<8x8xf32> -> vector<8x8xf32>
    %56 = arith.truncf %49 : vector<8x8xf32> to vector<8x8xbf16>
    %57 = arith.truncf %52 : vector<8x8xf32> to vector<8x8xbf16>
    %cst_33 = arith.constant dense<0.000000e+00> : vector<8x8xf32>
    %58 = tpu.matmul %56, %57, %cst_33 {dimension_numbers = #tpu.dot_dimension_numbers<[1], [1], [0], [0], [0, 0, 1, 0], [], []>} : vector<8x8xbf16>, vector<8x8xbf16>, vector<8x8xf32> -> vector<8x8xf32>
    %cst_34 = arith.constant 0.000000e+00 : f32
    %59 = vector.broadcast %cst_34 : f32 to vector<8x8xf32>
    %60 = arith.cmpf oeq, %5, %59 : vector<8x8xf32>
    %cst_35 = arith.constant -1.000000e+20 : f32
    %61 = vector.broadcast %cst_35 : f32 to vector<8x8xf32>
    %62 = arith.select %60, %61, %58 : vector<8x8xi1>, vector<8x8xf32>
    %cst_36 = arith.constant 0.176776692 : f32
    %63 = vector.broadcast %cst_36 : f32 to vector<8x8xf32>
    %64 = arith.mulf %62, %63 : vector<8x8xf32>
    %cst_37 = arith.constant dense<0xFF800000> : vector<8xf32>
    %65 = vector.multi_reduction <maximumf>, %64, %cst_37 [1] : vector<8x8xf32> to vector<8xf32>
    %66 = vector.shape_cast %65 : vector<8xf32> to vector<8x1xf32>
    %67 = vector.broadcast %66 : vector<8x1xf32> to vector<8x8xf32>
    %68 = arith.subf %64, %67 : vector<8x8xf32>
    %69 = math.exp %68 : vector<8x8xf32>
    %cst_38 = arith.constant dense<0.000000e+00> : vector<8xf32>
    %70 = vector.multi_reduction <add>, %69, %cst_38 [1] : vector<8x8xf32> to vector<8xf32>
    %71 = vector.shape_cast %70 : vector<8xf32> to vector<8x1xf32>
    %72 = tpu.reciprocal %71 {approx = true} : vector<8x1xf32> -> vector<8x1xf32>
    %73 = vector.broadcast %72 : vector<8x1xf32> to vector<8x8xf32>
    %74 = arith.mulf %69, %73 : vector<8x8xf32>
    %75 = arith.truncf %74 : vector<8x8xf32> to vector<8x8xbf16>
    %76 = arith.truncf %55 : vector<8x8xf32> to vector<8x8xbf16>
    %cst_39 = arith.constant dense<0.000000e+00> : vector<8x8xf32>
    %77 = tpu.matmul %75, %76, %cst_39 {dimension_numbers = #tpu.dot_dimension_numbers<[1], [0], [0], [1], [0, 0, 1, 1], [], []>} : vector<8x8xbf16>, vector<8x8xbf16>, vector<8x8xf32> -> vector<8x8xf32>
    %78 = arith.truncf %77 : vector<8x8xf32> to vector<8x8xbf16>
    %c8 = arith.constant 8 : index
    %c0_40 = arith.constant 0 : index
    %79 = vector.load %arg8[%c8, %c0_40] : memref<32x32xbf16, #tpu.memory_space<vmem>>, vector<8x32xbf16>
    %cst_41 = arith.constant dense<0.000000e+00> : vector<8x32xf32>
    %80 = tpu.matmul %78, %79, %cst_41 {dimension_numbers = #tpu.dot_dimension_numbers<[1], [0], [0], [1], [0, 0, 1, 1], [], []>} : vector<8x8xbf16>, vector<8x32xbf16>, vector<8x32xf32> -> vector<8x32xf32>
    %81 = arith.addf %46, %80 : vector<8x32xf32>
    %82 = vector.extract_strided_slice %1 {offsets = [0, 16], sizes = [8, 8], strides = [1, 1]} : vector<8x32xf32> to vector<8x8xf32>
    %83 = arith.truncf %82 : vector<8x8xf32> to vector<8x8xbf16>
    %cst_42 = arith.constant dense<0.000000e+00> : vector<8x8xf32>
    %84 = tpu.matmul %83, %8, %cst_42 {dimension_numbers = #tpu.dot_dimension_numbers<[1], [0], [0], [1], [0, 0, 1, 1], [], []>} : vector<8x8xbf16>, vector<8x8xbf16>, vector<8x8xf32> -> vector<8x8xf32>
    %85 = vector.extract_strided_slice %1 {offsets = [0, 16], sizes = [8, 8], strides = [1, 1]} : vector<8x32xf32> to vector<8x8xf32>
    %86 = arith.truncf %85 : vector<8x8xf32> to vector<8x8xbf16>
    %cst_43 = arith.constant dense<0.000000e+00> : vector<8x8xf32>
    %87 = tpu.matmul %86, %9, %cst_43 {dimension_numbers = #tpu.dot_dimension_numbers<[1], [0], [0], [1], [0, 0, 1, 1], [], []>} : vector<8x8xbf16>, vector<8x8xbf16>, vector<8x8xf32> -> vector<8x8xf32>
    %88 = vector.extract_strided_slice %1 {offsets = [0, 16], sizes = [8, 8], strides = [1, 1]} : vector<8x32xf32> to vector<8x8xf32>
    %89 = arith.truncf %88 : vector<8x8xf32> to vector<8x8xbf16>
    %cst_44 = arith.constant dense<0.000000e+00> : vector<8x8xf32>
    %90 = tpu.matmul %89, %10, %cst_44 {dimension_numbers = #tpu.dot_dimension_numbers<[1], [0], [0], [1], [0, 0, 1, 1], [], []>} : vector<8x8xbf16>, vector<8x8xbf16>, vector<8x8xf32> -> vector<8x8xf32>
    %91 = arith.truncf %84 : vector<8x8xf32> to vector<8x8xbf16>
    %92 = arith.truncf %87 : vector<8x8xf32> to vector<8x8xbf16>
    %cst_45 = arith.constant dense<0.000000e+00> : vector<8x8xf32>
    %93 = tpu.matmul %91, %92, %cst_45 {dimension_numbers = #tpu.dot_dimension_numbers<[1], [1], [0], [0], [0, 0, 1, 0], [], []>} : vector<8x8xbf16>, vector<8x8xbf16>, vector<8x8xf32> -> vector<8x8xf32>
    %cst_46 = arith.constant 0.000000e+00 : f32
    %94 = vector.broadcast %cst_46 : f32 to vector<8x8xf32>
    %95 = arith.cmpf oeq, %5, %94 : vector<8x8xf32>
    %cst_47 = arith.constant -1.000000e+20 : f32
    %96 = vector.broadcast %cst_47 : f32 to vector<8x8xf32>
    %97 = arith.select %95, %96, %93 : vector<8x8xi1>, vector<8x8xf32>
    %cst_48 = arith.constant 0.176776692 : f32
    %98 = vector.broadcast %cst_48 : f32 to vector<8x8xf32>
    %99 = arith.mulf %97, %98 : vector<8x8xf32>
    %cst_49 = arith.constant dense<0xFF800000> : vector<8xf32>
    %100 = vector.multi_reduction <maximumf>, %99, %cst_49 [1] : vector<8x8xf32> to vector<8xf32>
    %101 = vector.shape_cast %100 : vector<8xf32> to vector<8x1xf32>
    %102 = vector.broadcast %101 : vector<8x1xf32> to vector<8x8xf32>
    %103 = arith.subf %99, %102 : vector<8x8xf32>
    %104 = math.exp %103 : vector<8x8xf32>
    %cst_50 = arith.constant dense<0.000000e+00> : vector<8xf32>
    %105 = vector.multi_reduction <add>, %104, %cst_50 [1] : vector<8x8xf32> to vector<8xf32>
    %106 = vector.shape_cast %105 : vector<8xf32> to vector<8x1xf32>
    %107 = tpu.reciprocal %106 {approx = true} : vector<8x1xf32> -> vector<8x1xf32>
    %108 = vector.broadcast %107 : vector<8x1xf32> to vector<8x8xf32>
    %109 = arith.mulf %104, %108 : vector<8x8xf32>
    %110 = arith.truncf %109 : vector<8x8xf32> to vector<8x8xbf16>
    %111 = arith.truncf %90 : vector<8x8xf32> to vector<8x8xbf16>
    %cst_51 = arith.constant dense<0.000000e+00> : vector<8x8xf32>
    %112 = tpu.matmul %110, %111, %cst_51 {dimension_numbers = #tpu.dot_dimension_numbers<[1], [0], [0], [1], [0, 0, 1, 1], [], []>} : vector<8x8xbf16>, vector<8x8xbf16>, vector<8x8xf32> -> vector<8x8xf32>
    %113 = arith.truncf %112 : vector<8x8xf32> to vector<8x8xbf16>
    %c16 = arith.constant 16 : index
    %c0_52 = arith.constant 0 : index
    %114 = vector.load %arg8[%c16, %c0_52] : memref<32x32xbf16, #tpu.memory_space<vmem>>, vector<8x32xbf16>
    %cst_53 = arith.constant dense<0.000000e+00> : vector<8x32xf32>
    %115 = tpu.matmul %113, %114, %cst_53 {dimension_numbers = #tpu.dot_dimension_numbers<[1], [0], [0], [1], [0, 0, 1, 1], [], []>} : vector<8x8xbf16>, vector<8x32xbf16>, vector<8x32xf32> -> vector<8x32xf32>
    %116 = arith.addf %81, %115 : vector<8x32xf32>
    %117 = vector.extract_strided_slice %1 {offsets = [0, 24], sizes = [8, 8], strides = [1, 1]} : vector<8x32xf32> to vector<8x8xf32>
    %118 = arith.truncf %117 : vector<8x8xf32> to vector<8x8xbf16>
    %cst_54 = arith.constant dense<0.000000e+00> : vector<8x8xf32>
    %119 = tpu.matmul %118, %8, %cst_54 {dimension_numbers = #tpu.dot_dimension_numbers<[1], [0], [0], [1], [0, 0, 1, 1], [], []>} : vector<8x8xbf16>, vector<8x8xbf16>, vector<8x8xf32> -> vector<8x8xf32>
    %120 = vector.extract_strided_slice %1 {offsets = [0, 24], sizes = [8, 8], strides = [1, 1]} : vector<8x32xf32> to vector<8x8xf32>
    %121 = arith.truncf %120 : vector<8x8xf32> to vector<8x8xbf16>
    %cst_55 = arith.constant dense<0.000000e+00> : vector<8x8xf32>
    %122 = tpu.matmul %121, %9, %cst_55 {dimension_numbers = #tpu.dot_dimension_numbers<[1], [0], [0], [1], [0, 0, 1, 1], [], []>} : vector<8x8xbf16>, vector<8x8xbf16>, vector<8x8xf32> -> vector<8x8xf32>
    %123 = vector.extract_strided_slice %1 {offsets = [0, 24], sizes = [8, 8], strides = [1, 1]} : vector<8x32xf32> to vector<8x8xf32>
    %124 = arith.truncf %123 : vector<8x8xf32> to vector<8x8xbf16>
    %cst_56 = arith.constant dense<0.000000e+00> : vector<8x8xf32>
    %125 = tpu.matmul %124, %10, %cst_56 {dimension_numbers = #tpu.dot_dimension_numbers<[1], [0], [0], [1], [0, 0, 1, 1], [], []>} : vector<8x8xbf16>, vector<8x8xbf16>, vector<8x8xf32> -> vector<8x8xf32>
    %126 = arith.truncf %119 : vector<8x8xf32> to vector<8x8xbf16>
    %127 = arith.truncf %122 : vector<8x8xf32> to vector<8x8xbf16>
    %cst_57 = arith.constant dense<0.000000e+00> : vector<8x8xf32>
    %128 = tpu.matmul %126, %127, %cst_57 {dimension_numbers = #tpu.dot_dimension_numbers<[1], [1], [0], [0], [0, 0, 1, 0], [], []>} : vector<8x8xbf16>, vector<8x8xbf16>, vector<8x8xf32> -> vector<8x8xf32>
    %cst_58 = arith.constant 0.000000e+00 : f32
    %129 = vector.broadcast %cst_58 : f32 to vector<8x8xf32>
    %130 = arith.cmpf oeq, %5, %129 : vector<8x8xf32>
    %cst_59 = arith.constant -1.000000e+20 : f32
    %131 = vector.broadcast %cst_59 : f32 to vector<8x8xf32>
    %132 = arith.select %130, %131, %128 : vector<8x8xi1>, vector<8x8xf32>
    %cst_60 = arith.constant 0.176776692 : f32
    %133 = vector.broadcast %cst_60 : f32 to vector<8x8xf32>
    %134 = arith.mulf %132, %133 : vector<8x8xf32>
    %cst_61 = arith.constant dense<0xFF800000> : vector<8xf32>
    %135 = vector.multi_reduction <maximumf>, %134, %cst_61 [1] : vector<8x8xf32> to vector<8xf32>
    %136 = vector.shape_cast %135 : vector<8xf32> to vector<8x1xf32>
    %137 = vector.broadcast %136 : vector<8x1xf32> to vector<8x8xf32>
    %138 = arith.subf %134, %137 : vector<8x8xf32>
    %139 = math.exp %138 : vector<8x8xf32>
    %cst_62 = arith.constant dense<0.000000e+00> : vector<8xf32>
    %140 = vector.multi_reduction <add>, %139, %cst_62 [1] : vector<8x8xf32> to vector<8xf32>
    %141 = vector.shape_cast %140 : vector<8xf32> to vector<8x1xf32>
    %142 = tpu.reciprocal %141 {approx = true} : vector<8x1xf32> -> vector<8x1xf32>
    %143 = vector.broadcast %142 : vector<8x1xf32> to vector<8x8xf32>
    %144 = arith.mulf %139, %143 : vector<8x8xf32>
    %145 = arith.truncf %144 : vector<8x8xf32> to vector<8x8xbf16>
    %146 = arith.truncf %125 : vector<8x8xf32> to vector<8x8xbf16>
    %cst_63 = arith.constant dense<0.000000e+00> : vector<8x8xf32>
    %147 = tpu.matmul %145, %146, %cst_63 {dimension_numbers = #tpu.dot_dimension_numbers<[1], [0], [0], [1], [0, 0, 1, 1], [], []>} : vector<8x8xbf16>, vector<8x8xbf16>, vector<8x8xf32> -> vector<8x8xf32>
    %148 = arith.truncf %147 : vector<8x8xf32> to vector<8x8xbf16>
    %c24 = arith.constant 24 : index
    %c0_64 = arith.constant 0 : index
    %149 = vector.load %arg8[%c24, %c0_64] : memref<32x32xbf16, #tpu.memory_space<vmem>>, vector<8x32xbf16>
    %cst_65 = arith.constant dense<0.000000e+00> : vector<8x32xf32>
    %150 = tpu.matmul %148, %149, %cst_65 {dimension_numbers = #tpu.dot_dimension_numbers<[1], [0], [0], [1], [0, 0, 1, 1], [], []>} : vector<8x8xbf16>, vector<8x32xbf16>, vector<8x32xf32> -> vector<8x32xf32>
    %151 = arith.addf %116, %150 : vector<8x32xf32>
    %c0_66 = arith.constant 0 : index
    %c0_67 = arith.constant 0 : index
    %152 = vector.load %arg9[%c0_66, %c0_67] : memref<1x32xf32, #tpu.memory_space<vmem>>, vector<1x32xf32>
    %153 = vector.broadcast %152 : vector<1x32xf32> to vector<8x32xf32>
    %154 = arith.addf %151, %153 : vector<8x32xf32>
    %155 = arith.addf %154, %1 : vector<8x32xf32>
    %cst_68 = arith.constant dense<0.000000e+00> : vector<8xf32>
    %156 = vector.multi_reduction <add>, %155, %cst_68 [1] : vector<8x32xf32> to vector<8xf32>
    %157 = vector.shape_cast %156 : vector<8xf32> to vector<8x1xf32>
    %cst_69 = arith.constant 3.200000e+01 : f32
    %158 = vector.broadcast %cst_69 : f32 to vector<8x1xf32>
    %159 = arith.divf %157, %158 : vector<8x1xf32>
    %160 = vector.broadcast %159 : vector<8x1xf32> to vector<8x32xf32>
    %161 = arith.subf %155, %160 : vector<8x32xf32>
    %162 = arith.mulf %161, %161 : vector<8x32xf32>
    %cst_70 = arith.constant dense<0.000000e+00> : vector<8xf32>
    %163 = vector.multi_reduction <add>, %162, %cst_70 [1] : vector<8x32xf32> to vector<8xf32>
    %164 = vector.shape_cast %163 : vector<8xf32> to vector<8x1xf32>
    %cst_71 = arith.constant 3.200000e+01 : f32
    %165 = vector.broadcast %cst_71 : f32 to vector<8x1xf32>
    %166 = arith.divf %164, %165 : vector<8x1xf32>
    %cst_72 = arith.constant 9.99999974E-6 : f32
    %167 = vector.broadcast %cst_72 : f32 to vector<8x1xf32>
    %168 = arith.addf %166, %167 : vector<8x1xf32>
    %169 = math.rsqrt %168 : vector<8x1xf32>
    %170 = vector.broadcast %169 : vector<8x1xf32> to vector<8x32xf32>
    %171 = arith.mulf %161, %170 : vector<8x32xf32>
    %c0_73 = arith.constant 0 : index
    %c0_74 = arith.constant 0 : index
    %172 = vector.load %arg10[%c0_73, %c0_74] : memref<1x32xf32, #tpu.memory_space<vmem>>, vector<1x32xf32>
    %173 = vector.broadcast %172 : vector<1x32xf32> to vector<8x32xf32>
    %174 = arith.mulf %171, %173 : vector<8x32xf32>
    %c0_75 = arith.constant 0 : index
    %c0_76 = arith.constant 0 : index
    %175 = vector.load %arg11[%c0_75, %c0_76] : memref<1x32xf32, #tpu.memory_space<vmem>>, vector<1x32xf32>
    %176 = vector.broadcast %175 : vector<1x32xf32> to vector<8x32xf32>
    %177 = arith.addf %174, %176 : vector<8x32xf32>
    %c0_77 = arith.constant 0 : index
    %c0_78 = arith.constant 0 : index
    %178 = vector.load %arg12[%c0_77, %c0_78] : memref<8x8xbf16, #tpu.memory_space<vmem>>, vector<8x8xbf16>
    %c0_79 = arith.constant 0 : index
    %c0_80 = arith.constant 0 : index
    %179 = vector.load %arg13[%c0_79, %c0_80] : memref<8x8xbf16, #tpu.memory_space<vmem>>, vector<8x8xbf16>
    %c0_81 = arith.constant 0 : index
    %c0_82 = arith.constant 0 : index
    %180 = vector.load %arg14[%c0_81, %c0_82] : memref<8x8xbf16, #tpu.memory_space<vmem>>, vector<8x8xbf16>
    %cst_83 = arith.constant 0.000000e+00 : f32
    %181 = vector.broadcast %cst_83 : f32 to vector<8x32xf32>
    %182 = vector.extract_strided_slice %177 {offsets = [0, 0], sizes = [8, 8], strides = [1, 1]} : vector<8x32xf32> to vector<8x8xf32>
    %183 = arith.truncf %182 : vector<8x8xf32> to vector<8x8xbf16>
    %cst_84 = arith.constant dense<0.000000e+00> : vector<8x8xf32>
    %184 = tpu.matmul %183, %178, %cst_84 {dimension_numbers = #tpu.dot_dimension_numbers<[1], [0], [0], [1], [0, 0, 1, 1], [], []>} : vector<8x8xbf16>, vector<8x8xbf16>, vector<8x8xf32> -> vector<8x8xf32>
    %185 = vector.extract_strided_slice %3 {offsets = [0, 0], sizes = [8, 8], strides = [1, 1]} : vector<8x32xf32> to vector<8x8xf32>
    %186 = arith.truncf %185 : vector<8x8xf32> to vector<8x8xbf16>
    %cst_85 = arith.constant dense<0.000000e+00> : vector<8x8xf32>
    %187 = tpu.matmul %186, %179, %cst_85 {dimension_numbers = #tpu.dot_dimension_numbers<[1], [0], [0], [1], [0, 0, 1, 1], [], []>} : vector<8x8xbf16>, vector<8x8xbf16>, vector<8x8xf32> -> vector<8x8xf32>
    %188 = vector.extract_strided_slice %3 {offsets = [0, 0], sizes = [8, 8], strides = [1, 1]} : vector<8x32xf32> to vector<8x8xf32>
    %189 = arith.truncf %188 : vector<8x8xf32> to vector<8x8xbf16>
    %cst_86 = arith.constant dense<0.000000e+00> : vector<8x8xf32>
    %190 = tpu.matmul %189, %180, %cst_86 {dimension_numbers = #tpu.dot_dimension_numbers<[1], [0], [0], [1], [0, 0, 1, 1], [], []>} : vector<8x8xbf16>, vector<8x8xbf16>, vector<8x8xf32> -> vector<8x8xf32>
    %191 = arith.truncf %184 : vector<8x8xf32> to vector<8x8xbf16>
    %192 = arith.truncf %187 : vector<8x8xf32> to vector<8x8xbf16>
    %cst_87 = arith.constant dense<0.000000e+00> : vector<8x8xf32>
    %193 = tpu.matmul %191, %192, %cst_87 {dimension_numbers = #tpu.dot_dimension_numbers<[1], [1], [0], [0], [0, 0, 1, 0], [], []>} : vector<8x8xbf16>, vector<8x8xbf16>, vector<8x8xf32> -> vector<8x8xf32>
    %cst_88 = arith.constant 0.000000e+00 : f32
    %194 = vector.broadcast %cst_88 : f32 to vector<8x8xf32>
    %195 = arith.cmpf oeq, %7, %194 : vector<8x8xf32>
    %cst_89 = arith.constant -1.000000e+20 : f32
    %196 = vector.broadcast %cst_89 : f32 to vector<8x8xf32>
    %197 = arith.select %195, %196, %193 : vector<8x8xi1>, vector<8x8xf32>
    %cst_90 = arith.constant 0.176776692 : f32
    %198 = vector.broadcast %cst_90 : f32 to vector<8x8xf32>
    %199 = arith.mulf %197, %198 : vector<8x8xf32>
    %cst_91 = arith.constant dense<0xFF800000> : vector<8xf32>
    %200 = vector.multi_reduction <maximumf>, %199, %cst_91 [1] : vector<8x8xf32> to vector<8xf32>
    %201 = vector.shape_cast %200 : vector<8xf32> to vector<8x1xf32>
    %202 = vector.broadcast %201 : vector<8x1xf32> to vector<8x8xf32>
    %203 = arith.subf %199, %202 : vector<8x8xf32>
    %204 = math.exp %203 : vector<8x8xf32>
    %cst_92 = arith.constant dense<0.000000e+00> : vector<8xf32>
    %205 = vector.multi_reduction <add>, %204, %cst_92 [1] : vector<8x8xf32> to vector<8xf32>
    %206 = vector.shape_cast %205 : vector<8xf32> to vector<8x1xf32>
    %207 = tpu.reciprocal %206 {approx = true} : vector<8x1xf32> -> vector<8x1xf32>
    %208 = vector.broadcast %207 : vector<8x1xf32> to vector<8x8xf32>
    %209 = arith.mulf %204, %208 : vector<8x8xf32>
    %210 = arith.truncf %209 : vector<8x8xf32> to vector<8x8xbf16>
    %211 = arith.truncf %190 : vector<8x8xf32> to vector<8x8xbf16>
    %cst_93 = arith.constant dense<0.000000e+00> : vector<8x8xf32>
    %212 = tpu.matmul %210, %211, %cst_93 {dimension_numbers = #tpu.dot_dimension_numbers<[1], [0], [0], [1], [0, 0, 1, 1], [], []>} : vector<8x8xbf16>, vector<8x8xbf16>, vector<8x8xf32> -> vector<8x8xf32>
    %213 = arith.truncf %212 : vector<8x8xf32> to vector<8x8xbf16>
    %c0_94 = arith.constant 0 : index
    %c0_95 = arith.constant 0 : index
    %214 = vector.load %arg15[%c0_94, %c0_95] : memref<32x32xbf16, #tpu.memory_space<vmem>>, vector<8x32xbf16>
    %cst_96 = arith.constant dense<0.000000e+00> : vector<8x32xf32>
    %215 = tpu.matmul %213, %214, %cst_96 {dimension_numbers = #tpu.dot_dimension_numbers<[1], [0], [0], [1], [0, 0, 1, 1], [], []>} : vector<8x8xbf16>, vector<8x32xbf16>, vector<8x32xf32> -> vector<8x32xf32>
    %216 = arith.addf %181, %215 : vector<8x32xf32>
    %217 = vector.extract_strided_slice %177 {offsets = [0, 8], sizes = [8, 8], strides = [1, 1]} : vector<8x32xf32> to vector<8x8xf32>
    %218 = arith.truncf %217 : vector<8x8xf32> to vector<8x8xbf16>
    %cst_97 = arith.constant dense<0.000000e+00> : vector<8x8xf32>
    %219 = tpu.matmul %218, %178, %cst_97 {dimension_numbers = #tpu.dot_dimension_numbers<[1], [0], [0], [1], [0, 0, 1, 1], [], []>} : vector<8x8xbf16>, vector<8x8xbf16>, vector<8x8xf32> -> vector<8x8xf32>
    %220 = vector.extract_strided_slice %3 {offsets = [0, 8], sizes = [8, 8], strides = [1, 1]} : vector<8x32xf32> to vector<8x8xf32>
    %221 = arith.truncf %220 : vector<8x8xf32> to vector<8x8xbf16>
    %cst_98 = arith.constant dense<0.000000e+00> : vector<8x8xf32>
    %222 = tpu.matmul %221, %179, %cst_98 {dimension_numbers = #tpu.dot_dimension_numbers<[1], [0], [0], [1], [0, 0, 1, 1], [], []>} : vector<8x8xbf16>, vector<8x8xbf16>, vector<8x8xf32> -> vector<8x8xf32>
    %223 = vector.extract_strided_slice %3 {offsets = [0, 8], sizes = [8, 8], strides = [1, 1]} : vector<8x32xf32> to vector<8x8xf32>
    %224 = arith.truncf %223 : vector<8x8xf32> to vector<8x8xbf16>
    %cst_99 = arith.constant dense<0.000000e+00> : vector<8x8xf32>
    %225 = tpu.matmul %224, %180, %cst_99 {dimension_numbers = #tpu.dot_dimension_numbers<[1], [0], [0], [1], [0, 0, 1, 1], [], []>} : vector<8x8xbf16>, vector<8x8xbf16>, vector<8x8xf32> -> vector<8x8xf32>
    %226 = arith.truncf %219 : vector<8x8xf32> to vector<8x8xbf16>
    %227 = arith.truncf %222 : vector<8x8xf32> to vector<8x8xbf16>
    %cst_100 = arith.constant dense<0.000000e+00> : vector<8x8xf32>
    %228 = tpu.matmul %226, %227, %cst_100 {dimension_numbers = #tpu.dot_dimension_numbers<[1], [1], [0], [0], [0, 0, 1, 0], [], []>} : vector<8x8xbf16>, vector<8x8xbf16>, vector<8x8xf32> -> vector<8x8xf32>
    %cst_101 = arith.constant 0.000000e+00 : f32
    %229 = vector.broadcast %cst_101 : f32 to vector<8x8xf32>
    %230 = arith.cmpf oeq, %7, %229 : vector<8x8xf32>
    %cst_102 = arith.constant -1.000000e+20 : f32
    %231 = vector.broadcast %cst_102 : f32 to vector<8x8xf32>
    %232 = arith.select %230, %231, %228 : vector<8x8xi1>, vector<8x8xf32>
    %cst_103 = arith.constant 0.176776692 : f32
    %233 = vector.broadcast %cst_103 : f32 to vector<8x8xf32>
    %234 = arith.mulf %232, %233 : vector<8x8xf32>
    %cst_104 = arith.constant dense<0xFF800000> : vector<8xf32>
    %235 = vector.multi_reduction <maximumf>, %234, %cst_104 [1] : vector<8x8xf32> to vector<8xf32>
    %236 = vector.shape_cast %235 : vector<8xf32> to vector<8x1xf32>
    %237 = vector.broadcast %236 : vector<8x1xf32> to vector<8x8xf32>
    %238 = arith.subf %234, %237 : vector<8x8xf32>
    %239 = math.exp %238 : vector<8x8xf32>
    %cst_105 = arith.constant dense<0.000000e+00> : vector<8xf32>
    %240 = vector.multi_reduction <add>, %239, %cst_105 [1] : vector<8x8xf32> to vector<8xf32>
    %241 = vector.shape_cast %240 : vector<8xf32> to vector<8x1xf32>
    %242 = tpu.reciprocal %241 {approx = true} : vector<8x1xf32> -> vector<8x1xf32>
    %243 = vector.broadcast %242 : vector<8x1xf32> to vector<8x8xf32>
    %244 = arith.mulf %239, %243 : vector<8x8xf32>
    %245 = arith.truncf %244 : vector<8x8xf32> to vector<8x8xbf16>
    %246 = arith.truncf %225 : vector<8x8xf32> to vector<8x8xbf16>
    %cst_106 = arith.constant dense<0.000000e+00> : vector<8x8xf32>
    %247 = tpu.matmul %245, %246, %cst_106 {dimension_numbers = #tpu.dot_dimension_numbers<[1], [0], [0], [1], [0, 0, 1, 1], [], []>} : vector<8x8xbf16>, vector<8x8xbf16>, vector<8x8xf32> -> vector<8x8xf32>
    %248 = arith.truncf %247 : vector<8x8xf32> to vector<8x8xbf16>
    %c8_107 = arith.constant 8 : index
    %c0_108 = arith.constant 0 : index
    %249 = vector.load %arg15[%c8_107, %c0_108] : memref<32x32xbf16, #tpu.memory_space<vmem>>, vector<8x32xbf16>
    %cst_109 = arith.constant dense<0.000000e+00> : vector<8x32xf32>
    %250 = tpu.matmul %248, %249, %cst_109 {dimension_numbers = #tpu.dot_dimension_numbers<[1], [0], [0], [1], [0, 0, 1, 1], [], []>} : vector<8x8xbf16>, vector<8x32xbf16>, vector<8x32xf32> -> vector<8x32xf32>
    %251 = arith.addf %216, %250 : vector<8x32xf32>
    %252 = vector.extract_strided_slice %177 {offsets = [0, 16], sizes = [8, 8], strides = [1, 1]} : vector<8x32xf32> to vector<8x8xf32>
    %253 = arith.truncf %252 : vector<8x8xf32> to vector<8x8xbf16>
    %cst_110 = arith.constant dense<0.000000e+00> : vector<8x8xf32>
    %254 = tpu.matmul %253, %178, %cst_110 {dimension_numbers = #tpu.dot_dimension_numbers<[1], [0], [0], [1], [0, 0, 1, 1], [], []>} : vector<8x8xbf16>, vector<8x8xbf16>, vector<8x8xf32> -> vector<8x8xf32>
    %255 = vector.extract_strided_slice %3 {offsets = [0, 16], sizes = [8, 8], strides = [1, 1]} : vector<8x32xf32> to vector<8x8xf32>
    %256 = arith.truncf %255 : vector<8x8xf32> to vector<8x8xbf16>
    %cst_111 = arith.constant dense<0.000000e+00> : vector<8x8xf32>
    %257 = tpu.matmul %256, %179, %cst_111 {dimension_numbers = #tpu.dot_dimension_numbers<[1], [0], [0], [1], [0, 0, 1, 1], [], []>} : vector<8x8xbf16>, vector<8x8xbf16>, vector<8x8xf32> -> vector<8x8xf32>
    %258 = vector.extract_strided_slice %3 {offsets = [0, 16], sizes = [8, 8], strides = [1, 1]} : vector<8x32xf32> to vector<8x8xf32>
    %259 = arith.truncf %258 : vector<8x8xf32> to vector<8x8xbf16>
    %cst_112 = arith.constant dense<0.000000e+00> : vector<8x8xf32>
    %260 = tpu.matmul %259, %180, %cst_112 {dimension_numbers = #tpu.dot_dimension_numbers<[1], [0], [0], [1], [0, 0, 1, 1], [], []>} : vector<8x8xbf16>, vector<8x8xbf16>, vector<8x8xf32> -> vector<8x8xf32>
    %261 = arith.truncf %254 : vector<8x8xf32> to vector<8x8xbf16>
    %262 = arith.truncf %257 : vector<8x8xf32> to vector<8x8xbf16>
    %cst_113 = arith.constant dense<0.000000e+00> : vector<8x8xf32>
    %263 = tpu.matmul %261, %262, %cst_113 {dimension_numbers = #tpu.dot_dimension_numbers<[1], [1], [0], [0], [0, 0, 1, 0], [], []>} : vector<8x8xbf16>, vector<8x8xbf16>, vector<8x8xf32> -> vector<8x8xf32>
    %cst_114 = arith.constant 0.000000e+00 : f32
    %264 = vector.broadcast %cst_114 : f32 to vector<8x8xf32>
    %265 = arith.cmpf oeq, %7, %264 : vector<8x8xf32>
    %cst_115 = arith.constant -1.000000e+20 : f32
    %266 = vector.broadcast %cst_115 : f32 to vector<8x8xf32>
    %267 = arith.select %265, %266, %263 : vector<8x8xi1>, vector<8x8xf32>
    %cst_116 = arith.constant 0.176776692 : f32
    %268 = vector.broadcast %cst_116 : f32 to vector<8x8xf32>
    %269 = arith.mulf %267, %268 : vector<8x8xf32>
    %cst_117 = arith.constant dense<0xFF800000> : vector<8xf32>
    %270 = vector.multi_reduction <maximumf>, %269, %cst_117 [1] : vector<8x8xf32> to vector<8xf32>
    %271 = vector.shape_cast %270 : vector<8xf32> to vector<8x1xf32>
    %272 = vector.broadcast %271 : vector<8x1xf32> to vector<8x8xf32>
    %273 = arith.subf %269, %272 : vector<8x8xf32>
    %274 = math.exp %273 : vector<8x8xf32>
    %cst_118 = arith.constant dense<0.000000e+00> : vector<8xf32>
    %275 = vector.multi_reduction <add>, %274, %cst_118 [1] : vector<8x8xf32> to vector<8xf32>
    %276 = vector.shape_cast %275 : vector<8xf32> to vector<8x1xf32>
    %277 = tpu.reciprocal %276 {approx = true} : vector<8x1xf32> -> vector<8x1xf32>
    %278 = vector.broadcast %277 : vector<8x1xf32> to vector<8x8xf32>
    %279 = arith.mulf %274, %278 : vector<8x8xf32>
    %280 = arith.truncf %279 : vector<8x8xf32> to vector<8x8xbf16>
    %281 = arith.truncf %260 : vector<8x8xf32> to vector<8x8xbf16>
    %cst_119 = arith.constant dense<0.000000e+00> : vector<8x8xf32>
    %282 = tpu.matmul %280, %281, %cst_119 {dimension_numbers = #tpu.dot_dimension_numbers<[1], [0], [0], [1], [0, 0, 1, 1], [], []>} : vector<8x8xbf16>, vector<8x8xbf16>, vector<8x8xf32> -> vector<8x8xf32>
    %283 = arith.truncf %282 : vector<8x8xf32> to vector<8x8xbf16>
    %c16_120 = arith.constant 16 : index
    %c0_121 = arith.constant 0 : index
    %284 = vector.load %arg15[%c16_120, %c0_121] : memref<32x32xbf16, #tpu.memory_space<vmem>>, vector<8x32xbf16>
    %cst_122 = arith.constant dense<0.000000e+00> : vector<8x32xf32>
    %285 = tpu.matmul %283, %284, %cst_122 {dimension_numbers = #tpu.dot_dimension_numbers<[1], [0], [0], [1], [0, 0, 1, 1], [], []>} : vector<8x8xbf16>, vector<8x32xbf16>, vector<8x32xf32> -> vector<8x32xf32>
    %286 = arith.addf %251, %285 : vector<8x32xf32>
    %287 = vector.extract_strided_slice %177 {offsets = [0, 24], sizes = [8, 8], strides = [1, 1]} : vector<8x32xf32> to vector<8x8xf32>
    %288 = arith.truncf %287 : vector<8x8xf32> to vector<8x8xbf16>
    %cst_123 = arith.constant dense<0.000000e+00> : vector<8x8xf32>
    %289 = tpu.matmul %288, %178, %cst_123 {dimension_numbers = #tpu.dot_dimension_numbers<[1], [0], [0], [1], [0, 0, 1, 1], [], []>} : vector<8x8xbf16>, vector<8x8xbf16>, vector<8x8xf32> -> vector<8x8xf32>
    %290 = vector.extract_strided_slice %3 {offsets = [0, 24], sizes = [8, 8], strides = [1, 1]} : vector<8x32xf32> to vector<8x8xf32>
    %291 = arith.truncf %290 : vector<8x8xf32> to vector<8x8xbf16>
    %cst_124 = arith.constant dense<0.000000e+00> : vector<8x8xf32>
    %292 = tpu.matmul %291, %179, %cst_124 {dimension_numbers = #tpu.dot_dimension_numbers<[1], [0], [0], [1], [0, 0, 1, 1], [], []>} : vector<8x8xbf16>, vector<8x8xbf16>, vector<8x8xf32> -> vector<8x8xf32>
    %293 = vector.extract_strided_slice %3 {offsets = [0, 24], sizes = [8, 8], strides = [1, 1]} : vector<8x32xf32> to vector<8x8xf32>
    %294 = arith.truncf %293 : vector<8x8xf32> to vector<8x8xbf16>
    %cst_125 = arith.constant dense<0.000000e+00> : vector<8x8xf32>
    %295 = tpu.matmul %294, %180, %cst_125 {dimension_numbers = #tpu.dot_dimension_numbers<[1], [0], [0], [1], [0, 0, 1, 1], [], []>} : vector<8x8xbf16>, vector<8x8xbf16>, vector<8x8xf32> -> vector<8x8xf32>
    %296 = arith.truncf %289 : vector<8x8xf32> to vector<8x8xbf16>
    %297 = arith.truncf %292 : vector<8x8xf32> to vector<8x8xbf16>
    %cst_126 = arith.constant dense<0.000000e+00> : vector<8x8xf32>
    %298 = tpu.matmul %296, %297, %cst_126 {dimension_numbers = #tpu.dot_dimension_numbers<[1], [1], [0], [0], [0, 0, 1, 0], [], []>} : vector<8x8xbf16>, vector<8x8xbf16>, vector<8x8xf32> -> vector<8x8xf32>
    %cst_127 = arith.constant 0.000000e+00 : f32
    %299 = vector.broadcast %cst_127 : f32 to vector<8x8xf32>
    %300 = arith.cmpf oeq, %7, %299 : vector<8x8xf32>
    %cst_128 = arith.constant -1.000000e+20 : f32
    %301 = vector.broadcast %cst_128 : f32 to vector<8x8xf32>
    %302 = arith.select %300, %301, %298 : vector<8x8xi1>, vector<8x8xf32>
    %cst_129 = arith.constant 0.176776692 : f32
    %303 = vector.broadcast %cst_129 : f32 to vector<8x8xf32>
    %304 = arith.mulf %302, %303 : vector<8x8xf32>
    %cst_130 = arith.constant dense<0xFF800000> : vector<8xf32>
    %305 = vector.multi_reduction <maximumf>, %304, %cst_130 [1] : vector<8x8xf32> to vector<8xf32>
    %306 = vector.shape_cast %305 : vector<8xf32> to vector<8x1xf32>
    %307 = vector.broadcast %306 : vector<8x1xf32> to vector<8x8xf32>
    %308 = arith.subf %304, %307 : vector<8x8xf32>
    %309 = math.exp %308 : vector<8x8xf32>
    %cst_131 = arith.constant dense<0.000000e+00> : vector<8xf32>
    %310 = vector.multi_reduction <add>, %309, %cst_131 [1] : vector<8x8xf32> to vector<8xf32>
    %311 = vector.shape_cast %310 : vector<8xf32> to vector<8x1xf32>
    %312 = tpu.reciprocal %311 {approx = true} : vector<8x1xf32> -> vector<8x1xf32>
    %313 = vector.broadcast %312 : vector<8x1xf32> to vector<8x8xf32>
    %314 = arith.mulf %309, %313 : vector<8x8xf32>
    %315 = arith.truncf %314 : vector<8x8xf32> to vector<8x8xbf16>
    %316 = arith.truncf %295 : vector<8x8xf32> to vector<8x8xbf16>
    %cst_132 = arith.constant dense<0.000000e+00> : vector<8x8xf32>
    %317 = tpu.matmul %315, %316, %cst_132 {dimension_numbers = #tpu.dot_dimension_numbers<[1], [0], [0], [1], [0, 0, 1, 1], [], []>} : vector<8x8xbf16>, vector<8x8xbf16>, vector<8x8xf32> -> vector<8x8xf32>
    %318 = arith.truncf %317 : vector<8x8xf32> to vector<8x8xbf16>
    %c24_133 = arith.constant 24 : index
    %c0_134 = arith.constant 0 : index
    %319 = vector.load %arg15[%c24_133, %c0_134] : memref<32x32xbf16, #tpu.memory_space<vmem>>, vector<8x32xbf16>
    %cst_135 = arith.constant dense<0.000000e+00> : vector<8x32xf32>
    %320 = tpu.matmul %318, %319, %cst_135 {dimension_numbers = #tpu.dot_dimension_numbers<[1], [0], [0], [1], [0, 0, 1, 1], [], []>} : vector<8x8xbf16>, vector<8x32xbf16>, vector<8x32xf32> -> vector<8x32xf32>
    %321 = arith.addf %286, %320 : vector<8x32xf32>
    %c0_136 = arith.constant 0 : index
    %c0_137 = arith.constant 0 : index
    %322 = vector.load %arg16[%c0_136, %c0_137] : memref<1x32xf32, #tpu.memory_space<vmem>>, vector<1x32xf32>
    %323 = vector.broadcast %322 : vector<1x32xf32> to vector<8x32xf32>
    %324 = arith.addf %321, %323 : vector<8x32xf32>
    %325 = arith.addf %324, %177 : vector<8x32xf32>
    %cst_138 = arith.constant dense<0.000000e+00> : vector<8xf32>
    %326 = vector.multi_reduction <add>, %325, %cst_138 [1] : vector<8x32xf32> to vector<8xf32>
    %327 = vector.shape_cast %326 : vector<8xf32> to vector<8x1xf32>
    %cst_139 = arith.constant 3.200000e+01 : f32
    %328 = vector.broadcast %cst_139 : f32 to vector<8x1xf32>
    %329 = arith.divf %327, %328 : vector<8x1xf32>
    %330 = vector.broadcast %329 : vector<8x1xf32> to vector<8x32xf32>
    %331 = arith.subf %325, %330 : vector<8x32xf32>
    %332 = arith.mulf %331, %331 : vector<8x32xf32>
    %cst_140 = arith.constant dense<0.000000e+00> : vector<8xf32>
    %333 = vector.multi_reduction <add>, %332, %cst_140 [1] : vector<8x32xf32> to vector<8xf32>
    %334 = vector.shape_cast %333 : vector<8xf32> to vector<8x1xf32>
    %cst_141 = arith.constant 3.200000e+01 : f32
    %335 = vector.broadcast %cst_141 : f32 to vector<8x1xf32>
    %336 = arith.divf %334, %335 : vector<8x1xf32>
    %cst_142 = arith.constant 9.99999974E-6 : f32
    %337 = vector.broadcast %cst_142 : f32 to vector<8x1xf32>
    %338 = arith.addf %336, %337 : vector<8x1xf32>
    %339 = math.rsqrt %338 : vector<8x1xf32>
    %340 = vector.broadcast %339 : vector<8x1xf32> to vector<8x32xf32>
    %341 = arith.mulf %331, %340 : vector<8x32xf32>
    %c0_143 = arith.constant 0 : index
    %c0_144 = arith.constant 0 : index
    %342 = vector.load %arg17[%c0_143, %c0_144] : memref<1x32xf32, #tpu.memory_space<vmem>>, vector<1x32xf32>
    %343 = vector.broadcast %342 : vector<1x32xf32> to vector<8x32xf32>
    %344 = arith.mulf %341, %343 : vector<8x32xf32>
    %c0_145 = arith.constant 0 : index
    %c0_146 = arith.constant 0 : index
    %345 = vector.load %arg18[%c0_145, %c0_146] : memref<1x32xf32, #tpu.memory_space<vmem>>, vector<1x32xf32>
    %346 = vector.broadcast %345 : vector<1x32xf32> to vector<8x32xf32>
    %347 = arith.addf %344, %346 : vector<8x32xf32>
    %348 = arith.truncf %347 : vector<8x32xf32> to vector<8x32xbf16>
    %c0_147 = arith.constant 0 : index
    %c0_148 = arith.constant 0 : index
    %349 = vector.load %arg19[%c0_147, %c0_148] : memref<32x128xbf16, #tpu.memory_space<vmem>>, vector<32x128xbf16>
    %cst_149 = arith.constant dense<0.000000e+00> : vector<8x128xf32>
    %350 = tpu.matmul %348, %349, %cst_149 {dimension_numbers = #tpu.dot_dimension_numbers<[1], [0], [0], [1], [0, 0, 1, 1], [], []>} : vector<8x32xbf16>, vector<32x128xbf16>, vector<8x128xf32> -> vector<8x128xf32>
    %c0_150 = arith.constant 0 : index
    %c0_151 = arith.constant 0 : index
    %351 = vector.load %arg20[%c0_150, %c0_151] : memref<1x128xf32, #tpu.memory_space<vmem>>, vector<1x128xf32>
    %352 = vector.broadcast %351 : vector<1x128xf32> to vector<8x128xf32>
    %353 = arith.addf %350, %352 : vector<8x128xf32>
    %cst_152 = arith.constant 0.000000e+00 : f32
    %354 = vector.broadcast %cst_152 : f32 to vector<8x128xf32>
    %355 = arith.maximumf %353, %354 : vector<8x128xf32>
    %356 = arith.truncf %355 : vector<8x128xf32> to vector<8x128xbf16>
    %c0_153 = arith.constant 0 : index
    %c0_154 = arith.constant 0 : index
    %357 = vector.load %arg21[%c0_153, %c0_154] : memref<128x32xbf16, #tpu.memory_space<vmem>>, vector<128x32xbf16>
    %cst_155 = arith.constant dense<0.000000e+00> : vector<8x32xf32>
    %358 = tpu.matmul %356, %357, %cst_155 {dimension_numbers = #tpu.dot_dimension_numbers<[1], [0], [0], [1], [0, 0, 1, 1], [], []>} : vector<8x128xbf16>, vector<128x32xbf16>, vector<8x32xf32> -> vector<8x32xf32>
    %c0_156 = arith.constant 0 : index
    %c0_157 = arith.constant 0 : index
    %359 = vector.load %arg22[%c0_156, %c0_157] : memref<1x32xf32, #tpu.memory_space<vmem>>, vector<1x32xf32>
    %360 = vector.broadcast %359 : vector<1x32xf32> to vector<8x32xf32>
    %361 = arith.addf %358, %360 : vector<8x32xf32>
    %362 = arith.addf %361, %347 : vector<8x32xf32>
    %cst_158 = arith.constant dense<0.000000e+00> : vector<8xf32>
    %363 = vector.multi_reduction <add>, %362, %cst_158 [1] : vector<8x32xf32> to vector<8xf32>
    %364 = vector.shape_cast %363 : vector<8xf32> to vector<8x1xf32>
    %cst_159 = arith.constant 3.200000e+01 : f32
    %365 = vector.broadcast %cst_159 : f32 to vector<8x1xf32>
    %366 = arith.divf %364, %365 : vector<8x1xf32>
    %367 = vector.broadcast %366 : vector<8x1xf32> to vector<8x32xf32>
    %368 = arith.subf %362, %367 : vector<8x32xf32>
    %369 = arith.mulf %368, %368 : vector<8x32xf32>
    %cst_160 = arith.constant dense<0.000000e+00> : vector<8xf32>
    %370 = vector.multi_reduction <add>, %369, %cst_160 [1] : vector<8x32xf32> to vector<8xf32>
    %371 = vector.shape_cast %370 : vector<8xf32> to vector<8x1xf32>
    %cst_161 = arith.constant 3.200000e+01 : f32
    %372 = vector.broadcast %cst_161 : f32 to vector<8x1xf32>
    %373 = arith.divf %371, %372 : vector<8x1xf32>
    %cst_162 = arith.constant 9.99999974E-6 : f32
    %374 = vector.broadcast %cst_162 : f32 to vector<8x1xf32>
    %375 = arith.addf %373, %374 : vector<8x1xf32>
    %376 = math.rsqrt %375 : vector<8x1xf32>
    %377 = vector.broadcast %376 : vector<8x1xf32> to vector<8x32xf32>
    %378 = arith.mulf %368, %377 : vector<8x32xf32>
    %c0_163 = arith.constant 0 : index
    %c0_164 = arith.constant 0 : index
    %379 = vector.load %arg23[%c0_163, %c0_164] : memref<1x32xf32, #tpu.memory_space<vmem>>, vector<1x32xf32>
    %380 = vector.broadcast %379 : vector<1x32xf32> to vector<8x32xf32>
    %381 = arith.mulf %378, %380 : vector<8x32xf32>
    %c0_165 = arith.constant 0 : index
    %c0_166 = arith.constant 0 : index
    %382 = vector.load %arg24[%c0_165, %c0_166] : memref<1x32xf32, #tpu.memory_space<vmem>>, vector<1x32xf32>
    %383 = vector.broadcast %382 : vector<1x32xf32> to vector<8x32xf32>
    %384 = arith.addf %381, %383 : vector<8x32xf32>
    %c0_167 = arith.constant 0 : index
    %c0_168 = arith.constant 0 : index
    %c0_169 = arith.constant 0 : index
    %385 = vector.load %arg25[%c0_167, %c0_168, %c0_169] : memref<1x8x32xf32, #tpu.memory_space<vmem>>, vector<1x8x32xf32>
    %386 = vector.shape_cast %385 : vector<1x8x32xf32> to vector<8x32xf32>
    %387 = vector.shape_cast %384 : vector<8x32xf32> to vector<1x8x32xf32>
    tpu.vector_store %arg25[%c0_167, %c0_168, %c0_169], %387 {strides = array<i32>} : memref<1x8x32xf32, #tpu.memory_space<vmem>>, vector<1x8x32xf32>,
    return
  }
  func.func @transform_0(%arg0: i32) -> (i32, i32, i32) {
    %c0_i32 = arith.constant 0 : i32
    %c0_i32_0 = arith.constant 0 : i32
    %c0_i32_1 = arith.constant 0 : i32
    return %arg0, %c0_i32, %c0_i32_0 : i32, i32, i32
  }
  func.func @transform_1(%arg0: i32) -> (i32, i32, i32) {
    %c0_i32 = arith.constant 0 : i32
    %c0_i32_0 = arith.constant 0 : i32
    %c0_i32_1 = arith.constant 0 : i32
    return %arg0, %c0_i32, %c0_i32_0 : i32, i32, i32
  }
  func.func @transform_2(%arg0: i32) -> (i32, i32, i32) {
    %c0_i32 = arith.constant 0 : i32
    %c0_i32_0 = arith.constant 0 : i32
    %c0_i32_1 = arith.constant 0 : i32
    return %arg0, %c0_i32, %c0_i32_0 : i32, i32, i32
  }
  func.func @transform_3(%arg0: i32) -> (i32, i32, i32) {
    %c0_i32 = arith.constant 0 : i32
    %c0_i32_0 = arith.constant 0 : i32
    %c0_i32_1 = arith.constant 0 : i32
    return %arg0, %c0_i32, %c0_i32_0 : i32, i32, i32
  }
  func.func @transform_4(%arg0: i32) -> (i32, i32) {
    %c0_i32 = arith.constant 0 : i32
    %c0_i32_0 = arith.constant 0 : i32
    %c0_i32_1 = arith.constant 0 : i32
    return %c0_i32, %c0_i32_0 : i32, i32
  }
  func.func @transform_5(%arg0: i32) -> (i32, i32) {
    %c0_i32 = arith.constant 0 : i32
    %c0_i32_0 = arith.constant 0 : i32
    %c0_i32_1 = arith.constant 0 : i32
    return %c0_i32, %c0_i32_0 : i32, i32
  }
  func.func @transform_6(%arg0: i32) -> (i32, i32) {
    %c0_i32 = arith.constant 0 : i32
    %c0_i32_0 = arith.constant 0 : i32
    %c0_i32_1 = arith.constant 0 : i32
    return %c0_i32, %c0_i32_0 : i32, i32
  }
  func.func @transform_7(%arg0: i32) -> (i32, i32) {
    %c0_i32 = arith.constant 0 : i32
    %c0_i32_0 = arith.constant 0 : i32
    %c0_i32_1 = arith.constant 0 : i32
    return %c0_i32, %c0_i32_0 : i32, i32
  }
  func.func @transform_8(%arg0: i32) -> (i32, i32) {
    %c0_i32 = arith.constant 0 : i32
    %c0_i32_0 = arith.constant 0 : i32
    %c0_i32_1 = arith.constant 0 : i32
    return %c0_i32, %c0_i32_0 : i32, i32
  }
  func.func @transform_9(%arg0: i32) -> (i32, i32) {
    %c0_i32 = arith.constant 0 : i32
    %c0_i32_0 = arith.constant 0 : i32
    %c0_i32_1 = arith.constant 0 : i32
    return %c0_i32, %c0_i32_0 : i32, i32
  }
  func.func @transform_10(%arg0: i32) -> (i32, i32) {
    %c0_i32 = arith.constant 0 : i32
    %c0_i32_0 = arith.constant 0 : i32
    %c0_i32_1 = arith.constant 0 : i32
    return %c0_i32, %c0_i32_0 : i32, i32
  }
  func.func @transform_11(%arg0: i32) -> (i32, i32) {
    %c0_i32 = arith.constant 0 : i32
    %c0_i32_0 = arith.constant 0 : i32
    %c0_i32_1 = arith.constant 0 : i32
    return %c0_i32, %c0_i32_0 : i32, i32
  }
  func.func @transform_12(%arg0: i32) -> (i32, i32) {
    %c0_i32 = arith.constant 0 : i32
    %c0_i32_0 = arith.constant 0 : i32
    %c0_i32_1 = arith.constant 0 : i32
    return %c0_i32, %c0_i32_0 : i32, i32
  }
  func.func @transform_13(%arg0: i32) -> (i32, i32) {
    %c0_i32 = arith.constant 0 : i32
    %c0_i32_0 = arith.constant 0 : i32
    %c0_i32_1 = arith.constant 0 : i32
    return %c0_i32, %c0_i32_0 : i32, i32
  }
  func.func @transform_14(%arg0: i32) -> (i32, i32) {
    %c0_i32 = arith.constant 0 : i32
    %c0_i32_0 = arith.constant 0 : i32
    %c0_i32_1 = arith.constant 0 : i32
    return %c0_i32, %c0_i32_0 : i32, i32
  }
  func.func @transform_15(%arg0: i32) -> (i32, i32) {
    %c0_i32 = arith.constant 0 : i32
    %c0_i32_0 = arith.constant 0 : i32
    %c0_i32_1 = arith.constant 0 : i32
    return %c0_i32, %c0_i32_0 : i32, i32
  }
  func.func @transform_16(%arg0: i32) -> (i32, i32) {
    %c0_i32 = arith.constant 0 : i32
    %c0_i32_0 = arith.constant 0 : i32
    %c0_i32_1 = arith.constant 0 : i32
    return %c0_i32, %c0_i32_0 : i32, i32
  }
  func.func @transform_17(%arg0: i32) -> (i32, i32) {
    %c0_i32 = arith.constant 0 : i32
    %c0_i32_0 = arith.constant 0 : i32
    %c0_i32_1 = arith.constant 0 : i32
    return %c0_i32, %c0_i32_0 : i32, i32
  }
  func.func @transform_18(%arg0: i32) -> (i32, i32) {
    %c0_i32 = arith.constant 0 : i32
    %c0_i32_0 = arith.constant 0 : i32
    %c0_i32_1 = arith.constant 0 : i32
    return %c0_i32, %c0_i32_0 : i32, i32
  }
  func.func @transform_19(%arg0: i32) -> (i32, i32) {
    %c0_i32 = arith.constant 0 : i32
    %c0_i32_0 = arith.constant 0 : i32
    %c0_i32_1 = arith.constant 0 : i32
    return %c0_i32, %c0_i32_0 : i32, i32
  }
  func.func @transform_20(%arg0: i32) -> (i32, i32) {
    %c0_i32 = arith.constant 0 : i32
    %c0_i32_0 = arith.constant 0 : i32
    %c0_i32_1 = arith.constant 0 : i32
    return %c0_i32, %c0_i32_0 : i32, i32
  }
  func.func @transform_21(%arg0: i32) -> (i32, i32) {
    %c0_i32 = arith.constant 0 : i32
    %c0_i32_0 = arith.constant 0 : i32
    %c0_i32_1 = arith.constant 0 : i32
    return %c0_i32, %c0_i32_0 : i32, i32
  }
  func.func @transform_22(%arg0: i32) -> (i32, i32) {
    %c0_i32 = arith.constant 0 : i32
    %c0_i32_0 = arith.constant 0 : i32
    %c0_i32_1 = arith.constant 0 : i32
    return %c0_i32, %c0_i32_0 : i32, i32
  }
  func.func @transform_23(%arg0: i32) -> (i32, i32) {
    %c0_i32 = arith.constant 0 : i32
    %c0_i32_0 = arith.constant 0 : i32
    %c0_i32_1 = arith.constant 0 : i32
    return %c0_i32, %c0_i32_0 : i32, i32
  }
  func.func @transform_24(%arg0: i32) -> (i32, i32, i32) {
    %c0_i32 = arith.constant 0 : i32
    %c0_i32_0 = arith.constant 0 : i32
    %c0_i32_1 = arith.constant 0 : i32
    return %arg0, %c0_i32, %c0_i32_0 : i32, i32, i32
  }
}

module attributes {stable_mosaic.version = 11 : i64} {
  func.func @_linear_kernel(%arg0: i32, %arg1: memref<16x32xf32, #tpu.memory_space<vmem>>, %arg2: memref<32x16xbf16, #tpu.memory_space<vmem>>, %arg3: memref<1x16xf32, #tpu.memory_space<vmem>>, %arg4: memref<16x16xf32, #tpu.memory_space<vmem>>) attributes {dimension_semantics = [#tpu.dimension_semantics<parallel>], iteration_bounds = array<i64: 1>, scalar_prefetch = 0 : i64, scratch_operands = 0 : i64, tpu.core_type = #tpu.core_type<tc>, window_params = [{transform_indices = @transform_0, window_bounds = array<i64: 16, 32>}, {pipeline_mode = #tpu.pipeline_mode<synchronous>, transform_indices = @transform_1, window_bounds = array<i64: 32, 16>}, {pipeline_mode = #tpu.pipeline_mode<synchronous>, transform_indices = @transform_2, window_bounds = array<i64: 1, 16>}, {transform_indices = @transform_3, window_bounds = array<i64: 16, 16>}]} {
    %c0 = arith.constant 0 : index
    %c0_0 = arith.constant 0 : index
    %0 = vector.load %arg1[%c0, %c0_0] : memref<16x32xf32, #tpu.memory_space<vmem>>, vector<16x32xf32>
    %1 = arith.truncf %0 : vector<16x32xf32> to vector<16x32xbf16>
    %c0_1 = arith.constant 0 : index
    %c0_2 = arith.constant 0 : index
    %2 = vector.load %arg2[%c0_1, %c0_2] : memref<32x16xbf16, #tpu.memory_space<vmem>>, vector<32x16xbf16>
    %cst = arith.constant dense<0.000000e+00> : vector<16x16xf32>
    %3 = tpu.matmul %1, %2, %cst {dimension_numbers = #tpu.dot_dimension_numbers<[1], [0], [0], [1], [0, 0, 1, 1], [], []>} : vector<16x32xbf16>, vector<32x16xbf16>, vector<16x16xf32> -> vector<16x16xf32>
    %c0_3 = arith.constant 0 : index
    %c0_4 = arith.constant 0 : index
    %4 = vector.load %arg3[%c0_3, %c0_4] : memref<1x16xf32, #tpu.memory_space<vmem>>, vector<1x16xf32>
    %5 = vector.broadcast %4 : vector<1x16xf32> to vector<16x16xf32>
    %6 = arith.addf %3, %5 : vector<16x16xf32>
    %c0_5 = arith.constant 0 : index
    %c0_6 = arith.constant 0 : index
    %7 = vector.load %arg4[%c0_5, %c0_6] : memref<16x16xf32, #tpu.memory_space<vmem>>, vector<16x16xf32>
    tpu.vector_store %arg4[%c0_5, %c0_6], %6 {strides = array<i32>} : memref<16x16xf32, #tpu.memory_space<vmem>>, vector<16x16xf32>,
    return
  }
  func.func @transform_0(%arg0: i32) -> (i32, i32) {
    %c0_i32 = arith.constant 0 : i32
    %c0_i32_0 = arith.constant 0 : i32
    return %arg0, %c0_i32 : i32, i32
  }
  func.func @transform_1(%arg0: i32) -> (i32, i32) {
    %c0_i32 = arith.constant 0 : i32
    %c0_i32_0 = arith.constant 0 : i32
    %c0_i32_1 = arith.constant 0 : i32
    return %c0_i32, %c0_i32_0 : i32, i32
  }
  func.func @transform_2(%arg0: i32) -> (i32, i32) {
    %c0_i32 = arith.constant 0 : i32
    %c0_i32_0 = arith.constant 0 : i32
    %c0_i32_1 = arith.constant 0 : i32
    return %c0_i32, %c0_i32_0 : i32, i32
  }
  func.func @transform_3(%arg0: i32) -> (i32, i32) {
    %c0_i32 = arith.constant 0 : i32
    %c0_i32_0 = arith.constant 0 : i32
    return %arg0, %c0_i32 : i32, i32
  }
}

</mosaic_0001>

<llo_original>
// kernel: decoder_forward.4
$region0: #{decoder_forward.4}
  #allocation0 [shape = 'u32[]', space=smem, size = 0x4, offset = 0x4, fixed_abs, tag = 'smem constant byte address 0x4 - core index']
  #allocation1 [shape = 'u32[144,128]{1,0:T(1,128)}', space=vmem, size = 0x12000, scoped, tag = 'internal scratch']
  %s0 = inlined_call_operand.vmem [shape: f32[2,8,32], index: 0, kind: input, shape index: {}]
  %s1 = inlined_call_operand.vmem [shape: f32[2,8,32], index: 1, kind: input, shape index: {}]
  %s2 = inlined_call_operand.vmem [shape: f32[1,8,32], index: 2, kind: input, shape index: {}]
  %s3 = inlined_call_operand.vmem [shape: f32[2,8,32], index: 3, kind: output, shape index: {}]
  %s4 = sld [smem:[#allocation0]]
  $region45: #{decoder_forward.4} parent=0
    _
  %s6 = ssub.s32 1, %s4
  %s7 = scalar_select 0, %s6, %s4
  loop: start=0, step=1, limit=4
  $region2: #{decoder_forward.4} parent=0 // loop_pre_header
    _
  $region3: #{decoder_forward.4} parent=0 // loop_header
    %s9 = sphi 0, %s13
    %p10 = scmp.ge.s32.totalorder %s9, 4
    %s19 = sphi 0, %s21
    %s22 = sphi 0, %s19
    %s23 = sphi 0, %s22
    %s39 = sphi 0, %s23
    %s45 = sphi 0, %s47
    %s48 = sphi 0, %s45
    %s49 = sphi 0, %s48
    %s65 = sphi 0, %s49
    %s69 = sphi 0, %s69
    %s71 = sphi 0, %s69
    %s72 = sphi 0, %s71
    %s86 = sphi 0, %s72
    %s92 = sphi 0, %s94
    %s95 = sphi 0, %s92
    %s96 = sphi 0, %s95
    %s112 = sphi 0, %s96
  $region4: #{decoder_forward.4} parent=0 // loop_header_branch
    %12 = sbr.rel (%p10) target = $region8
  $region5: #{decoder_forward.4} parent=0 // loop_body
    %s14 = ssub.s32 %s9, 1
    %s15 = ssub.s32 %s9, 2
    %s16 = sadd.s32 %s9, 1
    %s17 = ssub.s32 %s9, %s16
    %p18 = scmp.eq.s32.totalorder %s17, 0
    %s20 = sadd.s32 %s19, 1
    %s21 = scalar_select %p18, %s19, %s20
    %p24 = pneg %p18
    %p25 = scmp.eq.s32.totalorder %s9, 1
    %p26 = por %p24, %p25
    %p27 = scmp.ne.s32.totalorder %s19, %s22
    %p28 = scmp.eq.s32.totalorder %s9, 0
    %p29 = por %p27, %p28
    %p30 = scmp.ne.s32.totalorder %s19, %s22
    %p31 = scmp.eq.s32.totalorder %s14, 1
    %p32 = por %p30, %p31
    %p33 = scmp.ne.s32.totalorder %s22, %s23
    %p34 = scmp.eq.s32.totalorder %s14, 0
    %p35 = por %p33, %p34
    %p36 = scmp.ne.s32.totalorder %s22, %s23
    %p37 = scmp.eq.s32.totalorder %s15, 1
    %p38 = por %p36, %p37
    %p40 = scmp.ne.s32.totalorder %s23, %s39
    %p41 = scmp.eq.s32.totalorder %s15, 0
    %p42 = por %p40, %p41
    %s43 = ssub.s32 %s9, %s16
    %p44 = scmp.eq.s32.totalorder %s43, 0
    %s46 = sadd.s32 %s45, 1
    %s47 = scalar_select %p44, %s45, %s46
    %p50 = pneg %p44
    %p51 = scmp.eq.s32.totalorder %s9, 1
    %p52 = por %p50, %p51
    %p53 = scmp.ne.s32.totalorder %s45, %s48
    %p54 = scmp.eq.s32.totalorder %s9, 0
    %p55 = por %p53, %p54
    %p56 = scmp.ne.s32.totalorder %s45, %s48
    %p57 = scmp.eq.s32.totalorder %s14, 1
    %p58 = por %p56, %p57
    %p59 = scmp.ne.s32.totalorder %s48, %s49
    %p60 = scmp.eq.s32.totalorder %s14, 0
    %p61 = por %p59, %p60
    %p62 = scmp.ne.s32.totalorder %s48, %s49
    %p63 = scmp.eq.s32.totalorder %s15, 1
    %p64 = por %p62, %p63
    %p66 = scmp.ne.s32.totalorder %s49, %s65
    %p67 = scmp.eq.s32.totalorder %s15, 0
    %p68 = por %p66, %p67
    %s70 = sadd.s32 %s69, 1
    %p73 = scmp.eq.s32.totalorder %s9, 1
    %p74 = scmp.ne.s32.totalorder %s69, %s71
    %p75 = scmp.eq.s32.totalorder %s9, 0
    %p76 = por %p74, %p75
    %p77 = scmp.ne.s32.totalorder %s69, %s71
    %p78 = scmp.eq.s32.totalorder %s14, 1
    %p79 = por %p77, %p78
    %p80 = scmp.ne.s32.totalorder %s71, %s72
    %p81 = scmp.eq.s32.totalorder %s14, 0
    %p82 = por %p80, %p81
    %p83 = scmp.ne.s32.totalorder %s71, %s72
    %p84 = scmp.eq.s32.totalorder %s15, 1
    %p85 = por %p83, %p84
    %p87 = scmp.ne.s32.totalorder %s72, %s86
    %p88 = scmp.eq.s32.totalorder %s15, 0
    %p89 = por %p87, %p88
    %s90 = ssub.s32 %s9, %s16
    %p91 = scmp.eq.s32.totalorder %s90, 0
    %s93 = sadd.s32 %s92, 1
    %s94 = scalar_select %p91, %s92, %s93
    %p97 = pneg %p91
    %p98 = scmp.eq.s32.totalorder %s9, 1
    %p99 = por %p97, %p98
    %p100 = scmp.ne.s32.totalorder %s92, %s95
    %p101 = scmp.eq.s32.totalorder %s9, 0
    %p102 = por %p100, %p101
    %p103 = scmp.ne.s32.totalorder %s92, %s95
    %p104 = scmp.eq.s32.totalorder %s14, 1
    %p105 = por %p103, %p104
    %p106 = scmp.ne.s32.totalorder %s95, %s96
    %p107 = scmp.eq.s32.totalorder %s14, 0
    %p108 = por %p106, %p107
    %p109 = scmp.ne.s32.totalorder %s95, %s96
    %p110 = scmp.eq.s32.totalorder %s15, 1
    %p111 = por %p109, %p110
    %p113 = scmp.ne.s32.totalorder %s96, %s112
    %p114 = scmp.eq.s32.totalorder %s15, 0
    %p115 = por %p113, %p114
    %p116 = scmp.le.s32.totalorder 1, %s9
    %p117 = scmp.lt.s32.totalorder %s9, 3
    %p118 = pnand %p116, %p117
    %p119 = pneg %p118
    // Predicated region
    $region9: #{decoder_forward.4} parent=5 // pred_check
      _
    $region10: #{decoder_forward.4} parent=5 // pred_check_branch
      %121 = sbr.rel (%p118) target = $region12
    $region11: #{decoder_forward.4} parent=5 // pred_region
      %s122 = ssub.s32 %s9, 1
      // Predicated region
      $region13: #{decoder_forward.4} parent=11 // pred_check
        %p123 = pneg %p82
      $region14: #{decoder_forward.4} parent=11 // pred_check_branch
        %125 = sbr.rel (%p123) target = $region16
      $region15: #{decoder_forward.4} parent=11 // pred_region
        _
      $region16: #{decoder_forward.4} parent=11 // pred_fallthru
        _
    $region12: #{decoder_forward.4} parent=5 // pred_fallthru
      _
    %p126 = scmp.lt.s32.totalorder %s9, 2
    // Predicated region
    $region17: #{decoder_forward.4} parent=5 // pred_check
      %p127 = pneg %p126
    $region18: #{decoder_forward.4} parent=5 // pred_check_branch
      %129 = sbr.rel (%p127) target = $region20
    $region19: #{decoder_forward.4} parent=5 // pred_region
      // Predicated region
      $region21: #{decoder_forward.4} parent=19 // pred_check
        %p130 = pneg %p29
      $region22: #{decoder_forward.4} parent=19 // pred_check_branch
        %132 = sbr.rel (%p130) target = $region24
      $region23: #{decoder_forward.4} parent=19 // pred_region
        %p133 = scmp.lt.s32.totalorder %s9, 1
        %s134 = scalar_select %p133, %s9, 1
        %s135 = smul.addr %s134, 8
        %s136 = scalar_lea.vmem %s0, %s135
      $region24: #{decoder_forward.4} parent=19 // pred_fallthru
        _
      // Predicated region
      $region25: #{decoder_forward.4} parent=19 // pred_check
        %p137 = pneg %p55
      $region26: #{decoder_forward.4} parent=19 // pred_check_branch
        %139 = sbr.rel (%p137) target = $region28
      $region27: #{decoder_forward.4} parent=19 // pred_region
        %p140 = scmp.lt.s32.totalorder %s9, 1
        %s141 = scalar_select %p140, %s9, 1
        %s142 = smul.addr %s141, 8
        %s143 = scalar_lea.vmem %s1, %s142
      $region28: #{decoder_forward.4} parent=19 // pred_fallthru
        _
    $region20: #{decoder_forward.4} parent=5 // pred_fallthru
      _
    %p144 = scmp.le.s32.totalorder 1, %s9
    %p145 = scmp.lt.s32.totalorder %s9, 3
    %p146 = pnand %p144, %p145
    %p147 = pneg %p146
    // Predicated region
    $region29: #{decoder_forward.4} parent=5 // pred_check
      _
    $region30: #{decoder_forward.4} parent=5 // pred_check_branch
      %149 = sbr.rel (%p146) target = $region32
    $region31: #{decoder_forward.4} parent=5 // pred_region
      %s150 = ssub.s32 %s9, 1
      %p151 = scmp.lt.s32.totalorder %s14, 1
      %s152 = scalar_select %p151, %s14, 1
      %s153 = smul.addr %s152, 8
      %s154 = scalar_lea.vmem %s0, %s153
      %p155 = pneg %p35
      %p156 = pneg %p32
      %p157 = scmp.lt.s32.totalorder %s14, 1
      %s158 = scalar_select %p157, %s14, 1
      %s159 = smul.addr %s158, 8
      %s160 = scalar_lea.vmem %s1, %s159
      %p161 = pneg %p61
      %p162 = pneg %p58
      %p163 = pneg %p82
      %p164 = pneg %p79
      %p165 = pneg %p108
      %p166 = pneg %p105
      %p167 = scmp.lt.s32.totalorder %s14, 1
      %s168 = scalar_select %p167, %s14, 1
      %s169 = smul.addr %s168, 8
      %s170 = scalar_lea.vmem %s3, %s169
      %p171 = scmp.lt.s32.totalorder %s14, 1
      %s172 = scalar_select %p171, %s14, 1
      %s173 = smul.addr %s172, 8
      %s174 = scalar_lea.vmem %s0, %s173
      %p175 = scmp.lt.s32.totalorder %s14, 1
      %s176 = scalar_select %p175, %s14, 1
      %s177 = smul.addr %s176, 8
      %s178 = scalar_lea.vmem %s1, %s177
      %p179 = scmp.lt.s32.totalorder %s14, 1
      %s180 = scalar_select %p179, %s14, 1
      %s181 = smul.addr %s180, 8
      %s182 = scalar_lea.vmem %s3, %s181
      %v183 = vld [vmem:[%s174] sm:$0xff]
      %v184 = vld [vmem:[%s178] sm:$0xff]
      %v185 = vmul.f32 %v184, 5.656854
      %v186 = vadd.f32 %v183, %v185
      %v187 = vld [vmem:[%s2] sm:$0xff]
      %v188 = vadd.f32 %v186, %v187
      %vm189 = vcmask 261120
      %190 = vst.msk [vmem:[%s182] sm:$0xff] %vm189, %v188
      %p191 = scmp.lt.s32.totalorder %s14, 1
      %s192 = scalar_select %p191, %s14, 1
      %s193 = smul.addr %s192, 8
      %s194 = scalar_lea.vmem %s3, %s193
      // Predicated region
      $region33: #{decoder_forward.4} parent=31 // pred_check
        %p195 = pneg %p105
      $region34: #{decoder_forward.4} parent=31 // pred_check_branch
        %197 = sbr.rel (%p195) target = $region36
      $region35: #{decoder_forward.4} parent=31 // pred_region
        _
      $region36: #{decoder_forward.4} parent=31 // pred_fallthru
        _
    $region32: #{decoder_forward.4} parent=5 // pred_fallthru
      _
    %p198 = scmp.le.s32.totalorder 2, %s9
    // Predicated region
    $region37: #{decoder_forward.4} parent=5 // pred_check
      %p199 = pneg %p198
    $region38: #{decoder_forward.4} parent=5 // pred_check_branch
      %201 = sbr.rel (%p199) target = $region40
    $region39: #{decoder_forward.4} parent=5 // pred_region
      %s202 = ssub.s32 %s9, 2
      // Predicated region
      $region41: #{decoder_forward.4} parent=39 // pred_check
        %p203 = pneg %p111
      $region42: #{decoder_forward.4} parent=39 // pred_check_branch
        %205 = sbr.rel (%p203) target = $region44
      $region43: #{decoder_forward.4} parent=39 // pred_region
        %p206 = scmp.lt.s32.totalorder %s15, 1
        %s207 = scalar_select %p206, %s15, 1
        %s208 = smul.addr %s207, 8
        %s209 = scalar_lea.vmem %s3, %s208
      $region44: #{decoder_forward.4} parent=39 // pred_fallthru
        _
    $region40: #{decoder_forward.4} parent=5 // pred_fallthru
      _
  $region6: #{decoder_forward.4} parent=0 // loop_footer
    %s13 = sadd.s32 1, %s9
  $region7: #{decoder_forward.4} parent=0 // loop_footer_branch
    %8 = sbr.rel target = $region3
  $region8: #{decoder_forward.4} parent=0 // loop_exit
    _

// kernel: decoder_forward.7
$region0: #{decoder_forward.7}
  #allocation0 [shape = 'u32[]', space=smem, size = 0x4, offset = 0x4, fixed_abs, tag = 'smem constant byte address 0x4 - core index']
  #allocation1 [shape = 'u32[144,128]{1,0:T(1,128)}', space=vmem, size = 0x12000, scoped, tag = 'internal scratch']
  %s0 = inlined_call_operand.vmem [shape: f32[16,32], index: 0, kind: input, shape index: {}]
  %s1 = inlined_call_operand.vmem [shape: bf16[32,16], index: 1, kind: input, shape index: {}]
  %s2 = inlined_call_operand.vmem [shape: f32[1,16], index: 2, kind: input, shape index: {}]
  %s3 = inlined_call_operand.hbm [shape: f32[16,16], index: 3, kind: output, shape index: {}]
  %s4 = sld [smem:[#allocation0]]
  $region22: #{decoder_forward.7} parent=0
    _
  %s6 = ssub.s32 1, %s4
  %s7 = scalar_select 0, %s6, %s4
  $region1: #{decoder_forward.7} parent=0
    #allocation2 [shape = 'u8[8192]{0}', space=vmem, size = 0x2000, scoped, tag = 'output window, operand 0, single buffered']
    #allocation3 [shape = 's32[1]{0}', space=sflag, size = 0x4, scoped, tag = 'scoped memory for decoder_forward.7']
    %8 = vsyncpa [#allocation3], 0
    // Predicated region
    $region2: #{decoder_forward.7} parent=1 // pred_check
      _
    $region3: #{decoder_forward.7} parent=1 // pred_check_branch
      %10 = sbr.rel (0) target = $region5
    $region4: #{decoder_forward.7} parent=1 // pred_region
      _
    $region5: #{decoder_forward.7} parent=1 // pred_fallthru
      _
    // Predicated region
    $region6: #{decoder_forward.7} parent=1 // pred_check
      _
    $region7: #{decoder_forward.7} parent=1 // pred_check_branch
      %12 = sbr.rel (0) target = $region9
    $region8: #{decoder_forward.7} parent=1 // pred_region
      _
    $region9: #{decoder_forward.7} parent=1 // pred_fallthru
      _
    // Predicated region
    $region10: #{decoder_forward.7} parent=1 // pred_check
      _
    $region11: #{decoder_forward.7} parent=1 // pred_check_branch
      %14 = sbr.rel (0) target = $region13
    $region12: #{decoder_forward.7} parent=1 // pred_region
      _
    $region13: #{decoder_forward.7} parent=1 // pred_fallthru
      _
    %v16 = vld [vmem:[%s0] sm:$0xff]
    %v17 = vld [vmem:[%s0 + $0x8] sm:$0xff]
    %v18 = vpack.c.bf16 %v17, %v16
    %v19 = vld [vmem:[%s1] sm:$0xf]
    %v20 = vld [vmem:[%s1 + $0x4] sm:$0xf]
    %v21 = vld [vmem:[%s1 + $0x8] sm:$0xf]
    %v22 = vld [vmem:[%s1 + $0xc] sm:$0xf]
    %v23 = vld [vmem:[%s2] sm:$0x1]
    %v25 = vlaneseq
    %v26 = vshrl.u32 %v25, 7
    %v27 = vsub.s32 0, %v26
    %v28 = vrot.slane %v23, %v27
    %v34 = vunpack.c.l.b16 %v19
    %v35 = vunpack.c.l.b16 %v20
    %v36 = vunpack.c.l.b16 %v21
    %v37 = vunpack.c.l.b16 %v22
    %v38 = vpack.c.b16 %v35, %v34
    %v39 = vpack.c.b16 %v37, %v36
    %vm42 = vcmask 261120
    %v44 = vsel %vm42, %v18, 0
    %46 = vmatprep.subr.bf16.mxu0 0
    %47 = vmatpush1.bf16.msra.mxu0 %v38
    %48 = vmatprep.subr.bf16.mxu0 0
    %49 = vmatpush1.bf16.msra.mxu0 %v39
    %50 = vmatprep.subr.bf16.mxu0 0
    %51 = vmatpush1.bf16.msra.mxu0 0
    %52 = vmatprep.subr.bf16.mxu0 0
    %53 = vmatpush1.bf16.msra.mxu0 0
    %54 = vmatprep.subr.bf16.mxu0 0
    %55 = vmatpush1.bf16.msra.mxu0 0
    %56 = vmatprep.subr.bf16.mxu0 0
    %57 = vmatpush1.bf16.msra.mxu0 0
    %58 = vmatprep.subr.bf16.mxu0 0
    %59 = vmatpush1.bf16.msra.mxu0 0
    %60 = vmatprep.subr.bf16.mxu0 0
    %61 = vmatpush1.bf16.msra.mxu0 0
    %62 = vmatprep.subr.bf16.mxu0 0
    %63 = vmatpush1.bf16.msra.mxu0 0
    %64 = vmatprep.subr.bf16.mxu0 0
    %65 = vmatpush1.bf16.msra.mxu0 0
    %66 = vmatprep.subr.bf16.mxu0 0
    %67 = vmatpush1.bf16.msra.mxu0 0
    %68 = vmatprep.subr.bf16.mxu0 0
    %69 = vmatpush1.bf16.msra.mxu0 0
    %70 = vmatprep.subr.bf16.mxu0 0
    %71 = vmatpush1.bf16.msra.mxu0 0
    %72 = vmatprep.subr.bf16.mxu0 0
    %73 = vmatpush1.bf16.msra.mxu0 0
    %74 = vmatprep.subr.bf16.mxu0 0
    %75 = vmatpush1.bf16.msra.mxu0 0
    %76 = vmatprep.subr.bf16.mxu0 0
    %77 = vmatpush1.bf16.msra.mxu0 0
    %78 = vmatprep.mubr.bf16.mxu0 0
    %79 = vmatmul.mubr.bf16.gmra.mrb[0].mxu0 %v44
    %v80 = vpop.f32.mrb[0].mxu0
    %v81 = vadd.f32 %v28, %v80
    %v82 = vpop.f32.mrb[0].mxu0
    %v83 = vpop.f32.mrb[0].mxu0
    %v84 = vadd.f32 %v28, %v83
    %v85 = vpop.f32.mrb[0].mxu0
    %86 = vdwg.mxu0
    %vm87 = vcmask 130048
    %88 = vst.msk [vmem:[#allocation2] sm:$0xff] %vm87, %v81
    %89 = vst.msk [vmem:[#allocation2 + $0x8] sm:$0xff] %vm87, %v84
    // Predicated region
    $region14: #{decoder_forward.7} parent=1 // pred_check
      _
    $region15: #{decoder_forward.7} parent=1 // pred_check_branch
      %91 = sbr.rel (0) target = $region17
    $region16: #{decoder_forward.7} parent=1 // pred_region
      %s93 = ssub.s32 256, 256
      %94 = vsyncadd [#allocation3], %s93
      %s95 = sshll.u32 [#allocation2], 4
      %s96 = int_to_ptr.vmem [resolvable:$true] %s95
      %101 = dma.vmem_to_hbm [thread:$0]  %s96, 256, %s3, [#allocation3], 128, 128, 8
    $region17: #{decoder_forward.7} parent=1 // pred_fallthru
      _
    // Predicated region
    $region18: #{decoder_forward.7} parent=1 // pred_check
      _
    $region19: #{decoder_forward.7} parent=1 // pred_check_branch
      %103 = sbr.rel (0) target = $region21
    $region20: #{decoder_forward.7} parent=1 // pred_region
      %104 = dma.done [#allocation3], 256
    $region21: #{decoder_forward.7} parent=1 // pred_fallthru
      _
    %105 = vsyncpa [#allocation3], 1

// kernel: decoder_forward.5
$region0: #{decoder_forward.5}
  #allocation0 [shape = 'u32[]', space=smem, size = 0x4, offset = 0x4, fixed_abs, tag = 'smem constant byte address 0x4 - core index']
  #allocation1 [shape = 'u32[144,128]{1,0:T(1,128)}', space=vmem, size = 0x12000, scoped, tag = 'internal scratch']
  %s0 = inlined_call_operand.vmem [shape: f32[2,8,32], index: 0, kind: input, shape index: {}]
  %s1 = inlined_call_operand.vmem [shape: f32[2,8,32], index: 1, kind: input, shape index: {}]
  %s2 = inlined_call_operand.vmem [shape: f32[2,8,8], index: 2, kind: input, shape index: {}]
  %s3 = inlined_call_operand.vmem [shape: f32[2,8,8], index: 3, kind: input, shape index: {}]
  %s4 = inlined_call_operand.vmem [shape: bf16[8,8], index: 4, kind: input, shape index: {}]
  %s5 = inlined_call_operand.vmem [shape: bf16[8,8], index: 5, kind: input, shape index: {}]
  %s6 = inlined_call_operand.vmem [shape: bf16[8,8], index: 6, kind: input, shape index: {}]
  %s7 = inlined_call_operand.vmem [shape: bf16[32,32], index: 7, kind: input, shape index: {}]
  %s8 = inlined_call_operand.vmem [shape: f32[1,32], index: 8, kind: input, shape index: {}]
  %s9 = inlined_call_operand.vmem [shape: f32[1,32], index: 9, kind: input, shape index: {}]
  %s10 = inlined_call_operand.vmem [shape: f32[1,32], index: 10, kind: input, shape index: {}]
  %s11 = inlined_call_operand.vmem [shape: bf16[8,8], index: 11, kind: input, shape index: {}]
  %s12 = inlined_call_operand.vmem [shape: bf16[8,8], index: 12, kind: input, shape index: {}]
  %s13 = inlined_call_operand.vmem [shape: bf16[8,8], index: 13, kind: input, shape index: {}]
  %s14 = inlined_call_operand.vmem [shape: bf16[32,32], index: 14, kind: input, shape index: {}]
  %s15 = inlined_call_operand.vmem [shape: f32[1,32], index: 15, kind: input, shape index: {}]
  %s16 = inlined_call_operand.vmem [shape: f32[1,32], index: 16, kind: input, shape index: {}]
  %s17 = inlined_call_operand.vmem [shape: f32[1,32], index: 17, kind: input, shape index: {}]
  %s18 = inlined_call_operand.vmem [shape: bf16[32,128], index: 18, kind: input, shape index: {}]
  %s19 = inlined_call_operand.vmem [shape: f32[1,128], index: 19, kind: input, shape index: {}]
  %s20 = inlined_call_operand.vmem [shape: bf16[128,32], index: 20, kind: input, shape index: {}]
  %s21 = inlined_call_operand.vmem [shape: f32[1,32], index: 21, kind: input, shape index: {}]
  %s22 = inlined_call_operand.vmem [shape: f32[1,32], index: 22, kind: input, shape index: {}]
  %s23 = inlined_call_operand.vmem [shape: f32[1,32], index: 23, kind: input, shape index: {}]
  %s24 = inlined_call_operand.vmem [shape: f32[2,8,32], index: 24, kind: output, shape index: {}]
  %s25 = sld [smem:[#allocation0]]
  $region129: #{decoder_forward.5} parent=0
    _
  %s27 = ssub.s32 1, %s25
  %s28 = scalar_select 0, %s27, %s25
  loop: start=0, step=1, limit=4
  $region2: #{decoder_forward.5} parent=0 // loop_pre_header
    _
  $region3: #{decoder_forward.5} parent=0 // loop_header
    %s30 = sphi 0, %s34
    %p31 = scmp.ge.s32.totalorder %s30, 4
    %s40 = sphi 0, %s42
    %s43 = sphi 0, %s40
    %s44 = sphi 0, %s43
    %s60 = sphi 0, %s44
    %s66 = sphi 0, %s68
    %s69 = sphi 0, %s66
    %s70 = sphi 0, %s69
    %s86 = sphi 0, %s70
    %s92 = sphi 0, %s94
    %s95 = sphi 0, %s92
    %s96 = sphi 0, %s95
    %s112 = sphi 0, %s96
    %s118 = sphi 0, %s120
    %s121 = sphi 0, %s118
    %s122 = sphi 0, %s121
    %s138 = sphi 0, %s122
    %s142 = sphi 0, %s142
    %s144 = sphi 0, %s142
    %s145 = sphi 0, %s144
    %s159 = sphi 0, %s145
    %s163 = sphi 0, %s163
    %s165 = sphi 0, %s163
    %s166 = sphi 0, %s165
    %s180 = sphi 0, %s166
    %s184 = sphi 0, %s184
    %s186 = sphi 0, %s184
    %s187 = sphi 0, %s186
    %s201 = sphi 0, %s187
    %s205 = sphi 0, %s205
    %s207 = sphi 0, %s205
    %s208 = sphi 0, %s207
    %s222 = sphi 0, %s208
    %s226 = sphi 0, %s226
    %s228 = sphi 0, %s226
    %s229 = sphi 0, %s228
    %s243 = sphi 0, %s229
    %s247 = sphi 0, %s247
    %s249 = sphi 0, %s247
    %s250 = sphi 0, %s249
    %s264 = sphi 0, %s250
    %s268 = sphi 0, %s268
    %s270 = sphi 0, %s268
    %s271 = sphi 0, %s270
    %s285 = sphi 0, %s271
    %s289 = sphi 0, %s289
    %s291 = sphi 0, %s289
    %s292 = sphi 0, %s291
    %s306 = sphi 0, %s292
    %s310 = sphi 0, %s310
    %s312 = sphi 0, %s310
    %s313 = sphi 0, %s312
    %s327 = sphi 0, %s313
    %s331 = sphi 0, %s331
    %s333 = sphi 0, %s331
    %s334 = sphi 0, %s333
    %s348 = sphi 0, %s334
    %s352 = sphi 0, %s352
    %s354 = sphi 0, %s352
    %s355 = sphi 0, %s354
    %s369 = sphi 0, %s355
    %s373 = sphi 0, %s373
    %s375 = sphi 0, %s373
    %s376 = sphi 0, %s375
    %s390 = sphi 0, %s376
    %s394 = sphi 0, %s394
    %s396 = sphi 0, %s394
    %s397 = sphi 0, %s396
    %s411 = sphi 0, %s397
    %s415 = sphi 0, %s415
    %s417 = sphi 0, %s415
    %s418 = sphi 0, %s417
    %s432 = sphi 0, %s418
    %s436 = sphi 0, %s436
    %s438 = sphi 0, %s436
    %s439 = sphi 0, %s438
    %s453 = sphi 0, %s439
    %s457 = sphi 0, %s457
    %s459 = sphi 0, %s457
    %s460 = sphi 0, %s459
    %s474 = sphi 0, %s460
    %s478 = sphi 0, %s478
    %s480 = sphi 0, %s478
    %s481 = sphi 0, %s480
    %s495 = sphi 0, %s481
    %s499 = sphi 0, %s499
    %s501 = sphi 0, %s499
    %s502 = sphi 0, %s501
    %s516 = sphi 0, %s502
    %s520 = sphi 0, %s520
    %s522 = sphi 0, %s520
    %s523 = sphi 0, %s522
    %s537 = sphi 0, %s523
    %s541 = sphi 0, %s541
    %s543 = sphi 0, %s541
    %s544 = sphi 0, %s543
    %s558 = sphi 0, %s544
    %s564 = sphi 0, %s566
    %s567 = sphi 0, %s564
    %s568 = sphi 0, %s567
    %s584 = sphi 0, %s568
  $region4: #{decoder_forward.5} parent=0 // loop_header_branch
    %33 = sbr.rel (%p31) target = $region8
  $region5: #{decoder_forward.5} parent=0 // loop_body
    %s35 = ssub.s32 %s30, 1
    %s36 = ssub.s32 %s30, 2
    %s37 = sadd.s32 %s30, 1
    %s38 = ssub.s32 %s30, %s37
    %p39 = scmp.eq.s32.totalorder %s38, 0
    %s41 = sadd.s32 %s40, 1
    %s42 = scalar_select %p39, %s40, %s41
    %p45 = pneg %p39
    %p46 = scmp.eq.s32.totalorder %s30, 1
    %p47 = por %p45, %p46
    %p48 = scmp.ne.s32.totalorder %s40, %s43
    %p49 = scmp.eq.s32.totalorder %s30, 0
    %p50 = por %p48, %p49
    %p51 = scmp.ne.s32.totalorder %s40, %s43
    %p52 = scmp.eq.s32.totalorder %s35, 1
    %p53 = por %p51, %p52
    %p54 = scmp.ne.s32.totalorder %s43, %s44
    %p55 = scmp.eq.s32.totalorder %s35, 0
    %p56 = por %p54, %p55
    %p57 = scmp.ne.s32.totalorder %s43, %s44
    %p58 = scmp.eq.s32.totalorder %s36, 1
    %p59 = por %p57, %p58
    %p61 = scmp.ne.s32.totalorder %s44, %s60
    %p62 = scmp.eq.s32.totalorder %s36, 0
    %p63 = por %p61, %p62
    %s64 = ssub.s32 %s30, %s37
    %p65 = scmp.eq.s32.totalorder %s64, 0
    %s67 = sadd.s32 %s66, 1
    %s68 = scalar_select %p65, %s66, %s67
    %p71 = pneg %p65
    %p72 = scmp.eq.s32.totalorder %s30, 1
    %p73 = por %p71, %p72
    %p74 = scmp.ne.s32.totalorder %s66, %s69
    %p75 = scmp.eq.s32.totalorder %s30, 0
    %p76 = por %p74, %p75
    %p77 = scmp.ne.s32.totalorder %s66, %s69
    %p78 = scmp.eq.s32.totalorder %s35, 1
    %p79 = por %p77, %p78
    %p80 = scmp.ne.s32.totalorder %s69, %s70
    %p81 = scmp.eq.s32.totalorder %s35, 0
    %p82 = por %p80, %p81
    %p83 = scmp.ne.s32.totalorder %s69, %s70
    %p84 = scmp.eq.s32.totalorder %s36, 1
    %p85 = por %p83, %p84
    %p87 = scmp.ne.s32.totalorder %s70, %s86
    %p88 = scmp.eq.s32.totalorder %s36, 0
    %p89 = por %p87, %p88
    %s90 = ssub.s32 %s30, %s37
    %p91 = scmp.eq.s32.totalorder %s90, 0
    %s93 = sadd.s32 %s92, 1
    %s94 = scalar_select %p91, %s92, %s93
    %p97 = pneg %p91
    %p98 = scmp.eq.s32.totalorder %s30, 1
    %p99 = por %p97, %p98
    %p100 = scmp.ne.s32.totalorder %s92, %s95
    %p101 = scmp.eq.s32.totalorder %s30, 0
    %p102 = por %p100, %p101
    %p103 = scmp.ne.s32.totalorder %s92, %s95
    %p104 = scmp.eq.s32.totalorder %s35, 1
    %p105 = por %p103, %p104
    %p106 = scmp.ne.s32.totalorder %s95, %s96
    %p107 = scmp.eq.s32.totalorder %s35, 0
    %p108 = por %p106, %p107
    %p109 = scmp.ne.s32.totalorder %s95, %s96
    %p110 = scmp.eq.s32.totalorder %s36, 1
    %p111 = por %p109, %p110
    %p113 = scmp.ne.s32.totalorder %s96, %s112
    %p114 = scmp.eq.s32.totalorder %s36, 0
    %p115 = por %p113, %p114
    %s116 = ssub.s32 %s30, %s37
    %p117 = scmp.eq.s32.totalorder %s116, 0
    %s119 = sadd.s32 %s118, 1
    %s120 = scalar_select %p117, %s118, %s119
    %p123 = pneg %p117
    %p124 = scmp.eq.s32.totalorder %s30, 1
    %p125 = por %p123, %p124
    %p126 = scmp.ne.s32.totalorder %s118, %s121
    %p127 = scmp.eq.s32.totalorder %s30, 0
    %p128 = por %p126, %p127
    %p129 = scmp.ne.s32.totalorder %s118, %s121
    %p130 = scmp.eq.s32.totalorder %s35, 1
    %p131 = por %p129, %p130
    %p132 = scmp.ne.s32.totalorder %s121, %s122
    %p133 = scmp.eq.s32.totalorder %s35, 0
    %p134 = por %p132, %p133
    %p135 = scmp.ne.s32.totalorder %s121, %s122
    %p136 = scmp.eq.s32.totalorder %s36, 1
    %p137 = por %p135, %p136
    %p139 = scmp.ne.s32.totalorder %s122, %s138
    %p140 = scmp.eq.s32.totalorder %s36, 0
    %p141 = por %p139, %p140
    %s143 = sadd.s32 %s142, 1
    %p146 = scmp.eq.s32.totalorder %s30, 1
    %p147 = scmp.ne.s32.totalorder %s142, %s144
    %p148 = scmp.eq.s32.totalorder %s30, 0
    %p149 = por %p147, %p148
    %p150 = scmp.ne.s32.totalorder %s142, %s144
    %p151 = scmp.eq.s32.totalorder %s35, 1
    %p152 = por %p150, %p151
    %p153 = scmp.ne.s32.totalorder %s144, %s145
    %p154 = scmp.eq.s32.totalorder %s35, 0
    %p155 = por %p153, %p154
    %p156 = scmp.ne.s32.totalorder %s144, %s145
    %p157 = scmp.eq.s32.totalorder %s36, 1
    %p158 = por %p156, %p157
    %p160 = scmp.ne.s32.totalorder %s145, %s159
    %p161 = scmp.eq.s32.totalorder %s36, 0
    %p162 = por %p160, %p161
    %s164 = sadd.s32 %s163, 1
    %p167 = scmp.eq.s32.totalorder %s30, 1
    %p168 = scmp.ne.s32.totalorder %s163, %s165
    %p169 = scmp.eq.s32.totalorder %s30, 0
    %p170 = por %p168, %p169
    %p171 = scmp.ne.s32.totalorder %s163, %s165
    %p172 = scmp.eq.s32.totalorder %s35, 1
    %p173 = por %p171, %p172
    %p174 = scmp.ne.s32.totalorder %s165, %s166
    %p175 = scmp.eq.s32.totalorder %s35, 0
    %p176 = por %p174, %p175
    %p177 = scmp.ne.s32.totalorder %s165, %s166
    %p178 = scmp.eq.s32.totalorder %s36, 1
    %p179 = por %p177, %p178
    %p181 = scmp.ne.s32.totalorder %s166, %s180
    %p182 = scmp.eq.s32.totalorder %s36, 0
    %p183 = por %p181, %p182
    %s185 = sadd.s32 %s184, 1
    %p188 = scmp.eq.s32.totalorder %s30, 1
    %p189 = scmp.ne.s32.totalorder %s184, %s186
    %p190 = scmp.eq.s32.totalorder %s30, 0
    %p191 = por %p189, %p190
    %p192 = scmp.ne.s32.totalorder %s184, %s186
    %p193 = scmp.eq.s32.totalorder %s35, 1
    %p194 = por %p192, %p193
    %p195 = scmp.ne.s32.totalorder %s186, %s187
    %p196 = scmp.eq.s32.totalorder %s35, 0
    %p197 = por %p195, %p196
    %p198 = scmp.ne.s32.totalorder %s186, %s187
    %p199 = scmp.eq.s32.totalorder %s36, 1
    %p200 = por %p198, %p199
    %p202 = scmp.ne.s32.totalorder %s187, %s201
    %p203 = scmp.eq.s32.totalorder %s36, 0
    %p204 = por %p202, %p203
    %s206 = sadd.s32 %s205, 1
    %p209 = scmp.eq.s32.totalorder %s30, 1
    %p210 = scmp.ne.s32.totalorder %s205, %s207
    %p211 = scmp.eq.s32.totalorder %s30, 0
    %p212 = por %p210, %p211
    %p213 = scmp.ne.s32.totalorder %s205, %s207
    %p214 = scmp.eq.s32.totalorder %s35, 1
    %p215 = por %p213, %p214
    %p216 = scmp.ne.s32.totalorder %s207, %s208
    %p217 = scmp.eq.s32.totalorder %s35, 0
    %p218 = por %p216, %p217
    %p219 = scmp.ne.s32.totalorder %s207, %s208
    %p220 = scmp.eq.s32.totalorder %s36, 1
    %p221 = por %p219, %p220
    %p223 = scmp.ne.s32.totalorder %s208, %s222
    %p224 = scmp.eq.s32.totalorder %s36, 0
    %p225 = por %p223, %p224
    %s227 = sadd.s32 %s226, 1
    %p230 = scmp.eq.s32.totalorder %s30, 1
    %p231 = scmp.ne.s32.totalorder %s226, %s228
    %p232 = scmp.eq.s32.totalorder %s30, 0
    %p233 = por %p231, %p232
    %p234 = scmp.ne.s32.totalorder %s226, %s228
    %p235 = scmp.eq.s32.totalorder %s35, 1
    %p236 = por %p234, %p235
    %p237 = scmp.ne.s32.totalorder %s228, %s229
    %p238 = scmp.eq.s32.totalorder %s35, 0
    %p239 = por %p237, %p238
    %p240 = scmp.ne.s32.totalorder %s228, %s229
    %p241 = scmp.eq.s32.totalorder %s36, 1
    %p242 = por %p240, %p241
    %p244 = scmp.ne.s32.totalorder %s229, %s243
    %p245 = scmp.eq.s32.totalorder %s36, 0
    %p246 = por %p244, %p245
    %s248 = sadd.s32 %s247, 1
    %p251 = scmp.eq.s32.totalorder %s30, 1
    %p252 = scmp.ne.s32.totalorder %s247, %s249
    %p253 = scmp.eq.s32.totalorder %s30, 0
    %p254 = por %p252, %p253
    %p255 = scmp.ne.s32.totalorder %s247, %s249
    %p256 = scmp.eq.s32.totalorder %s35, 1
    %p257 = por %p255, %p256
    %p258 = scmp.ne.s32.totalorder %s249, %s250
    %p259 = scmp.eq.s32.totalorder %s35, 0
    %p260 = por %p258, %p259
    %p261 = scmp.ne.s32.totalorder %s249, %s250
    %p262 = scmp.eq.s32.totalorder %s36, 1
    %p263 = por %p261, %p262
    %p265 = scmp.ne.s32.totalorder %s250, %s264
    %p266 = scmp.eq.s32.totalorder %s36, 0
    %p267 = por %p265, %p266
    %s269 = sadd.s32 %s268, 1
    %p272 = scmp.eq.s32.totalorder %s30, 1
    %p273 = scmp.ne.s32.totalorder %s268, %s270
    %p274 = scmp.eq.s32.totalorder %s30, 0
    %p275 = por %p273, %p274
    %p276 = scmp.ne.s32.totalorder %s268, %s270
    %p277 = scmp.eq.s32.totalorder %s35, 1
    %p278 = por %p276, %p277
    %p279 = scmp.ne.s32.totalorder %s270, %s271
    %p280 = scmp.eq.s32.totalorder %s35, 0
    %p281 = por %p279, %p280
    %p282 = scmp.ne.s32.totalorder %s270, %s271
    %p283 = scmp.eq.s32.totalorder %s36, 1
    %p284 = por %p282, %p283
    %p286 = scmp.ne.s32.totalorder %s271, %s285
    %p287 = scmp.eq.s32.totalorder %s36, 0
    %p288 = por %p286, %p287
    %s290 = sadd.s32 %s289, 1
    %p293 = scmp.eq.s32.totalorder %s30, 1
    %p294 = scmp.ne.s32.totalorder %s289, %s291
    %p295 = scmp.eq.s32.totalorder %s30, 0
    %p296 = por %p294, %p295
    %p297 = scmp.ne.s32.totalorder %s289, %s291
    %p298 = scmp.eq.s32.totalorder %s35, 1
    %p299 = por %p297, %p298
    %p300 = scmp.ne.s32.totalorder %s291, %s292
    %p301 = scmp.eq.s32.totalorder %s35, 0
    %p302 = por %p300, %p301
    %p303 = scmp.ne.s32.totalorder %s291, %s292
    %p304 = scmp.eq.s32.totalorder %s36, 1
    %p305 = por %p303, %p304
    %p307 = scmp.ne.s32.totalorder %s292, %s306
    %p308 = scmp.eq.s32.totalorder %s36, 0
    %p309 = por %p307, %p308
    %s311 = sadd.s32 %s310, 1
    %p314 = scmp.eq.s32.totalorder %s30, 1
    %p315 = scmp.ne.s32.totalorder %s310, %s312
    %p316 = scmp.eq.s32.totalorder %s30, 0
    %p317 = por %p315, %p316
    %p318 = scmp.ne.s32.totalorder %s310, %s312
    %p319 = scmp.eq.s32.totalorder %s35, 1
    %p320 = por %p318, %p319
    %p321 = scmp.ne.s32.totalorder %s312, %s313
    %p322 = scmp.eq.s32.totalorder %s35, 0
    %p323 = por %p321, %p322
    %p324 = scmp.ne.s32.totalorder %s312, %s313
    %p325 = scmp.eq.s32.totalorder %s36, 1
    %p326 = por %p324, %p325
    %p328 = scmp.ne.s32.totalorder %s313, %s327
    %p329 = scmp.eq.s32.totalorder %s36, 0
    %p330 = por %p328, %p329
    %s332 = sadd.s32 %s331, 1
    %p335 = scmp.eq.s32.totalorder %s30, 1
    %p336 = scmp.ne.s32.totalorder %s331, %s333
    %p337 = scmp.eq.s32.totalorder %s30, 0
    %p338 = por %p336, %p337
    %p339 = scmp.ne.s32.totalorder %s331, %s333
    %p340 = scmp.eq.s32.totalorder %s35, 1
    %p341 = por %p339, %p340
    %p342 = scmp.ne.s32.totalorder %s333, %s334
    %p343 = scmp.eq.s32.totalorder %s35, 0
    %p344 = por %p342, %p343
    %p345 = scmp.ne.s32.totalorder %s333, %s334
    %p346 = scmp.eq.s32.totalorder %s36, 1
    %p347 = por %p345, %p346
    %p349 = scmp.ne.s32.totalorder %s334, %s348
    %p350 = scmp.eq.s32.totalorder %s36, 0
    %p351 = por %p349, %p350
    %s353 = sadd.s32 %s352, 1
    %p356 = scmp.eq.s32.totalorder %s30, 1
    %p357 = scmp.ne.s32.totalorder %s352, %s354
    %p358 = scmp.eq.s32.totalorder %s30, 0
    %p359 = por %p357, %p358
    %p360 = scmp.ne.s32.totalorder %s352, %s354
    %p361 = scmp.eq.s32.totalorder %s35, 1
    %p362 = por %p360, %p361
    %p363 = scmp.ne.s32.totalorder %s354, %s355
    %p364 = scmp.eq.s32.totalorder %s35, 0
    %p365 = por %p363, %p364
    %p366 = scmp.ne.s32.totalorder %s354, %s355
    %p367 = scmp.eq.s32.totalorder %s36, 1
    %p368 = por %p366, %p367
    %p370 = scmp.ne.s32.totalorder %s355, %s369
    %p371 = scmp.eq.s32.totalorder %s36, 0
    %p372 = por %p370, %p371
    %s374 = sadd.s32 %s373, 1
    %p377 = scmp.eq.s32.totalorder %s30, 1
    %p378 = scmp.ne.s32.totalorder %s373, %s375
    %p379 = scmp.eq.s32.totalorder %s30, 0
    %p380 = por %p378, %p379
    %p381 = scmp.ne.s32.totalorder %s373, %s375
    %p382 = scmp.eq.s32.totalorder %s35, 1
    %p383 = por %p381, %p382
    %p384 = scmp.ne.s32.totalorder %s375, %s376
    %p385 = scmp.eq.s32.totalorder %s35, 0
    %p386 = por %p384, %p385
    %p387 = scmp.ne.s32.totalorder %s375, %s376
    %p388 = scmp.eq.s32.totalorder %s36, 1
    %p389 = por %p387, %p388
    %p391 = scmp.ne.s32.totalorder %s376, %s390
    %p392 = scmp.eq.s32.totalorder %s36, 0
    %p393 = por %p391, %p392
    %s395 = sadd.s32 %s394, 1
    %p398 = scmp.eq.s32.totalorder %s30, 1
    %p399 = scmp.ne.s32.totalorder %s394, %s396
    %p400 = scmp.eq.s32.totalorder %s30, 0
    %p401 = por %p399, %p400
    %p402 = scmp.ne.s32.totalorder %s394, %s396
    %p403 = scmp.eq.s32.totalorder %s35, 1
    %p404 = por %p402, %p403
    %p405 = scmp.ne.s32.totalorder %s396, %s397
    %p406 = scmp.eq.s32.totalorder %s35, 0
    %p407 = por %p405, %p406
    %p408 = scmp.ne.s32.totalorder %s396, %s397
    %p409 = scmp.eq.s32.totalorder %s36, 1
    %p410 = por %p408, %p409
    %p412 = scmp.ne.s32.totalorder %s397, %s411
    %p413 = scmp.eq.s32.totalorder %s36, 0
    %p414 = por %p412, %p413
    %s416 = sadd.s32 %s415, 1
    %p419 = scmp.eq.s32.totalorder %s30, 1
    %p420 = scmp.ne.s32.totalorder %s415, %s417
    %p421 = scmp.eq.s32.totalorder %s30, 0
    %p422 = por %p420, %p421
    %p423 = scmp.ne.s32.totalorder %s415, %s417
    %p424 = scmp.eq.s32.totalorder %s35, 1
    %p425 = por %p423, %p424
    %p426 = scmp.ne.s32.totalorder %s417, %s418
    %p427 = scmp.eq.s32.totalorder %s35, 0
    %p428 = por %p426, %p427
    %p429 = scmp.ne.s32.totalorder %s417, %s418
    %p430 = scmp.eq.s32.totalorder %s36, 1
    %p431 = por %p429, %p430
    %p433 = scmp.ne.s32.totalorder %s418, %s432
    %p434 = scmp.eq.s32.totalorder %s36, 0
    %p435 = por %p433, %p434
    %s437 = sadd.s32 %s436, 1
    %p440 = scmp.eq.s32.totalorder %s30, 1
    %p441 = scmp.ne.s32.totalorder %s436, %s438
    %p442 = scmp.eq.s32.totalorder %s30, 0
    %p443 = por %p441, %p442
    %p444 = scmp.ne.s32.totalorder %s436, %s438
    %p445 = scmp.eq.s32.totalorder %s35, 1
    %p446 = por %p444, %p445
    %p447 = scmp.ne.s32.totalorder %s438, %s439
    %p448 = scmp.eq.s32.totalorder %s35, 0
    %p449 = por %p447, %p448
    %p450 = scmp.ne.s32.totalorder %s438, %s439
    %p451 = scmp.eq.s32.totalorder %s36, 1
    %p452 = por %p450, %p451
    %p454 = scmp.ne.s32.totalorder %s439, %s453
    %p455 = scmp.eq.s32.totalorder %s36, 0
    %p456 = por %p454, %p455
    %s458 = sadd.s32 %s457, 1
    %p461 = scmp.eq.s32.totalorder %s30, 1
    %p462 = scmp.ne.s32.totalorder %s457, %s459
    %p463 = scmp.eq.s32.totalorder %s30, 0
    %p464 = por %p462, %p463
    %p465 = scmp.ne.s32.totalorder %s457, %s459
    %p466 = scmp.eq.s32.totalorder %s35, 1
    %p467 = por %p465, %p466
    %p468 = scmp.ne.s32.totalorder %s459, %s460
    %p469 = scmp.eq.s32.totalorder %s35, 0
    %p470 = por %p468, %p469
    %p471 = scmp.ne.s32.totalorder %s459, %s460
    %p472 = scmp.eq.s32.totalorder %s36, 1
    %p473 = por %p471, %p472
    %p475 = scmp.ne.s32.totalorder %s460, %s474
    %p476 = scmp.eq.s32.totalorder %s36, 0
    %p477 = por %p475, %p476
    %s479 = sadd.s32 %s478, 1
    %p482 = scmp.eq.s32.totalorder %s30, 1
    %p483 = scmp.ne.s32.totalorder %s478, %s480
    %p484 = scmp.eq.s32.totalorder %s30, 0
    %p485 = por %p483, %p484
    %p486 = scmp.ne.s32.totalorder %s478, %s480
    %p487 = scmp.eq.s32.totalorder %s35, 1
    %p488 = por %p486, %p487
    %p489 = scmp.ne.s32.totalorder %s480, %s481
    %p490 = scmp.eq.s32.totalorder %s35, 0
    %p491 = por %p489, %p490
    %p492 = scmp.ne.s32.totalorder %s480, %s481
    %p493 = scmp.eq.s32.totalorder %s36, 1
    %p494 = por %p492, %p493
    %p496 = scmp.ne.s32.totalorder %s481, %s495
    %p497 = scmp.eq.s32.totalorder %s36, 0
    %p498 = por %p496, %p497
    %s500 = sadd.s32 %s499, 1
    %p503 = scmp.eq.s32.totalorder %s30, 1
    %p504 = scmp.ne.s32.totalorder %s499, %s501
    %p505 = scmp.eq.s32.totalorder %s30, 0
    %p506 = por %p504, %p505
    %p507 = scmp.ne.s32.totalorder %s499, %s501
    %p508 = scmp.eq.s32.totalorder %s35, 1
    %p509 = por %p507, %p508
    %p510 = scmp.ne.s32.totalorder %s501, %s502
    %p511 = scmp.eq.s32.totalorder %s35, 0
    %p512 = por %p510, %p511
    %p513 = scmp.ne.s32.totalorder %s501, %s502
    %p514 = scmp.eq.s32.totalorder %s36, 1
    %p515 = por %p513, %p514
    %p517 = scmp.ne.s32.totalorder %s502, %s516
    %p518 = scmp.eq.s32.totalorder %s36, 0
    %p519 = por %p517, %p518
    %s521 = sadd.s32 %s520, 1
    %p524 = scmp.eq.s32.totalorder %s30, 1
    %p525 = scmp.ne.s32.totalorder %s520, %s522
    %p526 = scmp.eq.s32.totalorder %s30, 0
    %p527 = por %p525, %p526
    %p528 = scmp.ne.s32.totalorder %s520, %s522
    %p529 = scmp.eq.s32.totalorder %s35, 1
    %p530 = por %p528, %p529
    %p531 = scmp.ne.s32.totalorder %s522, %s523
    %p532 = scmp.eq.s32.totalorder %s35, 0
    %p533 = por %p531, %p532
    %p534 = scmp.ne.s32.totalorder %s522, %s523
    %p535 = scmp.eq.s32.totalorder %s36, 1
    %p536 = por %p534, %p535
    %p538 = scmp.ne.s32.totalorder %s523, %s537
    %p539 = scmp.eq.s32.totalorder %s36, 0
    %p540 = por %p538, %p539
    %s542 = sadd.s32 %s541, 1
    %p545 = scmp.eq.s32.totalorder %s30, 1
    %p546 = scmp.ne.s32.totalorder %s541, %s543
    %p547 = scmp.eq.s32.totalorder %s30, 0
    %p548 = por %p546, %p547
    %p549 = scmp.ne.s32.totalorder %s541, %s543
    %p550 = scmp.eq.s32.totalorder %s35, 1
    %p551 = por %p549, %p550
    %p552 = scmp.ne.s32.totalorder %s543, %s544
    %p553 = scmp.eq.s32.totalorder %s35, 0
    %p554 = por %p552, %p553
    %p555 = scmp.ne.s32.totalorder %s543, %s544
    %p556 = scmp.eq.s32.totalorder %s36, 1
    %p557 = por %p555, %p556
    %p559 = scmp.ne.s32.totalorder %s544, %s558
    %p560 = scmp.eq.s32.totalorder %s36, 0
    %p561 = por %p559, %p560
    %s562 = ssub.s32 %s30, %s37
    %p563 = scmp.eq.s32.totalorder %s562, 0
    %s565 = sadd.s32 %s564, 1
    %s566 = scalar_select %p563, %s564, %s565
    %p569 = pneg %p563
    %p570 = scmp.eq.s32.totalorder %s30, 1
    %p571 = por %p569, %p570
    %p572 = scmp.ne.s32.totalorder %s564, %s567
    %p573 = scmp.eq.s32.totalorder %s30, 0
    %p574 = por %p572, %p573
    %p575 = scmp.ne.s32.totalorder %s564, %s567
    %p576 = scmp.eq.s32.totalorder %s35, 1
    %p577 = por %p575, %p576
    %p578 = scmp.ne.s32.totalorder %s567, %s568
    %p579 = scmp.eq.s32.totalorder %s35, 0
    %p580 = por %p578, %p579
    %p581 = scmp.ne.s32.totalorder %s567, %s568
    %p582 = scmp.eq.s32.totalorder %s36, 1
    %p583 = por %p581, %p582
    %p585 = scmp.ne.s32.totalorder %s568, %s584
    %p586 = scmp.eq.s32.totalorder %s36, 0
    %p587 = por %p585, %p586
    %p588 = scmp.le.s32.totalorder 1, %s30
    %p589 = scmp.lt.s32.totalorder %s30, 3
    %p590 = pnand %p588, %p589
    %p591 = pneg %p590
    // Predicated region
    $region9: #{decoder_forward.5} parent=5 // pred_check
      _
    $region10: #{decoder_forward.5} parent=5 // pred_check_branch
      %593 = sbr.rel (%p590) target = $region12
    $region11: #{decoder_forward.5} parent=5 // pred_region
      %s594 = ssub.s32 %s30, 1
      // Predicated region
      $region13: #{decoder_forward.5} parent=11 // pred_check
        %p595 = pneg %p155
      $region14: #{decoder_forward.5} parent=11 // pred_check_branch
        %597 = sbr.rel (%p595) target = $region16
      $region15: #{decoder_forward.5} parent=11 // pred_region
        _
      $region16: #{decoder_forward.5} parent=11 // pred_fallthru
        _
      // Predicated region
      $region17: #{decoder_forward.5} parent=11 // pred_check
        %p598 = pneg %p176
      $region18: #{decoder_forward.5} parent=11 // pred_check_branch
        %600 = sbr.rel (%p598) target = $region20
      $region19: #{decoder_forward.5} parent=11 // pred_region
        _
      $region20: #{decoder_forward.5} parent=11 // pred_fallthru
        _
      // Predicated region
      $region21: #{decoder_forward.5} parent=11 // pred_check
        %p601 = pneg %p197
      $region22: #{decoder_forward.5} parent=11 // pred_check_branch
        %603 = sbr.rel (%p601) target = $region24
      $region23: #{decoder_forward.5} parent=11 // pred_region
        _
      $region24: #{decoder_forward.5} parent=11 // pred_fallthru
        _
      // Predicated region
      $region25: #{decoder_forward.5} parent=11 // pred_check
        %p604 = pneg %p218
      $region26: #{decoder_forward.5} parent=11 // pred_check_branch
        %606 = sbr.rel (%p604) target = $region28
      $region27: #{decoder_forward.5} parent=11 // pred_region
        _
      $region28: #{decoder_forward.5} parent=11 // pred_fallthru
        _
      // Predicated region
      $region29: #{decoder_forward.5} parent=11 // pred_check
        %p607 = pneg %p239
      $region30: #{decoder_forward.5} parent=11 // pred_check_branch
        %609 = sbr.rel (%p607) target = $region32
      $region31: #{decoder_forward.5} parent=11 // pred_region
        _
      $region32: #{decoder_forward.5} parent=11 // pred_fallthru
        _
      // Predicated region
      $region33: #{decoder_forward.5} parent=11 // pred_check
        %p610 = pneg %p260
      $region34: #{decoder_forward.5} parent=11 // pred_check_branch
        %612 = sbr.rel (%p610) target = $region36
      $region35: #{decoder_forward.5} parent=11 // pred_region
        _
      $region36: #{decoder_forward.5} parent=11 // pred_fallthru
        _
      // Predicated region
      $region37: #{decoder_forward.5} parent=11 // pred_check
        %p613 = pneg %p281
      $region38: #{decoder_forward.5} parent=11 // pred_check_branch
        %615 = sbr.rel (%p613) target = $region40
      $region39: #{decoder_forward.5} parent=11 // pred_region
        _
      $region40: #{decoder_forward.5} parent=11 // pred_fallthru
        _
      // Predicated region
      $region41: #{decoder_forward.5} parent=11 // pred_check
        %p616 = pneg %p302
      $region42: #{decoder_forward.5} parent=11 // pred_check_branch
        %618 = sbr.rel (%p616) target = $region44
      $region43: #{decoder_forward.5} parent=11 // pred_region
        _
      $region44: #{decoder_forward.5} parent=11 // pred_fallthru
        _
      // Predicated region
      $region45: #{decoder_forward.5} parent=11 // pred_check
        %p619 = pneg %p323
      $region46: #{decoder_forward.5} parent=11 // pred_check_branch
        %621 = sbr.rel (%p619) target = $region48
      $region47: #{decoder_forward.5} parent=11 // pred_region
        _
      $region48: #{decoder_forward.5} parent=11 // pred_fallthru
        _
      // Predicated region
      $region49: #{decoder_forward.5} parent=11 // pred_check
        %p622 = pneg %p344
      $region50: #{decoder_forward.5} parent=11 // pred_check_branch
        %624 = sbr.rel (%p622) target = $region52
      $region51: #{decoder_forward.5} parent=11 // pred_region
        _
      $region52: #{decoder_forward.5} parent=11 // pred_fallthru
        _
      // Predicated region
      $region53: #{decoder_forward.5} parent=11 // pred_check
        %p625 = pneg %p365
      $region54: #{decoder_forward.5} parent=11 // pred_check_branch
        %627 = sbr.rel (%p625) target = $region56
      $region55: #{decoder_forward.5} parent=11 // pred_region
        _
      $region56: #{decoder_forward.5} parent=11 // pred_fallthru
        _
      // Predicated region
      $region57: #{decoder_forward.5} parent=11 // pred_check
        %p628 = pneg %p386
      $region58: #{decoder_forward.5} parent=11 // pred_check_branch
        %630 = sbr.rel (%p628) target = $region60
      $region59: #{decoder_forward.5} parent=11 // pred_region
        _
      $region60: #{decoder_forward.5} parent=11 // pred_fallthru
        _
      // Predicated region
      $region61: #{decoder_forward.5} parent=11 // pred_check
        %p631 = pneg %p407
      $region62: #{decoder_forward.5} parent=11 // pred_check_branch
        %633 = sbr.rel (%p631) target = $region64
      $region63: #{decoder_forward.5} parent=11 // pred_region
        _
      $region64: #{decoder_forward.5} parent=11 // pred_fallthru
        _
      // Predicated region
      $region65: #{decoder_forward.5} parent=11 // pred_check
        %p634 = pneg %p428
      $region66: #{decoder_forward.5} parent=11 // pred_check_branch
        %636 = sbr.rel (%p634) target = $region68
      $region67: #{decoder_forward.5} parent=11 // pred_region
        _
      $region68: #{decoder_forward.5} parent=11 // pred_fallthru
        _
      // Predicated region
      $region69: #{decoder_forward.5} parent=11 // pred_check
        %p637 = pneg %p449
      $region70: #{decoder_forward.5} parent=11 // pred_check_branch
        %639 = sbr.rel (%p637) target = $region72
      $region71: #{decoder_forward.5} parent=11 // pred_region
        _
      $region72: #{decoder_forward.5} parent=11 // pred_fallthru
        _
      // Predicated region
      $region73: #{decoder_forward.5} parent=11 // pred_check
        %p640 = pneg %p470
      $region74: #{decoder_forward.5} parent=11 // pred_check_branch
        %642 = sbr.rel (%p640) target = $region76
      $region75: #{decoder_forward.5} parent=11 // pred_region
        _
      $region76: #{decoder_forward.5} parent=11 // pred_fallthru
        _
      // Predicated region
      $region77: #{decoder_forward.5} parent=11 // pred_check
        %p643 = pneg %p491
      $region78: #{decoder_forward.5} parent=11 // pred_check_branch
        %645 = sbr.rel (%p643) target = $region80
      $region79: #{decoder_forward.5} parent=11 // pred_region
        _
      $region80: #{decoder_forward.5} parent=11 // pred_fallthru
        _
      // Predicated region
      $region81: #{decoder_forward.5} parent=11 // pred_check
        %p646 = pneg %p512
      $region82: #{decoder_forward.5} parent=11 // pred_check_branch
        %648 = sbr.rel (%p646) target = $region84
      $region83: #{decoder_forward.5} parent=11 // pred_region
        _
      $region84: #{decoder_forward.5} parent=11 // pred_fallthru
        _
      // Predicated region
      $region85: #{decoder_forward.5} parent=11 // pred_check
        %p649 = pneg %p533
      $region86: #{decoder_forward.5} parent=11 // pred_check_branch
        %651 = sbr.rel (%p649) target = $region88
      $region87: #{decoder_forward.5} parent=11 // pred_region
        _
      $region88: #{decoder_forward.5} parent=11 // pred_fallthru
        _
      // Predicated region
      $region89: #{decoder_forward.5} parent=11 // pred_check
        %p652 = pneg %p554
      $region90: #{decoder_forward.5} parent=11 // pred_check_branch
        %654 = sbr.rel (%p652) target = $region92
      $region91: #{decoder_forward.5} parent=11 // pred_region
        _
      $region92: #{decoder_forward.5} parent=11 // pred_fallthru
        _
    $region12: #{decoder_forward.5} parent=5 // pred_fallthru
      _
    %p655 = scmp.lt.s32.totalorder %s30, 2
    // Predicated region
    $region93: #{decoder_forward.5} parent=5 // pred_check
      %p656 = pneg %p655
    $region94: #{decoder_forward.5} parent=5 // pred_check_branch
      %658 = sbr.rel (%p656) target = $region96
    $region95: #{decoder_forward.5} parent=5 // pred_region
      // Predicated region
      $region97: #{decoder_forward.5} parent=95 // pred_check
        %p659 = pneg %p50
      $region98: #{decoder_forward.5} parent=95 // pred_check_branch
        %661 = sbr.rel (%p659) target = $region100
      $region99: #{decoder_forward.5} parent=95 // pred_region
        %p662 = scmp.lt.s32.totalorder %s30, 1
        %s663 = scalar_select %p662, %s30, 1
        %s664 = smul.addr %s663, 8
        %s665 = scalar_lea.vmem %s0, %s664
      $region100: #{decoder_forward.5} parent=95 // pred_fallthru
        _
      // Predicated region
      $region101: #{decoder_forward.5} parent=95 // pred_check
        %p666 = pneg %p76
      $region102: #{decoder_forward.5} parent=95 // pred_check_branch
        %668 = sbr.rel (%p666) target = $region104
      $region103: #{decoder_forward.5} parent=95 // pred_region
        %p669 = scmp.lt.s32.totalorder %s30, 1
        %s670 = scalar_select %p669, %s30, 1
        %s671 = smul.addr %s670, 8
        %s672 = scalar_lea.vmem %s1, %s671
      $region104: #{decoder_forward.5} parent=95 // pred_fallthru
        _
      // Predicated region
      $region105: #{decoder_forward.5} parent=95 // pred_check
        %p673 = pneg %p102
      $region106: #{decoder_forward.5} parent=95 // pred_check_branch
        %675 = sbr.rel (%p673) target = $region108
      $region107: #{decoder_forward.5} parent=95 // pred_region
        %p676 = scmp.lt.s32.totalorder %s30, 1
        %s677 = scalar_select %p676, %s30, 1
        %s678 = smul.addr %s677, 8
        %s679 = scalar_lea.vmem %s2, %s678
      $region108: #{decoder_forward.5} parent=95 // pred_fallthru
        _
      // Predicated region
      $region109: #{decoder_forward.5} parent=95 // pred_check
        %p680 = pneg %p128
      $region110: #{decoder_forward.5} parent=95 // pred_check_branch
        %682 = sbr.rel (%p680) target = $region112
      $region111: #{decoder_forward.5} parent=95 // pred_region
        %p683 = scmp.lt.s32.totalorder %s30, 1
        %s684 = scalar_select %p683, %s30, 1
        %s685 = smul.addr %s684, 8
        %s686 = scalar_lea.vmem %s3, %s685
      $region112: #{decoder_forward.5} parent=95 // pred_fallthru
        _
    $region96: #{decoder_forward.5} parent=5 // pred_fallthru
      _
    %p687 = scmp.le.s32.totalorder 1, %s30
    %p688 = scmp.lt.s32.totalorder %s30, 3
    %p689 = pnand %p687, %p688
    %p690 = pneg %p689
    // Predicated region
    $region113: #{decoder_forward.5} parent=5 // pred_check
      _
    $region114: #{decoder_forward.5} parent=5 // pred_check_branch
      %692 = sbr.rel (%p689) target = $region116
    $region115: #{decoder_forward.5} parent=5 // pred_region
      %s693 = ssub.s32 %s30, 1
      %p694 = scmp.lt.s32.totalorder %s35, 1
      %s695 = scalar_select %p694, %s35, 1
      %s696 = smul.addr %s695, 8
      %s697 = scalar_lea.vmem %s0, %s696
      %p698 = pneg %p56
      %p699 = pneg %p53
      %p700 = scmp.lt.s32.totalorder %s35, 1
      %s701 = scalar_select %p700, %s35, 1
      %s702 = smul.addr %s701, 8
      %s703 = scalar_lea.vmem %s1, %s702
      %p704 = pneg %p82
      %p705 = pneg %p79
      %p706 = scmp.lt.s32.totalorder %s35, 1
      %s707 = scalar_select %p706, %s35, 1
      %s708 = smul.addr %s707, 8
      %s709 = scalar_lea.vmem %s2, %s708
      %p710 = pneg %p108
      %p711 = pneg %p105
      %p712 = scmp.lt.s32.totalorder %s35, 1
      %s713 = scalar_select %p712, %s35, 1
      %s714 = smul.addr %s713, 8
      %s715 = scalar_lea.vmem %s3, %s714
      %p716 = pneg %p134
      %p717 = pneg %p131
      %p718 = pneg %p155
      %p719 = pneg %p152
      %p720 = pneg %p176
      %p721 = pneg %p173
      %p722 = pneg %p197
      %p723 = pneg %p194
      %p724 = pneg %p218
      %p725 = pneg %p215
      %p726 = pneg %p239
      %p727 = pneg %p236
      %p728 = pneg %p260
      %p729 = pneg %p257
      %p730 = pneg %p281
      %p731 = pneg %p278
      %p732 = pneg %p302
      %p733 = pneg %p299
      %p734 = pneg %p323
      %p735 = pneg %p320
      %p736 = pneg %p344
      %p737 = pneg %p341
      %p738 = pneg %p365
      %p739 = pneg %p362
      %p740 = pneg %p386
      %p741 = pneg %p383
      %p742 = pneg %p407
      %p743 = pneg %p404
      %p744 = pneg %p428
      %p745 = pneg %p425
      %p746 = pneg %p449
      %p747 = pneg %p446
      %p748 = pneg %p470
      %p749 = pneg %p467
      %p750 = pneg %p491
      %p751 = pneg %p488
      %p752 = pneg %p512
      %p753 = pneg %p509
      %p754 = pneg %p533
      %p755 = pneg %p530
      %p756 = pneg %p554
      %p757 = pneg %p551
      %p758 = pneg %p580
      %p759 = pneg %p577
      %p760 = scmp.lt.s32.totalorder %s35, 1
      %s761 = scalar_select %p760, %s35, 1
      %s762 = smul.addr %s761, 8
      %s763 = scalar_lea.vmem %s24, %s762
      %p764 = scmp.lt.s32.totalorder %s35, 1
      %s765 = scalar_select %p764, %s35, 1
      %s766 = smul.addr %s765, 8
      %s767 = scalar_lea.vmem %s0, %s766
      %p768 = scmp.lt.s32.totalorder %s35, 1
      %s769 = scalar_select %p768, %s35, 1
      %s770 = smul.addr %s769, 8
      %s771 = scalar_lea.vmem %s1, %s770
      %p772 = scmp.lt.s32.totalorder %s35, 1
      %s773 = scalar_select %p772, %s35, 1
      %s774 = smul.addr %s773, 8
      %s775 = scalar_lea.vmem %s2, %s774
      %p776 = scmp.lt.s32.totalorder %s35, 1
      %s777 = scalar_select %p776, %s35, 1
      %s778 = smul.addr %s777, 8
      %s779 = scalar_lea.vmem %s3, %s778
      %p780 = scmp.lt.s32.totalorder %s35, 1
      %s781 = scalar_select %p780, %s35, 1
      %s782 = smul.addr %s781, 8
      %s783 = scalar_lea.vmem %s24, %s782
      %v785 = vld [vmem:[%s767] sm:$0xff]
      %v786 = vld [vmem:[%s771] sm:$0xff]
      %v787 = vld [vmem:[%s775] sm:$0xff]
      %v788 = vld [vmem:[%s779] sm:$0xff]
      %v789 = vld [vmem:[%s4] sm:$0xf]
      %v790 = vld [vmem:[%s5] sm:$0xf]
      %v791 = vld [vmem:[%s6] sm:$0xf]
      %v792 = vpack.c.bf16 %v785, %v785
      %vm793 = vcmask 64512
      %v795 = vsel %vm793, %v792, 0
      %vm797 = vcmask 1043456
      %v799 = vsel %vm797, %v789, 0
      %801 = vmatprep.subr.bf16.mxu0 0
      %802 = vmatpush1.bf16.msra.mxu0 %v799
      %803 = vmatprep.subr.bf16.mxu0 0
      %804 = vmatpush1.bf16.msra.mxu0 0
      %805 = vmatprep.subr.bf16.mxu0 0
      %806 = vmatpush1.bf16.msra.mxu0 0
      %807 = vmatprep.subr.bf16.mxu0 0
      %808 = vmatpush1.bf16.msra.mxu0 0
      %809 = vmatprep.subr.bf16.mxu0 0
      %810 = vmatpush1.bf16.msra.mxu0 0
      %811 = vmatprep.subr.bf16.mxu0 0
      %812 = vmatpush1.bf16.msra.mxu0 0
      %813 = vmatprep.subr.bf16.mxu0 0
      %814 = vmatpush1.bf16.msra.mxu0 0
      %815 = vmatprep.subr.bf16.mxu0 0
      %816 = vmatpush1.bf16.msra.mxu0 0
      %817 = vmatprep.subr.bf16.mxu0 0
      %818 = vmatpush1.bf16.msra.mxu0 0
      %819 = vmatprep.subr.bf16.mxu0 0
      %820 = vmatpush1.bf16.msra.mxu0 0
      %821 = vmatprep.subr.bf16.mxu0 0
      %822 = vmatpush1.bf16.msra.mxu0 0
      %823 = vmatprep.subr.bf16.mxu0 0
      %824 = vmatpush1.bf16.msra.mxu0 0
      %825 = vmatprep.subr.bf16.mxu0 0
      %826 = vmatpush1.bf16.msra.mxu0 0
      %827 = vmatprep.subr.bf16.mxu0 0
      %828 = vmatpush1.bf16.msra.mxu0 0
      %829 = vmatprep.subr.bf16.mxu0 0
      %830 = vmatpush1.bf16.msra.mxu0 0
      %831 = vmatprep.subr.bf16.mxu0 0
      %832 = vmatpush1.bf16.msra.mxu0 0
      %833 = vmatprep.mubr.bf16.mxu0 0
      %834 = vmatmul.mubr.bf16.gmra.mrb[0].mxu0 %v795
      %v835 = vpop.f32.mrb[0].mxu0
      %v836 = vadd.f32 0.0, %v835
      %v837 = vpop.f32.mrb[0].mxu0
      %v838 = vpop.f32.mrb[0].mxu0
      %v839 = vpop.f32.mrb[0].mxu0
      %840 = vdwg.mxu0
      %v842 = vsel %vm797, %v790, 0
      %844 = vmatprep.subr.bf16.mxu0 0
      %845 = vmatpush1.bf16.msra.mxu0 %v842
      %846 = vmatprep.subr.bf16.mxu0 0
      %847 = vmatpush1.bf16.msra.mxu0 0
      %848 = vmatprep.subr.bf16.mxu0 0
      %849 = vmatpush1.bf16.msra.mxu0 0
      %850 = vmatprep.subr.bf16.mxu0 0
      %851 = vmatpush1.bf16.msra.mxu0 0
      %852 = vmatprep.subr.bf16.mxu0 0
      %853 = vmatpush1.bf16.msra.mxu0 0
      %854 = vmatprep.subr.bf16.mxu0 0
      %855 = vmatpush1.bf16.msra.mxu0 0
      %856 = vmatprep.subr.bf16.mxu0 0
      %857 = vmatpush1.bf16.msra.mxu0 0
      %858 = vmatprep.subr.bf16.mxu0 0
      %859 = vmatpush1.bf16.msra.mxu0 0
      %860 = vmatprep.subr.bf16.mxu0 0
      %861 = vmatpush1.bf16.msra.mxu0 0
      %862 = vmatprep.subr.bf16.mxu0 0
      %863 = vmatpush1.bf16.msra.mxu0 0
      %864 = vmatprep.subr.bf16.mxu0 0
      %865 = vmatpush1.bf16.msra.mxu0 0
      %866 = vmatprep.subr.bf16.mxu0 0
      %867 = vmatpush1.bf16.msra.mxu0 0
      %868 = vmatprep.subr.bf16.mxu0 0
      %869 = vmatpush1.bf16.msra.mxu0 0
      %870 = vmatprep.subr.bf16.mxu0 0
      %871 = vmatpush1.bf16.msra.mxu0 0
      %872 = vmatprep.subr.bf16.mxu0 0
      %873 = vmatpush1.bf16.msra.mxu0 0
      %874 = vmatprep.subr.bf16.mxu0 0
      %875 = vmatpush1.bf16.msra.mxu0 0
      %876 = vmatprep.mubr.bf16.mxu0 0
      %877 = vmatmul.mubr.bf16.gmra.mrb[0].mxu0 %v795
      %v878 = vpop.f32.mrb[0].mxu0
      %v879 = vadd.f32 0.0, %v878
      %v880 = vpop.f32.mrb[0].mxu0
      %v881 = vpop.f32.mrb[0].mxu0
      %v882 = vpop.f32.mrb[0].mxu0
      %883 = vdwg.mxu0
      %v885 = vsel %vm797, %v791, 0
      %887 = vmatprep.subr.bf16.mxu0 0
      %888 = vmatpush1.bf16.msra.mxu0 %v885
      %889 = vmatprep.subr.bf16.mxu0 0
      %890 = vmatpush1.bf16.msra.mxu0 0
      %891 = vmatprep.subr.bf16.mxu0 0
      %892 = vmatpush1.bf16.msra.mxu0 0
      %893 = vmatprep.subr.bf16.mxu0 0
      %894 = vmatpush1.bf16.msra.mxu0 0
      %895 = vmatprep.subr.bf16.mxu0 0
      %896 = vmatpush1.bf16.msra.mxu0 0
      %897 = vmatprep.subr.bf16.mxu0 0
      %898 = vmatpush1.bf16.msra.mxu0 0
      %899 = vmatprep.subr.bf16.mxu0 0
      %900 = vmatpush1.bf16.msra.mxu0 0
      %901 = vmatprep.subr.bf16.mxu0 0
      %902 = vmatpush1.bf16.msra.mxu0 0
      %903 = vmatprep.subr.bf16.mxu0 0
      %904 = vmatpush1.bf16.msra.mxu0 0
      %905 = vmatprep.subr.bf16.mxu0 0
      %906 = vmatpush1.bf16.msra.mxu0 0
      %907 = vmatprep.subr.bf16.mxu0 0
      %908 = vmatpush1.bf16.msra.mxu0 0
      %909 = vmatprep.subr.bf16.mxu0 0
      %910 = vmatpush1.bf16.msra.mxu0 0
      %911 = vmatprep.subr.bf16.mxu0 0
      %912 = vmatpush1.bf16.msra.mxu0 0
      %913 = vmatprep.subr.bf16.mxu0 0
      %914 = vmatpush1.bf16.msra.mxu0 0
      %915 = vmatprep.subr.bf16.mxu0 0
      %916 = vmatpush1.bf16.msra.mxu0 0
      %917 = vmatprep.subr.bf16.mxu0 0
      %918 = vmatpush1.bf16.msra.mxu0 0
      %919 = vmatprep.mubr.bf16.mxu0 0
      %920 = vmatmul.mubr.bf16.gmra.mrb[0].mxu0 %v795
      %v921 = vpop.f32.mrb[0].mxu0
      %v922 = vadd.f32 0.0, %v921
      %v923 = vpop.f32.mrb[0].mxu0
      %v924 = vpop.f32.mrb[0].mxu0
      %v925 = vpop.f32.mrb[0].mxu0
      %926 = vdwg.mxu0
      %v927 = vpack.c.bf16 %v836, %v836
      %v928 = vpack.c.bf16 %v879, %v879
      %v930 = vsel %vm793, %v927, 0
      %v933 = vsel %vm793, %v928, 0
      %935 = vmatprep.subr.bf16.mxu0 0
      %936 = vmatpush1.bf16.xpose.msra.mxu0 %v933
      %937 = vmatprep.subr.bf16.mxu0 0
      %938 = vmatpush1.bf16.xpose.msra.mxu0 0
      %939 = vmatprep.subr.bf16.mxu0 0
      %940 = vmatpush1.bf16.xpose.msra.mxu0 0
      %941 = vmatprep.subr.bf16.mxu0 0
      %942 = vmatpush1.bf16.xpose.msra.mxu0 0
      %943 = vmatprep.subr.bf16.mxu0 0
      %944 = vmatpush1.bf16.xpose.msra.mxu0 0
      %945 = vmatprep.subr.bf16.mxu0 0
      %946 = vmatpush1.bf16.xpose.msra.mxu0 0
      %947 = vmatprep.subr.bf16.mxu0 0
      %948 = vmatpush1.bf16.xpose.msra.mxu0 0
      %949 = vmatprep.subr.bf16.mxu0 0
      %950 = vmatpush1.bf16.xpose.msra.mxu0 0
      %951 = vmatprep.subr.bf16.mxu0 0
      %952 = vmatpush1.bf16.xpose.msra.mxu0 0
      %953 = vmatprep.subr.bf16.mxu0 0
      %954 = vmatpush1.bf16.xpose.msra.mxu0 0
      %955 = vmatprep.subr.bf16.mxu0 0
      %956 = vmatpush1.bf16.xpose.msra.mxu0 0
      %957 = vmatprep.subr.bf16.mxu0 0
      %958 = vmatpush1.bf16.xpose.msra.mxu0 0
      %959 = vmatprep.subr.bf16.mxu0 0
      %960 = vmatpush1.bf16.xpose.msra.mxu0 0
      %961 = vmatprep.subr.bf16.mxu0 0
      %962 = vmatpush1.bf16.xpose.msra.mxu0 0
      %963 = vmatprep.subr.bf16.mxu0 0
      %964 = vmatpush1.bf16.xpose.msra.mxu0 0
      %965 = vmatprep.subr.bf16.mxu0 0
      %966 = vmatpush1.bf16.xpose.msra.mxu0 0
      %967 = vmatprep.mubr.bf16.mxu0 0
      %968 = vmatmul.mubr.bf16.gmra.mrb[0].mxu0 %v930
      %v969 = vpop.f32.mrb[0].mxu0
      %v970 = vadd.f32 0.0, %v969
      %v971 = vpop.f32.mrb[0].mxu0
      %v972 = vpop.f32.mrb[0].mxu0
      %v973 = vpop.f32.mrb[0].mxu0
      %974 = vdwg.mxu0
      %vm975 = vcmp.eq.f32.partialorder %v787, 0.0
      %v976 = vsel %vm975, -1e+20, %v970
      %v977 = vmul.f32 %v976, 0.17677669
      %v978 = vsel %vm793, %v977, -inf
      %979 = vmax.xlane.f32.xlu0 %v978
      %v980 = vpop.xlane.xlu0 %979
      %v981 = vsub.f32 %v977, %v980
      %v982 = vmul.f32 %v981, 1.442695
      %v983 = vpow.pop %v982
      %v984 = vsel %vm793, %v983, 0.0
      %985 = vadd.xlane.f32.xlu0 %v984
      %v986 = vpop.xlane.xlu0 %985
      %v987 = vrcp.pop %v986
      %v988 = vmul.f32 %v983, %v987
      %v989 = vpack.c.bf16 %v988, %v988
      %v990 = vpack.c.bf16 %v922, %v922
      %v992 = vsel %vm793, %v989, 0
      %v995 = vsel %vm797, %v990, 0
      %997 = vmatprep.subr.bf16.mxu0 0
      %998 = vmatpush1.bf16.msra.mxu0 %v995
      %999 = vmatprep.subr.bf16.mxu0 0
      %1000 = vmatpush1.bf16.msra.mxu0 0
      %1001 = vmatprep.subr.bf16.mxu0 0
      %1002 = vmatpush1.bf16.msra.mxu0 0
      %1003 = vmatprep.subr.bf16.mxu0 0
      %1004 = vmatpush1.bf16.msra.mxu0 0
      %1005 = vmatprep.subr.bf16.mxu0 0
      %1006 = vmatpush1.bf16.msra.mxu0 0
      %1007 = vmatprep.subr.bf16.mxu0 0
      %1008 = vmatpush1.bf16.msra.mxu0 0
      %1009 = vmatprep.subr.bf16.mxu0 0
      %1010 = vmatpush1.bf16.msra.mxu0 0
      %1011 = vmatprep.subr.bf16.mxu0 0
      %1012 = vmatpush1.bf16.msra.mxu0 0
      %1013 = vmatprep.subr.bf16.mxu0 0
      %1014 = vmatpush1.bf16.msra.mxu0 0
      %1015 = vmatprep.subr.bf16.mxu0 0
      %1016 = vmatpush1.bf16.msra.mxu0 0
      %1017 = vmatprep.subr.bf16.mxu0 0
      %1018 = vmatpush1.bf16.msra.mxu0 0
      %1019 = vmatprep.subr.bf16.mxu0 0
      %1020 = vmatpush1.bf16.msra.mxu0 0
      %1021 = vmatprep.subr.bf16.mxu0 0
      %1022 = vmatpush1.bf16.msra.mxu0 0
      %1023 = vmatprep.subr.bf16.mxu0 0
      %1024 = vmatpush1.bf16.msra.mxu0 0
      %1025 = vmatprep.subr.bf16.mxu0 0
      %1026 = vmatpush1.bf16.msra.mxu0 0
      %1027 = vmatprep.subr.bf16.mxu0 0
      %1028 = vmatpush1.bf16.msra.mxu0 0
      %1029 = vmatprep.mubr.bf16.mxu0 0
      %1030 = vmatmul.mubr.bf16.gmra.mrb[0].mxu0 %v992
      %v1031 = vpop.f32.mrb[0].mxu0
      %v1032 = vadd.f32 0.0, %v1031
      %v1033 = vpop.f32.mrb[0].mxu0
      %v1034 = vpop.f32.mrb[0].mxu0
      %v1035 = vpop.f32.mrb[0].mxu0
      %1036 = vdwg.mxu0
      %v1037 = vpack.c.bf16 %v1032, %v1032
      %v1038 = vld [vmem:[%s7] sm:$0xf]
      %1040 = vrot.lane.b32.xlu0 %v792, 120
      %v1041 = vpop.permute.xlu0 %1040
      %v1043 = vsel %vm793, %v1041, 0
      %1045 = vmatprep.subr.bf16.mxu0 0
      %1046 = vmatpush1.bf16.msra.mxu0 %v799
      %1047 = vmatprep.subr.bf16.mxu0 0
      %1048 = vmatpush1.bf16.msra.mxu0 0
      %1049 = vmatprep.subr.bf16.mxu0 0
      %1050 = vmatpush1.bf16.msra.mxu0 0
      %1051 = vmatprep.subr.bf16.mxu0 0
      %1052 = vmatpush1.bf16.msra.mxu0 0
      %1053 = vmatprep.subr.bf16.mxu0 0
      %1054 = vmatpush1.bf16.msra.mxu0 0
      %1055 = vmatprep.subr.bf16.mxu0 0
      %1056 = vmatpush1.bf16.msra.mxu0 0
      %1057 = vmatprep.subr.bf16.mxu0 0
      %1058 = vmatpush1.bf16.msra.mxu0 0
      %1059 = vmatprep.subr.bf16.mxu0 0
      %1060 = vmatpush1.bf16.msra.mxu0 0
      %1061 = vmatprep.subr.bf16.mxu0 0
      %1062 = vmatpush1.bf16.msra.mxu0 0
      %1063 = vmatprep.subr.bf16.mxu0 0
      %1064 = vmatpush1.bf16.msra.mxu0 0
      %1065 = vmatprep.subr.bf16.mxu0 0
      %1066 = vmatpush1.bf16.msra.mxu0 0
      %1067 = vmatprep.subr.bf16.mxu0 0
      %1068 = vmatpush1.bf16.msra.mxu0 0
      %1069 = vmatprep.subr.bf16.mxu0 0
      %1070 = vmatpush1.bf16.msra.mxu0 0
      %1071 = vmatprep.subr.bf16.mxu0 0
      %1072 = vmatpush1.bf16.msra.mxu0 0
      %1073 = vmatprep.subr.bf16.mxu0 0
      %1074 = vmatpush1.bf16.msra.mxu0 0
      %1075 = vmatprep.subr.bf16.mxu0 0
      %1076 = vmatpush1.bf16.msra.mxu0 0
      %1077 = vmatprep.mubr.bf16.mxu0 0
      %1078 = vmatmul.mubr.bf16.gmra.mrb[0].mxu0 %v1043
      %v1079 = vpop.f32.mrb[0].mxu0
      %v1080 = vadd.f32 0.0, %v1079
      %v1081 = vpop.f32.mrb[0].mxu0
      %v1082 = vpop.f32.mrb[0].mxu0
      %v1083 = vpop.f32.mrb[0].mxu0
      %1084 = vdwg.mxu0
      %1085 = vmatprep.subr.bf16.mxu0 0
      %1086 = vmatpush1.bf16.msra.mxu0 %v842
      %1087 = vmatprep.subr.bf16.mxu0 0
      %1088 = vmatpush1.bf16.msra.mxu0 0
      %1089 = vmatprep.subr.bf16.mxu0 0
      %1090 = vmatpush1.bf16.msra.mxu0 0
      %1091 = vmatprep.subr.bf16.mxu0 0
      %1092 = vmatpush1.bf16.msra.mxu0 0
      %1093 = vmatprep.subr.bf16.mxu0 0
      %1094 = vmatpush1.bf16.msra.mxu0 0
      %1095 = vmatprep.subr.bf16.mxu0 0
      %1096 = vmatpush1.bf16.msra.mxu0 0
      %1097 = vmatprep.subr.bf16.mxu0 0
      %1098 = vmatpush1.bf16.msra.mxu0 0
      %1099 = vmatprep.subr.bf16.mxu0 0
      %1100 = vmatpush1.bf16.msra.mxu0 0
      %1101 = vmatprep.subr.bf16.mxu0 0
      %1102 = vmatpush1.bf16.msra.mxu0 0
      %1103 = vmatprep.subr.bf16.mxu0 0
      %1104 = vmatpush1.bf16.msra.mxu0 0
      %1105 = vmatprep.subr.bf16.mxu0 0
      %1106 = vmatpush1.bf16.msra.mxu0 0
      %1107 = vmatprep.subr.bf16.mxu0 0
      %1108 = vmatpush1.bf16.msra.mxu0 0
      %1109 = vmatprep.subr.bf16.mxu0 0
      %1110 = vmatpush1.bf16.msra.mxu0 0
      %1111 = vmatprep.subr.bf16.mxu0 0
      %1112 = vmatpush1.bf16.msra.mxu0 0
      %1113 = vmatprep.subr.bf16.mxu0 0
      %1114 = vmatpush1.bf16.msra.mxu0 0
      %1115 = vmatprep.subr.bf16.mxu0 0
      %1116 = vmatpush1.bf16.msra.mxu0 0
      %1117 = vmatprep.mubr.bf16.mxu0 0
      %1118 = vmatmul.mubr.bf16.gmra.mrb[0].mxu0 %v1043
      %v1119 = vpop.f32.mrb[0].mxu0
      %v1120 = vadd.f32 0.0, %v1119
      %v1121 = vpop.f32.mrb[0].mxu0
      %v1122 = vpop.f32.mrb[0].mxu0
      %v1123 = vpop.f32.mrb[0].mxu0
      %1124 = vdwg.mxu0
      %1125 = vmatprep.subr.bf16.mxu0 0
      %1126 = vmatpush1.bf16.msra.mxu0 %v885
      %1127 = vmatprep.subr.bf16.mxu0 0
      %1128 = vmatpush1.bf16.msra.mxu0 0
      %1129 = vmatprep.subr.bf16.mxu0 0
      %1130 = vmatpush1.bf16.msra.mxu0 0
      %1131 = vmatprep.subr.bf16.mxu0 0
      %1132 = vmatpush1.bf16.msra.mxu0 0
      %1133 = vmatprep.subr.bf16.mxu0 0
      %1134 = vmatpush1.bf16.msra.mxu0 0
      %1135 = vmatprep.subr.bf16.mxu0 0
      %1136 = vmatpush1.bf16.msra.mxu0 0
      %1137 = vmatprep.subr.bf16.mxu0 0
      %1138 = vmatpush1.bf16.msra.mxu0 0
      %1139 = vmatprep.subr.bf16.mxu0 0
      %1140 = vmatpush1.bf16.msra.mxu0 0
      %1141 = vmatprep.subr.bf16.mxu0 0
      %1142 = vmatpush1.bf16.msra.mxu0 0
      %1143 = vmatprep.subr.bf16.mxu0 0
      %1144 = vmatpush1.bf16.msra.mxu0 0
      %1145 = vmatprep.subr.bf16.mxu0 0
      %1146 = vmatpush1.bf16.msra.mxu0 0
      %1147 = vmatprep.subr.bf16.mxu0 0
      %1148 = vmatpush1.bf16.msra.mxu0 0
      %1149 = vmatprep.subr.bf16.mxu0 0
      %1150 = vmatpush1.bf16.msra.mxu0 0
      %1151 = vmatprep.subr.bf16.mxu0 0
      %1152 = vmatpush1.bf16.msra.mxu0 0
      %1153 = vmatprep.subr.bf16.mxu0 0
      %1154 = vmatpush1.bf16.msra.mxu0 0
      %1155 = vmatprep.subr.bf16.mxu0 0
      %1156 = vmatpush1.bf16.msra.mxu0 0
      %1157 = vmatprep.mubr.bf16.mxu0 0
      %1158 = vmatmul.mubr.bf16.gmra.mrb[0].mxu0 %v1043
      %v1159 = vpop.f32.mrb[0].mxu0
      %v1160 = vadd.f32 0.0, %v1159
      %v1161 = vpop.f32.mrb[0].mxu0
      %v1162 = vpop.f32.mrb[0].mxu0
      %v1163 = vpop.f32.mrb[0].mxu0
      %1164 = vdwg.mxu0
      %v1165 = vpack.c.bf16 %v1080, %v1080
      %v1166 = vpack.c.bf16 %v1120, %v1120
      %v1168 = vsel %vm793, %v1165, 0
      %v1171 = vsel %vm793, %v1166, 0
      %1173 = vmatprep.subr.bf16.mxu0 0
      %1174 = vmatpush1.bf16.xpose.msra.mxu0 %v1171
      %1175 = vmatprep.subr.bf16.mxu0 0
      %1176 = vmatpush1.bf16.xpose.msra.mxu0 0
      %1177 = vmatprep.subr.bf16.mxu0 0
      %1178 = vmatpush1.bf16.xpose.msra.mxu0 0
      %1179 = vmatprep.subr.bf16.mxu0 0
      %1180 = vmatpush1.bf16.xpose.msra.mxu0 0
      %1181 = vmatprep.subr.bf16.mxu0 0
      %1182 = vmatpush1.bf16.xpose.msra.mxu0 0
      %1183 = vmatprep.subr.bf16.mxu0 0
      %1184 = vmatpush1.bf16.xpose.msra.mxu0 0
      %1185 = vmatprep.subr.bf16.mxu0 0
      %1186 = vmatpush1.bf16.xpose.msra.mxu0 0
      %1187 = vmatprep.subr.bf16.mxu0 0
      %1188 = vmatpush1.bf16.xpose.msra.mxu0 0
      %1189 = vmatprep.subr.bf16.mxu0 0
      %1190 = vmatpush1.bf16.xpose.msra.mxu0 0
      %1191 = vmatprep.subr.bf16.mxu0 0
      %1192 = vmatpush1.bf16.xpose.msra.mxu0 0
      %1193 = vmatprep.subr.bf16.mxu0 0
      %1194 = vmatpush1.bf16.xpose.msra.mxu0 0
      %1195 = vmatprep.subr.bf16.mxu0 0
      %1196 = vmatpush1.bf16.xpose.msra.mxu0 0
      %1197 = vmatprep.subr.bf16.mxu0 0
      %1198 = vmatpush1.bf16.xpose.msra.mxu0 0
      %1199 = vmatprep.subr.bf16.mxu0 0
      %1200 = vmatpush1.bf16.xpose.msra.mxu0 0
      %1201 = vmatprep.subr.bf16.mxu0 0
      %1202 = vmatpush1.bf16.xpose.msra.mxu0 0
      %1203 = vmatprep.subr.bf16.mxu0 0
      %1204 = vmatpush1.bf16.xpose.msra.mxu0 0
      %1205 = vmatprep.mubr.bf16.mxu0 0
      %1206 = vmatmul.mubr.bf16.gmra.mrb[0].mxu0 %v1168
      %v1207 = vpop.f32.mrb[0].mxu0
      %v1208 = vadd.f32 0.0, %v1207
      %v1209 = vpop.f32.mrb[0].mxu0
      %v1210 = vpop.f32.mrb[0].mxu0
      %v1211 = vpop.f32.mrb[0].mxu0
      %1212 = vdwg.mxu0
      %v1213 = vsel %vm975, -1e+20, %v1208
      %v1214 = vmul.f32 %v1213, 0.17677669
      %v1215 = vsel %vm793, %v1214, -inf
      %1216 = vmax.xlane.f32.xlu0 %v1215
      %v1217 = vpop.xlane.xlu0 %1216
      %v1218 = vsub.f32 %v1214, %v1217
      %v1219 = vmul.f32 %v1218, 1.442695
      %v1220 = vpow.pop %v1219
      %v1221 = vsel %vm793, %v1220, 0.0
      %1222 = vadd.xlane.f32.xlu0 %v1221
      %v1223 = vpop.xlane.xlu0 %1222
      %v1224 = vrcp.pop %v1223
      %v1225 = vmul.f32 %v1220, %v1224
      %v1226 = vpack.c.bf16 %v1225, %v1225
      %v1227 = vpack.c.bf16 %v1160, %v1160
      %v1229 = vsel %vm793, %v1226, 0
      %v1232 = vsel %vm797, %v1227, 0
      %1234 = vmatprep.subr.bf16.mxu0 0
      %1235 = vmatpush1.bf16.msra.mxu0 %v1232
      %1236 = vmatprep.subr.bf16.mxu0 0
      %1237 = vmatpush1.bf16.msra.mxu0 0
      %1238 = vmatprep.subr.bf16.mxu0 0
      %1239 = vmatpush1.bf16.msra.mxu0 0
      %1240 = vmatprep.subr.bf16.mxu0 0
      %1241 = vmatpush1.bf16.msra.mxu0 0
      %1242 = vmatprep.subr.bf16.mxu0 0
      %1243 = vmatpush1.bf16.msra.mxu0 0
      %1244 = vmatprep.subr.bf16.mxu0 0
      %1245 = vmatpush1.bf16.msra.mxu0 0
      %1246 = vmatprep.subr.bf16.mxu0 0
      %1247 = vmatpush1.bf16.msra.mxu0 0
      %1248 = vmatprep.subr.bf16.mxu0 0
      %1249 = vmatpush1.bf16.msra.mxu0 0
      %1250 = vmatprep.subr.bf16.mxu0 0
      %1251 = vmatpush1.bf16.msra.mxu0 0
      %1252 = vmatprep.subr.bf16.mxu0 0
      %1253 = vmatpush1.bf16.msra.mxu0 0
      %1254 = vmatprep.subr.bf16.mxu0 0
      %1255 = vmatpush1.bf16.msra.mxu0 0
      %1256 = vmatprep.subr.bf16.mxu0 0
      %1257 = vmatpush1.bf16.msra.mxu0 0
      %1258 = vmatprep.subr.bf16.mxu0 0
      %1259 = vmatpush1.bf16.msra.mxu0 0
      %1260 = vmatprep.subr.bf16.mxu0 0
      %1261 = vmatpush1.bf16.msra.mxu0 0
      %1262 = vmatprep.subr.bf16.mxu0 0
      %1263 = vmatpush1.bf16.msra.mxu0 0
      %1264 = vmatprep.subr.bf16.mxu0 0
      %1265 = vmatpush1.bf16.msra.mxu0 0
      %1266 = vmatprep.mubr.bf16.mxu0 0
      %1267 = vmatmul.mubr.bf16.gmra.mrb[0].mxu0 %v1229
      %v1268 = vpop.f32.mrb[0].mxu0
      %v1269 = vadd.f32 0.0, %v1268
      %v1270 = vpop.f32.mrb[0].mxu0
      %v1271 = vpop.f32.mrb[0].mxu0
      %v1272 = vpop.f32.mrb[0].mxu0
      %1273 = vdwg.mxu0
      %v1274 = vpack.c.bf16 %v1269, %v1269
      %v1275 = vld [vmem:[%s7 + $0x4] sm:$0xf]
      %v1277 = vsel %vm793, %v1274, 0
      %v1280 = vsel %vm797, %v1275, 0
      %1282 = vmatprep.subr.bf16.mxu0 0
      %1283 = vmatpush1.bf16.msra.mxu0 %v1280
      %1284 = vmatprep.subr.bf16.mxu0 0
      %1285 = vmatpush1.bf16.msra.mxu0 0
      %1286 = vmatprep.subr.bf16.mxu0 0
      %1287 = vmatpush1.bf16.msra.mxu0 0
      %1288 = vmatprep.subr.bf16.mxu0 0
      %1289 = vmatpush1.bf16.msra.mxu0 0
      %1290 = vmatprep.subr.bf16.mxu0 0
      %1291 = vmatpush1.bf16.msra.mxu0 0
      %1292 = vmatprep.subr.bf16.mxu0 0
      %1293 = vmatpush1.bf16.msra.mxu0 0
      %1294 = vmatprep.subr.bf16.mxu0 0
      %1295 = vmatpush1.bf16.msra.mxu0 0
      %1296 = vmatprep.subr.bf16.mxu0 0
      %1297 = vmatpush1.bf16.msra.mxu0 0
      %1298 = vmatprep.subr.bf16.mxu0 0
      %1299 = vmatpush1.bf16.msra.mxu0 0
      %1300 = vmatprep.subr.bf16.mxu0 0
      %1301 = vmatpush1.bf16.msra.mxu0 0
      %1302 = vmatprep.subr.bf16.mxu0 0
      %1303 = vmatpush1.bf16.msra.mxu0 0
      %1304 = vmatprep.subr.bf16.mxu0 0
      %1305 = vmatpush1.bf16.msra.mxu0 0
      %1306 = vmatprep.subr.bf16.mxu0 0
      %1307 = vmatpush1.bf16.msra.mxu0 0
      %1308 = vmatprep.subr.bf16.mxu0 0
      %1309 = vmatpush1.bf16.msra.mxu0 0
      %1310 = vmatprep.subr.bf16.mxu0 0
      %1311 = vmatpush1.bf16.msra.mxu0 0
      %1312 = vmatprep.subr.bf16.mxu0 0
      %1313 = vmatpush1.bf16.msra.mxu0 0
      %1314 = vmatprep.mubr.bf16.mxu0 0
      %1315 = vmatmul.mubr.bf16.gmra.mrb[0].mxu0 %v1277
      %v1316 = vpop.f32.mrb[0].mxu0
      %v1317 = vadd.f32 0.0, %v1316
      %v1318 = vpop.f32.mrb[0].mxu0
      %v1319 = vpop.f32.mrb[0].mxu0
      %v1320 = vpop.f32.mrb[0].mxu0
      %1321 = vdwg.mxu0
      %v1323 = vsel %vm793, %v1037, 0
      %v1326 = vsel %vm797, %v1038, 0
      %1328 = vmatprep.subr.bf16.mxu0 0
      %1329 = vmatpush1.bf16.msra.mxu0 %v1326
      %1330 = vmatprep.subr.bf16.mxu0 0
      %1331 = vmatpush1.bf16.msra.mxu0 0
      %1332 = vmatprep.subr.bf16.mxu0 0
      %1333 = vmatpush1.bf16.msra.mxu0 0
      %1334 = vmatprep.subr.bf16.mxu0 0
      %1335 = vmatpush1.bf16.msra.mxu0 0
      %1336 = vmatprep.subr.bf16.mxu0 0
      %1337 = vmatpush1.bf16.msra.mxu0 0
      %1338 = vmatprep.subr.bf16.mxu0 0
      %1339 = vmatpush1.bf16.msra.mxu0 0
      %1340 = vmatprep.subr.bf16.mxu0 0
      %1341 = vmatpush1.bf16.msra.mxu0 0
      %1342 = vmatprep.subr.bf16.mxu0 0
      %1343 = vmatpush1.bf16.msra.mxu0 0
      %1344 = vmatprep.subr.bf16.mxu0 0
      %1345 = vmatpush1.bf16.msra.mxu0 0
      %1346 = vmatprep.subr.bf16.mxu0 0
      %1347 = vmatpush1.bf16.msra.mxu0 0
      %1348 = vmatprep.subr.bf16.mxu0 0
      %1349 = vmatpush1.bf16.msra.mxu0 0
      %1350 = vmatprep.subr.bf16.mxu0 0
      %1351 = vmatpush1.bf16.msra.mxu0 0
      %1352 = vmatprep.subr.bf16.mxu0 0
      %1353 = vmatpush1.bf16.msra.mxu0 0
      %1354 = vmatprep.subr.bf16.mxu0 0
      %1355 = vmatpush1.bf16.msra.mxu0 0
      %1356 = vmatprep.subr.bf16.mxu0 0
      %1357 = vmatpush1.bf16.msra.mxu0 0
      %1358 = vmatprep.subr.bf16.mxu0 0
      %1359 = vmatpush1.bf16.msra.mxu0 0
      %1360 = vmatprep.mubr.bf16.mxu0 0
      %1361 = vmatmul.mubr.bf16.gmra.mrb[0].mxu0 %v1323
      %v1362 = vpop.f32.mrb[0].mxu0
      %v1363 = vadd.f32 %v1317, %v1362
      %v1364 = vpop.f32.mrb[0].mxu0
      %v1365 = vpop.f32.mrb[0].mxu0
      %v1366 = vpop.f32.mrb[0].mxu0
      %1367 = vdwg.mxu0
      %1368 = vrot.lane.b32.xlu0 %v792, 112
      %v1369 = vpop.permute.xlu0 %1368
      %v1371 = vsel %vm793, %v1369, 0
      %1373 = vmatprep.subr.bf16.mxu0 0
      %1374 = vmatpush1.bf16.msra.mxu0 %v799
      %1375 = vmatprep.subr.bf16.mxu0 0
      %1376 = vmatpush1.bf16.msra.mxu0 0
      %1377 = vmatprep.subr.bf16.mxu0 0
      %1378 = vmatpush1.bf16.msra.mxu0 0
      %1379 = vmatprep.subr.bf16.mxu0 0
      %1380 = vmatpush1.bf16.msra.mxu0 0
      %1381 = vmatprep.subr.bf16.mxu0 0
      %1382 = vmatpush1.bf16.msra.mxu0 0
      %1383 = vmatprep.subr.bf16.mxu0 0
      %1384 = vmatpush1.bf16.msra.mxu0 0
      %1385 = vmatprep.subr.bf16.mxu0 0
      %1386 = vmatpush1.bf16.msra.mxu0 0
      %1387 = vmatprep.subr.bf16.mxu0 0
      %1388 = vmatpush1.bf16.msra.mxu0 0
      %1389 = vmatprep.subr.bf16.mxu0 0
      %1390 = vmatpush1.bf16.msra.mxu0 0
      %1391 = vmatprep.subr.bf16.mxu0 0
      %1392 = vmatpush1.bf16.msra.mxu0 0
      %1393 = vmatprep.subr.bf16.mxu0 0
      %1394 = vmatpush1.bf16.msra.mxu0 0
      %1395 = vmatprep.subr.bf16.mxu0 0
      %1396 = vmatpush1.bf16.msra.mxu0 0
      %1397 = vmatprep.subr.bf16.mxu0 0
      %1398 = vmatpush1.bf16.msra.mxu0 0
      %1399 = vmatprep.subr.bf16.mxu0 0
      %1400 = vmatpush1.bf16.msra.mxu0 0
      %1401 = vmatprep.subr.bf16.mxu0 0
      %1402 = vmatpush1.bf16.msra.mxu0 0
      %1403 = vmatprep.subr.bf16.mxu0 0
      %1404 = vmatpush1.bf16.msra.mxu0 0
      %1405 = vmatprep.mubr.bf16.mxu0 0
      %1406 = vmatmul.mubr.bf16.gmra.mrb[0].mxu0 %v1371
      %v1407 = vpop.f32.mrb[0].mxu0
      %v1408 = vadd.f32 0.0, %v1407
      %v1409 = vpop.f32.mrb[0].mxu0
      %v1410 = vpop.f32.mrb[0].mxu0
      %v1411 = vpop.f32.mrb[0].mxu0
      %1412 = vdwg.mxu0
      %1413 = vmatprep.subr.bf16.mxu0 0
      %1414 = vmatpush1.bf16.msra.mxu0 %v842
      %1415 = vmatprep.subr.bf16.mxu0 0
      %1416 = vmatpush1.bf16.msra.mxu0 0
      %1417 = vmatprep.subr.bf16.mxu0 0
      %1418 = vmatpush1.bf16.msra.mxu0 0
      %1419 = vmatprep.subr.bf16.mxu0 0
      %1420 = vmatpush1.bf16.msra.mxu0 0
      %1421 = vmatprep.subr.bf16.mxu0 0
      %1422 = vmatpush1.bf16.msra.mxu0 0
      %1423 = vmatprep.subr.bf16.mxu0 0
      %1424 = vmatpush1.bf16.msra.mxu0 0
      %1425 = vmatprep.subr.bf16.mxu0 0
      %1426 = vmatpush1.bf16.msra.mxu0 0
      %1427 = vmatprep.subr.bf16.mxu0 0
      %1428 = vmatpush1.bf16.msra.mxu0 0
      %1429 = vmatprep.subr.bf16.mxu0 0
      %1430 = vmatpush1.bf16.msra.mxu0 0
      %1431 = vmatprep.subr.bf16.mxu0 0
      %1432 = vmatpush1.bf16.msra.mxu0 0
      %1433 = vmatprep.subr.bf16.mxu0 0
      %1434 = vmatpush1.bf16.msra.mxu0 0
      %1435 = vmatprep.subr.bf16.mxu0 0
      %1436 = vmatpush1.bf16.msra.mxu0 0
      %1437 = vmatprep.subr.bf16.mxu0 0
      %1438 = vmatpush1.bf16.msra.mxu0 0
      %1439 = vmatprep.subr.bf16.mxu0 0
      %1440 = vmatpush1.bf16.msra.mxu0 0
      %1441 = vmatprep.subr.bf16.mxu0 0
      %1442 = vmatpush1.bf16.msra.mxu0 0
      %1443 = vmatprep.subr.bf16.mxu0 0
      %1444 = vmatpush1.bf16.msra.mxu0 0
      %1445 = vmatprep.mubr.bf16.mxu0 0
      %1446 = vmatmul.mubr.bf16.gmra.mrb[0].mxu0 %v1371
      %v1447 = vpop.f32.mrb[0].mxu0
      %v1448 = vadd.f32 0.0, %v1447
      %v1449 = vpop.f32.mrb[0].mxu0
      %v1450 = vpop.f32.mrb[0].mxu0
      %v1451 = vpop.f32.mrb[0].mxu0
      %1452 = vdwg.mxu0
      %1453 = vmatprep.subr.bf16.mxu0 0
      %1454 = vmatpush1.bf16.msra.mxu0 %v885
      %1455 = vmatprep.subr.bf16.mxu0 0
      %1456 = vmatpush1.bf16.msra.mxu0 0
      %1457 = vmatprep.subr.bf16.mxu0 0
      %1458 = vmatpush1.bf16.msra.mxu0 0
      %1459 = vmatprep.subr.bf16.mxu0 0
      %1460 = vmatpush1.bf16.msra.mxu0 0
      %1461 = vmatprep.subr.bf16.mxu0 0
      %1462 = vmatpush1.bf16.msra.mxu0 0
      %1463 = vmatprep.subr.bf16.mxu0 0
      %1464 = vmatpush1.bf16.msra.mxu0 0
      %1465 = vmatprep.subr.bf16.mxu0 0
      %1466 = vmatpush1.bf16.msra.mxu0 0
      %1467 = vmatprep.subr.bf16.mxu0 0
      %1468 = vmatpush1.bf16.msra.mxu0 0
      %1469 = vmatprep.subr.bf16.mxu0 0
      %1470 = vmatpush1.bf16.msra.mxu0 0
      %1471 = vmatprep.subr.bf16.mxu0 0
      %1472 = vmatpush1.bf16.msra.mxu0 0
      %1473 = vmatprep.subr.bf16.mxu0 0
      %1474 = vmatpush1.bf16.msra.mxu0 0
      %1475 = vmatprep.subr.bf16.mxu0 0
      %1476 = vmatpush1.bf16.msra.mxu0 0
      %1477 = vmatprep.subr.bf16.mxu0 0
      %1478 = vmatpush1.bf16.msra.mxu0 0
      %1479 = vmatprep.subr.bf16.mxu0 0
      %1480 = vmatpush1.bf16.msra.mxu0 0
      %1481 = vmatprep.subr.bf16.mxu0 0
      %1482 = vmatpush1.bf16.msra.mxu0 0
      %1483 = vmatprep.subr.bf16.mxu0 0
      %1484 = vmatpush1.bf16.msra.mxu0 0
      %1485 = vmatprep.mubr.bf16.mxu0 0
      %1486 = vmatmul.mubr.bf16.gmra.mrb[0].mxu0 %v1371
      %v1487 = vpop.f32.mrb[0].mxu0
      %v1488 = vadd.f32 0.0, %v1487
      %v1489 = vpop.f32.mrb[0].mxu0
      %v1490 = vpop.f32.mrb[0].mxu0
      %v1491 = vpop.f32.mrb[0].mxu0
      %1492 = vdwg.mxu0
      %v1493 = vpack.c.bf16 %v1408, %v1408
      %v1494 = vpack.c.bf16 %v1448, %v1448
      %v1496 = vsel %vm793, %v1493, 0
      %v1499 = vsel %vm793, %v1494, 0
      %1501 = vmatprep.subr.bf16.mxu0 0
      %1502 = vmatpush1.bf16.xpose.msra.mxu0 %v1499
      %1503 = vmatprep.subr.bf16.mxu0 0
      %1504 = vmatpush1.bf16.xpose.msra.mxu0 0
      %1505 = vmatprep.subr.bf16.mxu0 0
      %1506 = vmatpush1.bf16.xpose.msra.mxu0 0
      %1507 = vmatprep.subr.bf16.mxu0 0
      %1508 = vmatpush1.bf16.xpose.msra.mxu0 0
      %1509 = vmatprep.subr.bf16.mxu0 0
      %1510 = vmatpush1.bf16.xpose.msra.mxu0 0
      %1511 = vmatprep.subr.bf16.mxu0 0
      %1512 = vmatpush1.bf16.xpose.msra.mxu0 0
      %1513 = vmatprep.subr.bf16.mxu0 0
      %1514 = vmatpush1.bf16.xpose.msra.mxu0 0
      %1515 = vmatprep.subr.bf16.mxu0 0
      %1516 = vmatpush1.bf16.xpose.msra.mxu0 0
      %1517 = vmatprep.subr.bf16.mxu0 0
      %1518 = vmatpush1.bf16.xpose.msra.mxu0 0
      %1519 = vmatprep.subr.bf16.mxu0 0
      %1520 = vmatpush1.bf16.xpose.msra.mxu0 0
      %1521 = vmatprep.subr.bf16.mxu0 0
      %1522 = vmatpush1.bf16.xpose.msra.mxu0 0
      %1523 = vmatprep.subr.bf16.mxu0 0
      %1524 = vmatpush1.bf16.xpose.msra.mxu0 0
      %1525 = vmatprep.subr.bf16.mxu0 0
      %1526 = vmatpush1.bf16.xpose.msra.mxu0 0
      %1527 = vmatprep.subr.bf16.mxu0 0
      %1528 = vmatpush1.bf16.xpose.msra.mxu0 0
      %1529 = vmatprep.subr.bf16.mxu0 0
      %1530 = vmatpush1.bf16.xpose.msra.mxu0 0
      %1531 = vmatprep.subr.bf16.mxu0 0
      %1532 = vmatpush1.bf16.xpose.msra.mxu0 0
      %1533 = vmatprep.mubr.bf16.mxu0 0
      %1534 = vmatmul.mubr.bf16.gmra.mrb[0].mxu0 %v1496
      %v1535 = vpop.f32.mrb[0].mxu0
      %v1536 = vadd.f32 0.0, %v1535
      %v1537 = vpop.f32.mrb[0].mxu0
      %v1538 = vpop.f32.mrb[0].mxu0
      %v1539 = vpop.f32.mrb[0].mxu0
      %1540 = vdwg.mxu0
      %v1541 = vsel %vm975, -1e+20, %v1536
      %v1542 = vmul.f32 %v1541, 0.17677669
      %v1543 = vsel %vm793, %v1542, -inf
      %1544 = vmax.xlane.f32.xlu0 %v1543
      %v1545 = vpop.xlane.xlu0 %1544
      %v1546 = vsub.f32 %v1542, %v1545
      %v1547 = vmul.f32 %v1546, 1.442695
      %v1548 = vpow.pop %v1547
      %v1549 = vsel %vm793, %v1548, 0.0
      %1550 = vadd.xlane.f32.xlu0 %v1549
      %v1551 = vpop.xlane.xlu0 %1550
      %v1552 = vrcp.pop %v1551
      %v1553 = vmul.f32 %v1548, %v1552
      %v1554 = vpack.c.bf16 %v1553, %v1553
      %v1555 = vpack.c.bf16 %v1488, %v1488
      %v1557 = vsel %vm793, %v1554, 0
      %v1560 = vsel %vm797, %v1555, 0
      %1562 = vmatprep.subr.bf16.mxu0 0
      %1563 = vmatpush1.bf16.msra.mxu0 %v1560
      %1564 = vmatprep.subr.bf16.mxu0 0
      %1565 = vmatpush1.bf16.msra.mxu0 0
      %1566 = vmatprep.subr.bf16.mxu0 0
      %1567 = vmatpush1.bf16.msra.mxu0 0
      %1568 = vmatprep.subr.bf16.mxu0 0
      %1569 = vmatpush1.bf16.msra.mxu0 0
      %1570 = vmatprep.subr.bf16.mxu0 0
      %1571 = vmatpush1.bf16.msra.mxu0 0
      %1572 = vmatprep.subr.bf16.mxu0 0
      %1573 = vmatpush1.bf16.msra.mxu0 0
      %1574 = vmatprep.subr.bf16.mxu0 0
      %1575 = vmatpush1.bf16.msra.mxu0 0
      %1576 = vmatprep.subr.bf16.mxu0 0
      %1577 = vmatpush1.bf16.msra.mxu0 0
      %1578 = vmatprep.subr.bf16.mxu0 0
      %1579 = vmatpush1.bf16.msra.mxu0 0
      %1580 = vmatprep.subr.bf16.mxu0 0
      %1581 = vmatpush1.bf16.msra.mxu0 0
      %1582 = vmatprep.subr.bf16.mxu0 0
      %1583 = vmatpush1.bf16.msra.mxu0 0
      %1584 = vmatprep.subr.bf16.mxu0 0
      %1585 = vmatpush1.bf16.msra.mxu0 0
      %1586 = vmatprep.subr.bf16.mxu0 0
      %1587 = vmatpush1.bf16.msra.mxu0 0
      %1588 = vmatprep.subr.bf16.mxu0 0
      %1589 = vmatpush1.bf16.msra.mxu0 0
      %1590 = vmatprep.subr.bf16.mxu0 0
      %1591 = vmatpush1.bf16.msra.mxu0 0
      %1592 = vmatprep.subr.bf16.mxu0 0
      %1593 = vmatpush1.bf16.msra.mxu0 0
      %1594 = vmatprep.mubr.bf16.mxu0 0
      %1595 = vmatmul.mubr.bf16.gmra.mrb[0].mxu0 %v1557
      %v1596 = vpop.f32.mrb[0].mxu0
      %v1597 = vadd.f32 0.0, %v1596
      %v1598 = vpop.f32.mrb[0].mxu0
      %v1599 = vpop.f32.mrb[0].mxu0
      %v1600 = vpop.f32.mrb[0].mxu0
      %1601 = vdwg.mxu0
      %v1602 = vpack.c.bf16 %v1597, %v1597
      %v1603 = vld [vmem:[%s7 + $0x8] sm:$0xf]
      %v1605 = vsel %vm793, %v1602, 0
      %v1608 = vsel %vm797, %v1603, 0
      %1610 = vmatprep.subr.bf16.mxu0 0
      %1611 = vmatpush1.bf16.msra.mxu0 %v1608
      %1612 = vmatprep.subr.bf16.mxu0 0
      %1613 = vmatpush1.bf16.msra.mxu0 0
      %1614 = vmatprep.subr.bf16.mxu0 0
      %1615 = vmatpush1.bf16.msra.mxu0 0
      %1616 = vmatprep.subr.bf16.mxu0 0
      %1617 = vmatpush1.bf16.msra.mxu0 0
      %1618 = vmatprep.subr.bf16.mxu0 0
      %1619 = vmatpush1.bf16.msra.mxu0 0
      %1620 = vmatprep.subr.bf16.mxu0 0
      %1621 = vmatpush1.bf16.msra.mxu0 0
      %1622 = vmatprep.subr.bf16.mxu0 0
      %1623 = vmatpush1.bf16.msra.mxu0 0
      %1624 = vmatprep.subr.bf16.mxu0 0
      %1625 = vmatpush1.bf16.msra.mxu0 0
      %1626 = vmatprep.subr.bf16.mxu0 0
      %1627 = vmatpush1.bf16.msra.mxu0 0
      %1628 = vmatprep.subr.bf16.mxu0 0
      %1629 = vmatpush1.bf16.msra.mxu0 0
      %1630 = vmatprep.subr.bf16.mxu0 0
      %1631 = vmatpush1.bf16.msra.mxu0 0
      %1632 = vmatprep.subr.bf16.mxu0 0
      %1633 = vmatpush1.bf16.msra.mxu0 0
      %1634 = vmatprep.subr.bf16.mxu0 0
      %1635 = vmatpush1.bf16.msra.mxu0 0
      %1636 = vmatprep.subr.bf16.mxu0 0
      %1637 = vmatpush1.bf16.msra.mxu0 0
      %1638 = vmatprep.subr.bf16.mxu0 0
      %1639 = vmatpush1.bf16.msra.mxu0 0
      %1640 = vmatprep.subr.bf16.mxu0 0
      %1641 = vmatpush1.bf16.msra.mxu0 0
      %1642 = vmatprep.mubr.bf16.mxu0 0
      %1643 = vmatmul.mubr.bf16.gmra.mrb[0].mxu0 %v1605
      %v1644 = vpop.f32.mrb[0].mxu0
      %v1645 = vadd.f32 0.0, %v1644
      %v1646 = vpop.f32.mrb[0].mxu0
      %v1647 = vpop.f32.mrb[0].mxu0
      %v1648 = vpop.f32.mrb[0].mxu0
      %1649 = vdwg.mxu0
      %v1650 = vadd.f32 %v1363, %v1645
      %1651 = vrot.lane.b32.xlu0 %v792, 104
      %v1652 = vpop.permute.xlu0 %1651
      %v1654 = vsel %vm793, %v1652, 0
      %1656 = vmatprep.subr.bf16.mxu0 0
      %1657 = vmatpush1.bf16.msra.mxu0 %v799
      %1658 = vmatprep.subr.bf16.mxu0 0
      %1659 = vmatpush1.bf16.msra.mxu0 0
      %1660 = vmatprep.subr.bf16.mxu0 0
      %1661 = vmatpush1.bf16.msra.mxu0 0
      %1662 = vmatprep.subr.bf16.mxu0 0
      %1663 = vmatpush1.bf16.msra.mxu0 0
      %1664 = vmatprep.subr.bf16.mxu0 0
      %1665 = vmatpush1.bf16.msra.mxu0 0
      %1666 = vmatprep.subr.bf16.mxu0 0
      %1667 = vmatpush1.bf16.msra.mxu0 0
      %1668 = vmatprep.subr.bf16.mxu0 0
      %1669 = vmatpush1.bf16.msra.mxu0 0
      %1670 = vmatprep.subr.bf16.mxu0 0
      %1671 = vmatpush1.bf16.msra.mxu0 0
      %1672 = vmatprep.subr.bf16.mxu0 0
      %1673 = vmatpush1.bf16.msra.mxu0 0
      %1674 = vmatprep.subr.bf16.mxu0 0
      %1675 = vmatpush1.bf16.msra.mxu0 0
      %1676 = vmatprep.subr.bf16.mxu0 0
      %1677 = vmatpush1.bf16.msra.mxu0 0
      %1678 = vmatprep.subr.bf16.mxu0 0
      %1679 = vmatpush1.bf16.msra.mxu0 0
      %1680 = vmatprep.subr.bf16.mxu0 0
      %1681 = vmatpush1.bf16.msra.mxu0 0
      %1682 = vmatprep.subr.bf16.mxu0 0
      %1683 = vmatpush1.bf16.msra.mxu0 0
      %1684 = vmatprep.subr.bf16.mxu0 0
      %1685 = vmatpush1.bf16.msra.mxu0 0
      %1686 = vmatprep.subr.bf16.mxu0 0
      %1687 = vmatpush1.bf16.msra.mxu0 0
      %1688 = vmatprep.mubr.bf16.mxu0 0
      %1689 = vmatmul.mubr.bf16.gmra.mrb[0].mxu0 %v1654
      %v1690 = vpop.f32.mrb[0].mxu0
      %v1691 = vadd.f32 0.0, %v1690
      %v1692 = vpop.f32.mrb[0].mxu0
      %v1693 = vpop.f32.mrb[0].mxu0
      %v1694 = vpop.f32.mrb[0].mxu0
      %1695 = vdwg.mxu0
      %1696 = vmatprep.subr.bf16.mxu0 0
      %1697 = vmatpush1.bf16.msra.mxu0 %v842
      %1698 = vmatprep.subr.bf16.mxu0 0
      %1699 = vmatpush1.bf16.msra.mxu0 0
      %1700 = vmatprep.subr.bf16.mxu0 0
      %1701 = vmatpush1.bf16.msra.mxu0 0
      %1702 = vmatprep.subr.bf16.mxu0 0
      %1703 = vmatpush1.bf16.msra.mxu0 0
      %1704 = vmatprep.subr.bf16.mxu0 0
      %1705 = vmatpush1.bf16.msra.mxu0 0
      %1706 = vmatprep.subr.bf16.mxu0 0
      %1707 = vmatpush1.bf16.msra.mxu0 0
      %1708 = vmatprep.subr.bf16.mxu0 0
      %1709 = vmatpush1.bf16.msra.mxu0 0
      %1710 = vmatprep.subr.bf16.mxu0 0
      %1711 = vmatpush1.bf16.msra.mxu0 0
      %1712 = vmatprep.subr.bf16.mxu0 0
      %1713 = vmatpush1.bf16.msra.mxu0 0
      %1714 = vmatprep.subr.bf16.mxu0 0
      %1715 = vmatpush1.bf16.msra.mxu0 0
      %1716 = vmatprep.subr.bf16.mxu0 0
      %1717 = vmatpush1.bf16.msra.mxu0 0
      %1718 = vmatprep.subr.bf16.mxu0 0
      %1719 = vmatpush1.bf16.msra.mxu0 0
      %1720 = vmatprep.subr.bf16.mxu0 0
      %1721 = vmatpush1.bf16.msra.mxu0 0
      %1722 = vmatprep.subr.bf16.mxu0 0
      %1723 = vmatpush1.bf16.msra.mxu0 0
      %1724 = vmatprep.subr.bf16.mxu0 0
      %1725 = vmatpush1.bf16.msra.mxu0 0
      %1726 = vmatprep.subr.bf16.mxu0 0
      %1727 = vmatpush1.bf16.msra.mxu0 0
      %1728 = vmatprep.mubr.bf16.mxu0 0
      %1729 = vmatmul.mubr.bf16.gmra.mrb[0].mxu0 %v1654
      %v1730 = vpop.f32.mrb[0].mxu0
      %v1731 = vadd.f32 0.0, %v1730
      %v1732 = vpop.f32.mrb[0].mxu0
      %v1733 = vpop.f32.mrb[0].mxu0
      %v1734 = vpop.f32.mrb[0].mxu0
      %1735 = vdwg.mxu0
      %1736 = vmatprep.subr.bf16.mxu0 0
      %1737 = vmatpush1.bf16.msra.mxu0 %v885
      %1738 = vmatprep.subr.bf16.mxu0 0
      %1739 = vmatpush1.bf16.msra.mxu0 0
      %1740 = vmatprep.subr.bf16.mxu0 0
      %1741 = vmatpush1.bf16.msra.mxu0 0
      %1742 = vmatprep.subr.bf16.mxu0 0
      %1743 = vmatpush1.bf16.msra.mxu0 0
      %1744 = vmatprep.subr.bf16.mxu0 0
      %1745 = vmatpush1.bf16.msra.mxu0 0
      %1746 = vmatprep.subr.bf16.mxu0 0
      %1747 = vmatpush1.bf16.msra.mxu0 0
      %1748 = vmatprep.subr.bf16.mxu0 0
      %1749 = vmatpush1.bf16.msra.mxu0 0
      %1750 = vmatprep.subr.bf16.mxu0 0
      %1751 = vmatpush1.bf16.msra.mxu0 0
      %1752 = vmatprep.subr.bf16.mxu0 0
      %1753 = vmatpush1.bf16.msra.mxu0 0
      %1754 = vmatprep.subr.bf16.mxu0 0
      %1755 = vmatpush1.bf16.msra.mxu0 0
      %1756 = vmatprep.subr.bf16.mxu0 0
      %1757 = vmatpush1.bf16.msra.mxu0 0
      %1758 = vmatprep.subr.bf16.mxu0 0
      %1759 = vmatpush1.bf16.msra.mxu0 0
      %1760 = vmatprep.subr.bf16.mxu0 0
      %1761 = vmatpush1.bf16.msra.mxu0 0
      %1762 = vmatprep.subr.bf16.mxu0 0
      %1763 = vmatpush1.bf16.msra.mxu0 0
      %1764 = vmatprep.subr.bf16.mxu0 0
      %1765 = vmatpush1.bf16.msra.mxu0 0
      %1766 = vmatprep.subr.bf16.mxu0 0
      %1767 = vmatpush1.bf16.msra.mxu0 0
      %1768 = vmatprep.mubr.bf16.mxu0 0
      %1769 = vmatmul.mubr.bf16.gmra.mrb[0].mxu0 %v1654
      %v1770 = vpop.f32.mrb[0].mxu0
      %v1771 = vadd.f32 0.0, %v1770
      %v1772 = vpop.f32.mrb[0].mxu0
      %v1773 = vpop.f32.mrb[0].mxu0
      %v1774 = vpop.f32.mrb[0].mxu0
      %1775 = vdwg.mxu0
      %v1776 = vpack.c.bf16 %v1691, %v1691
      %v1777 = vpack.c.bf16 %v1731, %v1731
      %v1779 = vsel %vm793, %v1776, 0
      %v1782 = vsel %vm793, %v1777, 0
      %1784 = vmatprep.subr.bf16.mxu0 0
      %1785 = vmatpush1.bf16.xpose.msra.mxu0 %v1782
      %1786 = vmatprep.subr.bf16.mxu0 0
      %1787 = vmatpush1.bf16.xpose.msra.mxu0 0
      %1788 = vmatprep.subr.bf16.mxu0 0
      %1789 = vmatpush1.bf16.xpose.msra.mxu0 0
      %1790 = vmatprep.subr.bf16.mxu0 0
      %1791 = vmatpush1.bf16.xpose.msra.mxu0 0
      %1792 = vmatprep.subr.bf16.mxu0 0
      %1793 = vmatpush1.bf16.xpose.msra.mxu0 0
      %1794 = vmatprep.subr.bf16.mxu0 0
      %1795 = vmatpush1.bf16.xpose.msra.mxu0 0
      %1796 = vmatprep.subr.bf16.mxu0 0
      %1797 = vmatpush1.bf16.xpose.msra.mxu0 0
      %1798 = vmatprep.subr.bf16.mxu0 0
      %1799 = vmatpush1.bf16.xpose.msra.mxu0 0
      %1800 = vmatprep.subr.bf16.mxu0 0
      %1801 = vmatpush1.bf16.xpose.msra.mxu0 0
      %1802 = vmatprep.subr.bf16.mxu0 0
      %1803 = vmatpush1.bf16.xpose.msra.mxu0 0
      %1804 = vmatprep.subr.bf16.mxu0 0
      %1805 = vmatpush1.bf16.xpose.msra.mxu0 0
      %1806 = vmatprep.subr.bf16.mxu0 0
      %1807 = vmatpush1.bf16.xpose.msra.mxu0 0
      %1808 = vmatprep.subr.bf16.mxu0 0
      %1809 = vmatpush1.bf16.xpose.msra.mxu0 0
      %1810 = vmatprep.subr.bf16.mxu0 0
      %1811 = vmatpush1.bf16.xpose.msra.mxu0 0
      %1812 = vmatprep.subr.bf16.mxu0 0
      %1813 = vmatpush1.bf16.xpose.msra.mxu0 0
      %1814 = vmatprep.subr.bf16.mxu0 0
      %1815 = vmatpush1.bf16.xpose.msra.mxu0 0
      %1816 = vmatprep.mubr.bf16.mxu0 0
      %1817 = vmatmul.mubr.bf16.gmra.mrb[0].mxu0 %v1779
      %v1818 = vpop.f32.mrb[0].mxu0
      %v1819 = vadd.f32 0.0, %v1818
      %v1820 = vpop.f32.mrb[0].mxu0
      %v1821 = vpop.f32.mrb[0].mxu0
      %v1822 = vpop.f32.mrb[0].mxu0
      %1823 = vdwg.mxu0
      %v1824 = vsel %vm975, -1e+20, %v1819
      %v1825 = vmul.f32 %v1824, 0.17677669
      %v1826 = vsel %vm793, %v1825, -inf
      %1827 = vmax.xlane.f32.xlu0 %v1826
      %v1828 = vpop.xlane.xlu0 %1827
      %v1829 = vsub.f32 %v1825, %v1828
      %v1830 = vmul.f32 %v1829, 1.442695
      %v1831 = vpow.pop %v1830
      %v1832 = vsel %vm793, %v1831, 0.0
      %1833 = vadd.xlane.f32.xlu0 %v1832
      %v1834 = vpop.xlane.xlu0 %1833
      %v1835 = vrcp.pop %v1834
      %v1836 = vmul.f32 %v1831, %v1835
      %v1837 = vpack.c.bf16 %v1836, %v1836
      %v1838 = vpack.c.bf16 %v1771, %v1771
      %v1840 = vsel %vm793, %v1837, 0
      %v1843 = vsel %vm797, %v1838, 0
      %1845 = vmatprep.subr.bf16.mxu0 0
      %1846 = vmatpush1.bf16.msra.mxu0 %v1843
      %1847 = vmatprep.subr.bf16.mxu0 0
      %1848 = vmatpush1.bf16.msra.mxu0 0
      %1849 = vmatprep.subr.bf16.mxu0 0
      %1850 = vmatpush1.bf16.msra.mxu0 0
      %1851 = vmatprep.subr.bf16.mxu0 0
      %1852 = vmatpush1.bf16.msra.mxu0 0
      %1853 = vmatprep.subr.bf16.mxu0 0
      %1854 = vmatpush1.bf16.msra.mxu0 0
      %1855 = vmatprep.subr.bf16.mxu0 0
      %1856 = vmatpush1.bf16.msra.mxu0 0
      %1857 = vmatprep.subr.bf16.mxu0 0
      %1858 = vmatpush1.bf16.msra.mxu0 0
      %1859 = vmatprep.subr.bf16.mxu0 0
      %1860 = vmatpush1.bf16.msra.mxu0 0
      %1861 = vmatprep.subr.bf16.mxu0 0
      %1862 = vmatpush1.bf16.msra.mxu0 0
      %1863 = vmatprep.subr.bf16.mxu0 0
      %1864 = vmatpush1.bf16.msra.mxu0 0
      %1865 = vmatprep.subr.bf16.mxu0 0
      %1866 = vmatpush1.bf16.msra.mxu0 0
      %1867 = vmatprep.subr.bf16.mxu0 0
      %1868 = vmatpush1.bf16.msra.mxu0 0
      %1869 = vmatprep.subr.bf16.mxu0 0
      %1870 = vmatpush1.bf16.msra.mxu0 0
      %1871 = vmatprep.subr.bf16.mxu0 0
      %1872 = vmatpush1.bf16.msra.mxu0 0
      %1873 = vmatprep.subr.bf16.mxu0 0
      %1874 = vmatpush1.bf16.msra.mxu0 0
      %1875 = vmatprep.subr.bf16.mxu0 0
      %1876 = vmatpush1.bf16.msra.mxu0 0
      %1877 = vmatprep.mubr.bf16.mxu0 0
      %1878 = vmatmul.mubr.bf16.gmra.mrb[0].mxu0 %v1840
      %v1879 = vpop.f32.mrb[0].mxu0
      %v1880 = vadd.f32 0.0, %v1879
      %v1881 = vpop.f32.mrb[0].mxu0
      %v1882 = vpop.f32.mrb[0].mxu0
      %v1883 = vpop.f32.mrb[0].mxu0
      %1884 = vdwg.mxu0
      %v1885 = vpack.c.bf16 %v1880, %v1880
      %v1886 = vld [vmem:[%s7 + $0xc] sm:$0xf]
      %v1888 = vsel %vm793, %v1885, 0
      %v1891 = vsel %vm797, %v1886, 0
      %1893 = vmatprep.subr.bf16.mxu0 0
      %1894 = vmatpush1.bf16.msra.mxu0 %v1891
      %1895 = vmatprep.subr.bf16.mxu0 0
      %1896 = vmatpush1.bf16.msra.mxu0 0
      %1897 = vmatprep.subr.bf16.mxu0 0
      %1898 = vmatpush1.bf16.msra.mxu0 0
      %1899 = vmatprep.subr.bf16.mxu0 0
      %1900 = vmatpush1.bf16.msra.mxu0 0
      %1901 = vmatprep.subr.bf16.mxu0 0
      %1902 = vmatpush1.bf16.msra.mxu0 0
      %1903 = vmatprep.subr.bf16.mxu0 0
      %1904 = vmatpush1.bf16.msra.mxu0 0
      %1905 = vmatprep.subr.bf16.mxu0 0
      %1906 = vmatpush1.bf16.msra.mxu0 0
      %1907 = vmatprep.subr.bf16.mxu0 0
      %1908 = vmatpush1.bf16.msra.mxu0 0
      %1909 = vmatprep.subr.bf16.mxu0 0
      %1910 = vmatpush1.bf16.msra.mxu0 0
      %1911 = vmatprep.subr.bf16.mxu0 0
      %1912 = vmatpush1.bf16.msra.mxu0 0
      %1913 = vmatprep.subr.bf16.mxu0 0
      %1914 = vmatpush1.bf16.msra.mxu0 0
      %1915 = vmatprep.subr.bf16.mxu0 0
      %1916 = vmatpush1.bf16.msra.mxu0 0
      %1917 = vmatprep.subr.bf16.mxu0 0
      %1918 = vmatpush1.bf16.msra.mxu0 0
      %1919 = vmatprep.subr.bf16.mxu0 0
      %1920 = vmatpush1.bf16.msra.mxu0 0
      %1921 = vmatprep.subr.bf16.mxu0 0
      %1922 = vmatpush1.bf16.msra.mxu0 0
      %1923 = vmatprep.subr.bf16.mxu0 0
      %1924 = vmatpush1.bf16.msra.mxu0 0
      %1925 = vmatprep.mubr.bf16.mxu0 0
      %1926 = vmatmul.mubr.bf16.gmra.mrb[0].mxu0 %v1888
      %v1927 = vpop.f32.mrb[0].mxu0
      %v1928 = vadd.f32 0.0, %v1927
      %v1929 = vpop.f32.mrb[0].mxu0
      %v1930 = vpop.f32.mrb[0].mxu0
      %v1931 = vpop.f32.mrb[0].mxu0
      %1932 = vdwg.mxu0
      %v1933 = vadd.f32 %v1650, %v1928
      %v1934 = vld [vmem:[%s8] sm:$0x1]
      %v1936 = vlaneseq
      %v1937 = vshrl.u32 %v1936, 7
      %v1938 = vsub.s32 0, %v1937
      %v1939 = vrot.slane %v1934, %v1938
      %v1941 = vadd.f32 %v1933, %v1939
      %v1942 = vadd.f32 %v1941, %v785
      %vm1943 = vcmask 261120
      %v1944 = vsel %vm1943, %v1942, 0.0
      %1945 = vadd.xlane.f32.xlu0 %v1944
      %v1946 = vpop.xlane.xlu0 %1945
      %v1947 = vrcp.pop 32.0
      %v1948 = vmul.f32 %v1946, %v1947
      %v1949 = vsub.f32 %v1942, %v1948
      %v1950 = vmul.f32 %v1949, %v1949
      %v1951 = vsel %vm1943, %v1950, 0.0
      %1952 = vadd.xlane.f32.xlu0 %v1951
      %v1953 = vpop.xlane.xlu0 %1952
      %v1954 = vmul.f32 %v1953, %v1947
      %v1955 = vadd.f32 %v1954, 1e-05
      %v1956 = vrsqrt.pop %v1955
      %v1957 = vmul.f32 %v1949, %v1956
      %v1958 = vld [vmem:[%s9] sm:$0x1]
      %v1960 = vlaneseq
      %v1961 = vshrl.u32 %v1960, 7
      %v1962 = vsub.s32 0, %v1961
      %v1963 = vrot.slane %v1958, %v1962
      %v1965 = vmul.f32 %v1957, %v1963
      %v1966 = vld [vmem:[%s10] sm:$0x1]
      %v1968 = vlaneseq
      %v1969 = vshrl.u32 %v1968, 7
      %v1970 = vsub.s32 0, %v1969
      %v1971 = vrot.slane %v1966, %v1970
      %v1973 = vadd.f32 %v1965, %v1971
      %v1974 = vld [vmem:[%s11] sm:$0xf]
      %v1975 = vld [vmem:[%s12] sm:$0xf]
      %v1976 = vld [vmem:[%s13] sm:$0xf]
      %v1977 = vpack.c.bf16 %v1973, %v1973
      %v1979 = vsel %vm793, %v1977, 0
      %v1982 = vsel %vm797, %v1974, 0
      %1984 = vmatprep.subr.bf16.mxu0 0
      %1985 = vmatpush1.bf16.msra.mxu0 %v1982
      %1986 = vmatprep.subr.bf16.mxu0 0
      %1987 = vmatpush1.bf16.msra.mxu0 0
      %1988 = vmatprep.subr.bf16.mxu0 0
      %1989 = vmatpush1.bf16.msra.mxu0 0
      %1990 = vmatprep.subr.bf16.mxu0 0
      %1991 = vmatpush1.bf16.msra.mxu0 0
      %1992 = vmatprep.subr.bf16.mxu0 0
      %1993 = vmatpush1.bf16.msra.mxu0 0
      %1994 = vmatprep.subr.bf16.mxu0 0
      %1995 = vmatpush1.bf16.msra.mxu0 0
      %1996 = vmatprep.subr.bf16.mxu0 0
      %1997 = vmatpush1.bf16.msra.mxu0 0
      %1998 = vmatprep.subr.bf16.mxu0 0
      %1999 = vmatpush1.bf16.msra.mxu0 0
      %2000 = vmatprep.subr.bf16.mxu0 0
      %2001 = vmatpush1.bf16.msra.mxu0 0
      %2002 = vmatprep.subr.bf16.mxu0 0
      %2003 = vmatpush1.bf16.msra.mxu0 0
      %2004 = vmatprep.subr.bf16.mxu0 0
      %2005 = vmatpush1.bf16.msra.mxu0 0
      %2006 = vmatprep.subr.bf16.mxu0 0
      %2007 = vmatpush1.bf16.msra.mxu0 0
      %2008 = vmatprep.subr.bf16.mxu0 0
      %2009 = vmatpush1.bf16.msra.mxu0 0
      %2010 = vmatprep.subr.bf16.mxu0 0
      %2011 = vmatpush1.bf16.msra.mxu0 0
      %2012 = vmatprep.subr.bf16.mxu0 0
      %2013 = vmatpush1.bf16.msra.mxu0 0
      %2014 = vmatprep.subr.bf16.mxu0 0
      %2015 = vmatpush1.bf16.msra.mxu0 0
      %2016 = vmatprep.mubr.bf16.mxu0 0
      %2017 = vmatmul.mubr.bf16.gmra.mrb[0].mxu0 %v1979
      %v2018 = vpop.f32.mrb[0].mxu0
      %v2019 = vadd.f32 0.0, %v2018
      %v2020 = vpop.f32.mrb[0].mxu0
      %v2021 = vpop.f32.mrb[0].mxu0
      %v2022 = vpop.f32.mrb[0].mxu0
      %2023 = vdwg.mxu0
      %v2024 = vpack.c.bf16 %v786, %v786
      %v2026 = vsel %vm793, %v2024, 0
      %v2029 = vsel %vm797, %v1975, 0
      %2031 = vmatprep.subr.bf16.mxu0 0
      %2032 = vmatpush1.bf16.msra.mxu0 %v2029
      %2033 = vmatprep.subr.bf16.mxu0 0
      %2034 = vmatpush1.bf16.msra.mxu0 0
      %2035 = vmatprep.subr.bf16.mxu0 0
      %2036 = vmatpush1.bf16.msra.mxu0 0
      %2037 = vmatprep.subr.bf16.mxu0 0
      %2038 = vmatpush1.bf16.msra.mxu0 0
      %2039 = vmatprep.subr.bf16.mxu0 0
      %2040 = vmatpush1.bf16.msra.mxu0 0
      %2041 = vmatprep.subr.bf16.mxu0 0
      %2042 = vmatpush1.bf16.msra.mxu0 0
      %2043 = vmatprep.subr.bf16.mxu0 0
      %2044 = vmatpush1.bf16.msra.mxu0 0
      %2045 = vmatprep.subr.bf16.mxu0 0
      %2046 = vmatpush1.bf16.msra.mxu0 0
      %2047 = vmatprep.subr.bf16.mxu0 0
      %2048 = vmatpush1.bf16.msra.mxu0 0
      %2049 = vmatprep.subr.bf16.mxu0 0
      %2050 = vmatpush1.bf16.msra.mxu0 0
      %2051 = vmatprep.subr.bf16.mxu0 0
      %2052 = vmatpush1.bf16.msra.mxu0 0
      %2053 = vmatprep.subr.bf16.mxu0 0
      %2054 = vmatpush1.bf16.msra.mxu0 0
      %2055 = vmatprep.subr.bf16.mxu0 0
      %2056 = vmatpush1.bf16.msra.mxu0 0
      %2057 = vmatprep.subr.bf16.mxu0 0
      %2058 = vmatpush1.bf16.msra.mxu0 0
      %2059 = vmatprep.subr.bf16.mxu0 0
      %2060 = vmatpush1.bf16.msra.mxu0 0
      %2061 = vmatprep.subr.bf16.mxu0 0
      %2062 = vmatpush1.bf16.msra.mxu0 0
      %2063 = vmatprep.mubr.bf16.mxu0 0
      %2064 = vmatmul.mubr.bf16.gmra.mrb[0].mxu0 %v2026
      %v2065 = vpop.f32.mrb[0].mxu0
      %v2066 = vadd.f32 0.0, %v2065
      %v2067 = vpop.f32.mrb[0].mxu0
      %v2068 = vpop.f32.mrb[0].mxu0
      %v2069 = vpop.f32.mrb[0].mxu0
      %2070 = vdwg.mxu0
      %v2072 = vsel %vm797, %v1976, 0
      %2074 = vmatprep.subr.bf16.mxu0 0
      %2075 = vmatpush1.bf16.msra.mxu0 %v2072
      %2076 = vmatprep.subr.bf16.mxu0 0
      %2077 = vmatpush1.bf16.msra.mxu0 0
      %2078 = vmatprep.subr.bf16.mxu0 0
      %2079 = vmatpush1.bf16.msra.mxu0 0
      %2080 = vmatprep.subr.bf16.mxu0 0
      %2081 = vmatpush1.bf16.msra.mxu0 0
      %2082 = vmatprep.subr.bf16.mxu0 0
      %2083 = vmatpush1.bf16.msra.mxu0 0
      %2084 = vmatprep.subr.bf16.mxu0 0
      %2085 = vmatpush1.bf16.msra.mxu0 0
      %2086 = vmatprep.subr.bf16.mxu0 0
      %2087 = vmatpush1.bf16.msra.mxu0 0
      %2088 = vmatprep.subr.bf16.mxu0 0
      %2089 = vmatpush1.bf16.msra.mxu0 0
      %2090 = vmatprep.subr.bf16.mxu0 0
      %2091 = vmatpush1.bf16.msra.mxu0 0
      %2092 = vmatprep.subr.bf16.mxu0 0
      %2093 = vmatpush1.bf16.msra.mxu0 0
      %2094 = vmatprep.subr.bf16.mxu0 0
      %2095 = vmatpush1.bf16.msra.mxu0 0
      %2096 = vmatprep.subr.bf16.mxu0 0
      %2097 = vmatpush1.bf16.msra.mxu0 0
      %2098 = vmatprep.subr.bf16.mxu0 0
      %2099 = vmatpush1.bf16.msra.mxu0 0
      %2100 = vmatprep.subr.bf16.mxu0 0
      %2101 = vmatpush1.bf16.msra.mxu0 0
      %2102 = vmatprep.subr.bf16.mxu0 0
      %2103 = vmatpush1.bf16.msra.mxu0 0
      %2104 = vmatprep.subr.bf16.mxu0 0
      %2105 = vmatpush1.bf16.msra.mxu0 0
      %2106 = vmatprep.mubr.bf16.mxu0 0
      %2107 = vmatmul.mubr.bf16.gmra.mrb[0].mxu0 %v2026
      %v2108 = vpop.f32.mrb[0].mxu0
      %v2109 = vadd.f32 0.0, %v2108
      %v2110 = vpop.f32.mrb[0].mxu0
      %v2111 = vpop.f32.mrb[0].mxu0
      %v2112 = vpop.f32.mrb[0].mxu0
      %2113 = vdwg.mxu0
      %v2114 = vpack.c.bf16 %v2019, %v2019
      %v2115 = vpack.c.bf16 %v2066, %v2066
      %v2117 = vsel %vm793, %v2114, 0
      %v2120 = vsel %vm793, %v2115, 0
      %2122 = vmatprep.subr.bf16.mxu0 0
      %2123 = vmatpush1.bf16.xpose.msra.mxu0 %v2120
      %2124 = vmatprep.subr.bf16.mxu0 0
      %2125 = vmatpush1.bf16.xpose.msra.mxu0 0
      %2126 = vmatprep.subr.bf16.mxu0 0
      %2127 = vmatpush1.bf16.xpose.msra.mxu0 0
      %2128 = vmatprep.subr.bf16.mxu0 0
      %2129 = vmatpush1.bf16.xpose.msra.mxu0 0
      %2130 = vmatprep.subr.bf16.mxu0 0
      %2131 = vmatpush1.bf16.xpose.msra.mxu0 0
      %2132 = vmatprep.subr.bf16.mxu0 0
      %2133 = vmatpush1.bf16.xpose.msra.mxu0 0
      %2134 = vmatprep.subr.bf16.mxu0 0
      %2135 = vmatpush1.bf16.xpose.msra.mxu0 0
      %2136 = vmatprep.subr.bf16.mxu0 0
      %2137 = vmatpush1.bf16.xpose.msra.mxu0 0
      %2138 = vmatprep.subr.bf16.mxu0 0
      %2139 = vmatpush1.bf16.xpose.msra.mxu0 0
      %2140 = vmatprep.subr.bf16.mxu0 0
      %2141 = vmatpush1.bf16.xpose.msra.mxu0 0
      %2142 = vmatprep.subr.bf16.mxu0 0
      %2143 = vmatpush1.bf16.xpose.msra.mxu0 0
      %2144 = vmatprep.subr.bf16.mxu0 0
      %2145 = vmatpush1.bf16.xpose.msra.mxu0 0
      %2146 = vmatprep.subr.bf16.mxu0 0
      %2147 = vmatpush1.bf16.xpose.msra.mxu0 0
      %2148 = vmatprep.subr.bf16.mxu0 0
      %2149 = vmatpush1.bf16.xpose.msra.mxu0 0
      %2150 = vmatprep.subr.bf16.mxu0 0
      %2151 = vmatpush1.bf16.xpose.msra.mxu0 0
      %2152 = vmatprep.subr.bf16.mxu0 0
      %2153 = vmatpush1.bf16.xpose.msra.mxu0 0
      %2154 = vmatprep.mubr.bf16.mxu0 0
      %2155 = vmatmul.mubr.bf16.gmra.mrb[0].mxu0 %v2117
      %v2156 = vpop.f32.mrb[0].mxu0
      %v2157 = vadd.f32 0.0, %v2156
      %v2158 = vpop.f32.mrb[0].mxu0
      %v2159 = vpop.f32.mrb[0].mxu0
      %v2160 = vpop.f32.mrb[0].mxu0
      %2161 = vdwg.mxu0
      %vm2162 = vcmp.eq.f32.partialorder %v788, 0.0
      %v2163 = vsel %vm2162, -1e+20, %v2157
      %v2164 = vmul.f32 %v2163, 0.17677669
      %v2165 = vsel %vm793, %v2164, -inf
      %2166 = vmax.xlane.f32.xlu0 %v2165
      %v2167 = vpop.xlane.xlu0 %2166
      %v2168 = vsub.f32 %v2164, %v2167
      %v2169 = vmul.f32 %v2168, 1.442695
      %v2170 = vpow.pop %v2169
      %v2171 = vsel %vm793, %v2170, 0.0
      %2172 = vadd.xlane.f32.xlu0 %v2171
      %v2173 = vpop.xlane.xlu0 %2172
      %v2174 = vrcp.pop %v2173
      %v2175 = vmul.f32 %v2170, %v2174
      %v2176 = vpack.c.bf16 %v2175, %v2175
      %v2177 = vpack.c.bf16 %v2109, %v2109
      %v2179 = vsel %vm793, %v2176, 0
      %v2182 = vsel %vm797, %v2177, 0
      %2184 = vmatprep.subr.bf16.mxu0 0
      %2185 = vmatpush1.bf16.msra.mxu0 %v2182
      %2186 = vmatprep.subr.bf16.mxu0 0
      %2187 = vmatpush1.bf16.msra.mxu0 0
      %2188 = vmatprep.subr.bf16.mxu0 0
      %2189 = vmatpush1.bf16.msra.mxu0 0
      %2190 = vmatprep.subr.bf16.mxu0 0
      %2191 = vmatpush1.bf16.msra.mxu0 0
      %2192 = vmatprep.subr.bf16.mxu0 0
      %2193 = vmatpush1.bf16.msra.mxu0 0
      %2194 = vmatprep.subr.bf16.mxu0 0
      %2195 = vmatpush1.bf16.msra.mxu0 0
      %2196 = vmatprep.subr.bf16.mxu0 0
      %2197 = vmatpush1.bf16.msra.mxu0 0
      %2198 = vmatprep.subr.bf16.mxu0 0
      %2199 = vmatpush1.bf16.msra.mxu0 0
      %2200 = vmatprep.subr.bf16.mxu0 0
      %2201 = vmatpush1.bf16.msra.mxu0 0
      %2202 = vmatprep.subr.bf16.mxu0 0
      %2203 = vmatpush1.bf16.msra.mxu0 0
      %2204 = vmatprep.subr.bf16.mxu0 0
      %2205 = vmatpush1.bf16.msra.mxu0 0
      %2206 = vmatprep.subr.bf16.mxu0 0
      %2207 = vmatpush1.bf16.msra.mxu0 0
      %2208 = vmatprep.subr.bf16.mxu0 0
      %2209 = vmatpush1.bf16.msra.mxu0 0
      %2210 = vmatprep.subr.bf16.mxu0 0
      %2211 = vmatpush1.bf16.msra.mxu0 0
      %2212 = vmatprep.subr.bf16.mxu0 0
      %2213 = vmatpush1.bf16.msra.mxu0 0
      %2214 = vmatprep.subr.bf16.mxu0 0
      %2215 = vmatpush1.bf16.msra.mxu0 0
      %2216 = vmatprep.mubr.bf16.mxu0 0
      %2217 = vmatmul.mubr.bf16.gmra.mrb[0].mxu0 %v2179
      %v2218 = vpop.f32.mrb[0].mxu0
      %v2219 = vadd.f32 0.0, %v2218
      %v2220 = vpop.f32.mrb[0].mxu0
      %v2221 = vpop.f32.mrb[0].mxu0
      %v2222 = vpop.f32.mrb[0].mxu0
      %2223 = vdwg.mxu0
      %v2224 = vpack.c.bf16 %v2219, %v2219
      %v2225 = vld [vmem:[%s14] sm:$0xf]
      %2227 = vrot.lane.b32.xlu0 %v1977, 120
      %v2228 = vpop.permute.xlu0 %2227
      %v2230 = vsel %vm793, %v2228, 0
      %2232 = vmatprep.subr.bf16.mxu0 0
      %2233 = vmatpush1.bf16.msra.mxu0 %v1982
      %2234 = vmatprep.subr.bf16.mxu0 0
      %2235 = vmatpush1.bf16.msra.mxu0 0
      %2236 = vmatprep.subr.bf16.mxu0 0
      %2237 = vmatpush1.bf16.msra.mxu0 0
      %2238 = vmatprep.subr.bf16.mxu0 0
      %2239 = vmatpush1.bf16.msra.mxu0 0
      %2240 = vmatprep.subr.bf16.mxu0 0
      %2241 = vmatpush1.bf16.msra.mxu0 0
      %2242 = vmatprep.subr.bf16.mxu0 0
      %2243 = vmatpush1.bf16.msra.mxu0 0
      %2244 = vmatprep.subr.bf16.mxu0 0
      %2245 = vmatpush1.bf16.msra.mxu0 0
      %2246 = vmatprep.subr.bf16.mxu0 0
      %2247 = vmatpush1.bf16.msra.mxu0 0
      %2248 = vmatprep.subr.bf16.mxu0 0
      %2249 = vmatpush1.bf16.msra.mxu0 0
      %2250 = vmatprep.subr.bf16.mxu0 0
      %2251 = vmatpush1.bf16.msra.mxu0 0
      %2252 = vmatprep.subr.bf16.mxu0 0
      %2253 = vmatpush1.bf16.msra.mxu0 0
      %2254 = vmatprep.subr.bf16.mxu0 0
      %2255 = vmatpush1.bf16.msra.mxu0 0
      %2256 = vmatprep.subr.bf16.mxu0 0
      %2257 = vmatpush1.bf16.msra.mxu0 0
      %2258 = vmatprep.subr.bf16.mxu0 0
      %2259 = vmatpush1.bf16.msra.mxu0 0
      %2260 = vmatprep.subr.bf16.mxu0 0
      %2261 = vmatpush1.bf16.msra.mxu0 0
      %2262 = vmatprep.subr.bf16.mxu0 0
      %2263 = vmatpush1.bf16.msra.mxu0 0
      %2264 = vmatprep.mubr.bf16.mxu0 0
      %2265 = vmatmul.mubr.bf16.gmra.mrb[0].mxu0 %v2230
      %v2266 = vpop.f32.mrb[0].mxu0
      %v2267 = vadd.f32 0.0, %v2266
      %v2268 = vpop.f32.mrb[0].mxu0
      %v2269 = vpop.f32.mrb[0].mxu0
      %v2270 = vpop.f32.mrb[0].mxu0
      %2271 = vdwg.mxu0
      %2273 = vrot.lane.b32.xlu0 %v2024, 120
      %v2274 = vpop.permute.xlu0 %2273
      %v2276 = vsel %vm793, %v2274, 0
      %2278 = vmatprep.subr.bf16.mxu0 0
      %2279 = vmatpush1.bf16.msra.mxu0 %v2029
      %2280 = vmatprep.subr.bf16.mxu0 0
      %2281 = vmatpush1.bf16.msra.mxu0 0
      %2282 = vmatprep.subr.bf16.mxu0 0
      %2283 = vmatpush1.bf16.msra.mxu0 0
      %2284 = vmatprep.subr.bf16.mxu0 0
      %2285 = vmatpush1.bf16.msra.mxu0 0
      %2286 = vmatprep.subr.bf16.mxu0 0
      %2287 = vmatpush1.bf16.msra.mxu0 0
      %2288 = vmatprep.subr.bf16.mxu0 0
      %2289 = vmatpush1.bf16.msra.mxu0 0
      %2290 = vmatprep.subr.bf16.mxu0 0
      %2291 = vmatpush1.bf16.msra.mxu0 0
      %2292 = vmatprep.subr.bf16.mxu0 0
      %2293 = vmatpush1.bf16.msra.mxu0 0
      %2294 = vmatprep.subr.bf16.mxu0 0
      %2295 = vmatpush1.bf16.msra.mxu0 0
      %2296 = vmatprep.subr.bf16.mxu0 0
      %2297 = vmatpush1.bf16.msra.mxu0 0
      %2298 = vmatprep.subr.bf16.mxu0 0
      %2299 = vmatpush1.bf16.msra.mxu0 0
      %2300 = vmatprep.subr.bf16.mxu0 0
      %2301 = vmatpush1.bf16.msra.mxu0 0
      %2302 = vmatprep.subr.bf16.mxu0 0
      %2303 = vmatpush1.bf16.msra.mxu0 0
      %2304 = vmatprep.subr.bf16.mxu0 0
      %2305 = vmatpush1.bf16.msra.mxu0 0
      %2306 = vmatprep.subr.bf16.mxu0 0
      %2307 = vmatpush1.bf16.msra.mxu0 0
      %2308 = vmatprep.subr.bf16.mxu0 0
      %2309 = vmatpush1.bf16.msra.mxu0 0
      %2310 = vmatprep.mubr.bf16.mxu0 0
      %2311 = vmatmul.mubr.bf16.gmra.mrb[0].mxu0 %v2276
      %v2312 = vpop.f32.mrb[0].mxu0
      %v2313 = vadd.f32 0.0, %v2312
      %v2314 = vpop.f32.mrb[0].mxu0
      %v2315 = vpop.f32.mrb[0].mxu0
      %v2316 = vpop.f32.mrb[0].mxu0
      %2317 = vdwg.mxu0
      %2318 = vmatprep.subr.bf16.mxu0 0
      %2319 = vmatpush1.bf16.msra.mxu0 %v2072
      %2320 = vmatprep.subr.bf16.mxu0 0
      %2321 = vmatpush1.bf16.msra.mxu0 0
      %2322 = vmatprep.subr.bf16.mxu0 0
      %2323 = vmatpush1.bf16.msra.mxu0 0
      %2324 = vmatprep.subr.bf16.mxu0 0
      %2325 = vmatpush1.bf16.msra.mxu0 0
      %2326 = vmatprep.subr.bf16.mxu0 0
      %2327 = vmatpush1.bf16.msra.mxu0 0
      %2328 = vmatprep.subr.bf16.mxu0 0
      %2329 = vmatpush1.bf16.msra.mxu0 0
      %2330 = vmatprep.subr.bf16.mxu0 0
      %2331 = vmatpush1.bf16.msra.mxu0 0
      %2332 = vmatprep.subr.bf16.mxu0 0
      %2333 = vmatpush1.bf16.msra.mxu0 0
      %2334 = vmatprep.subr.bf16.mxu0 0
      %2335 = vmatpush1.bf16.msra.mxu0 0
      %2336 = vmatprep.subr.bf16.mxu0 0
      %2337 = vmatpush1.bf16.msra.mxu0 0
      %2338 = vmatprep.subr.bf16.mxu0 0
      %2339 = vmatpush1.bf16.msra.mxu0 0
      %2340 = vmatprep.subr.bf16.mxu0 0
      %2341 = vmatpush1.bf16.msra.mxu0 0
      %2342 = vmatprep.subr.bf16.mxu0 0
      %2343 = vmatpush1.bf16.msra.mxu0 0
      %2344 = vmatprep.subr.bf16.mxu0 0
      %2345 = vmatpush1.bf16.msra.mxu0 0
      %2346 = vmatprep.subr.bf16.mxu0 0
      %2347 = vmatpush1.bf16.msra.mxu0 0
      %2348 = vmatprep.subr.bf16.mxu0 0
      %2349 = vmatpush1.bf16.msra.mxu0 0
      %2350 = vmatprep.mubr.bf16.mxu0 0
      %2351 = vmatmul.mubr.bf16.gmra.mrb[0].mxu0 %v2276
      %v2352 = vpop.f32.mrb[0].mxu0
      %v2353 = vadd.f32 0.0, %v2352
      %v2354 = vpop.f32.mrb[0].mxu0
      %v2355 = vpop.f32.mrb[0].mxu0
      %v2356 = vpop.f32.mrb[0].mxu0
      %2357 = vdwg.mxu0
      %v2358 = vpack.c.bf16 %v2267, %v2267
      %v2359 = vpack.c.bf16 %v2313, %v2313
      %v2361 = vsel %vm793, %v2358, 0
      %v2364 = vsel %vm793, %v2359, 0
      %2366 = vmatprep.subr.bf16.mxu0 0
      %2367 = vmatpush1.bf16.xpose.msra.mxu0 %v2364
      %2368 = vmatprep.subr.bf16.mxu0 0
      %2369 = vmatpush1.bf16.xpose.msra.mxu0 0
      %2370 = vmatprep.subr.bf16.mxu0 0
      %2371 = vmatpush1.bf16.xpose.msra.mxu0 0
      %2372 = vmatprep.subr.bf16.mxu0 0
      %2373 = vmatpush1.bf16.xpose.msra.mxu0 0
      %2374 = vmatprep.subr.bf16.mxu0 0
      %2375 = vmatpush1.bf16.xpose.msra.mxu0 0
      %2376 = vmatprep.subr.bf16.mxu0 0
      %2377 = vmatpush1.bf16.xpose.msra.mxu0 0
      %2378 = vmatprep.subr.bf16.mxu0 0
      %2379 = vmatpush1.bf16.xpose.msra.mxu0 0
      %2380 = vmatprep.subr.bf16.mxu0 0
      %2381 = vmatpush1.bf16.xpose.msra.mxu0 0
      %2382 = vmatprep.subr.bf16.mxu0 0
      %2383 = vmatpush1.bf16.xpose.msra.mxu0 0
      %2384 = vmatprep.subr.bf16.mxu0 0
      %2385 = vmatpush1.bf16.xpose.msra.mxu0 0
      %2386 = vmatprep.subr.bf16.mxu0 0
      %2387 = vmatpush1.bf16.xpose.msra.mxu0 0
      %2388 = vmatprep.subr.bf16.mxu0 0
      %2389 = vmatpush1.bf16.xpose.msra.mxu0 0
      %2390 = vmatprep.subr.bf16.mxu0 0
      %2391 = vmatpush1.bf16.xpose.msra.mxu0 0
      %2392 = vmatprep.subr.bf16.mxu0 0
      %2393 = vmatpush1.bf16.xpose.msra.mxu0 0
      %2394 = vmatprep.subr.bf16.mxu0 0
      %2395 = vmatpush1.bf16.xpose.msra.mxu0 0
      %2396 = vmatprep.subr.bf16.mxu0 0
      %2397 = vmatpush1.bf16.xpose.msra.mxu0 0
      %2398 = vmatprep.mubr.bf16.mxu0 0
      %2399 = vmatmul.mubr.bf16.gmra.mrb[0].mxu0 %v2361
      %v2400 = vpop.f32.mrb[0].mxu0
      %v2401 = vadd.f32 0.0, %v2400
      %v2402 = vpop.f32.mrb[0].mxu0
      %v2403 = vpop.f32.mrb[0].mxu0
      %v2404 = vpop.f32.mrb[0].mxu0
      %2405 = vdwg.mxu0
      %v2406 = vsel %vm2162, -1e+20, %v2401
      %v2407 = vmul.f32 %v2406, 0.17677669
      %v2408 = vsel %vm793, %v2407, -inf
      %2409 = vmax.xlane.f32.xlu0 %v2408
      %v2410 = vpop.xlane.xlu0 %2409
      %v2411 = vsub.f32 %v2407, %v2410
      %v2412 = vmul.f32 %v2411, 1.442695
      %v2413 = vpow.pop %v2412
      %v2414 = vsel %vm793, %v2413, 0.0
      %2415 = vadd.xlane.f32.xlu0 %v2414
      %v2416 = vpop.xlane.xlu0 %2415
      %v2417 = vrcp.pop %v2416
      %v2418 = vmul.f32 %v2413, %v2417
      %v2419 = vpack.c.bf16 %v2418, %v2418
      %v2420 = vpack.c.bf16 %v2353, %v2353
      %v2422 = vsel %vm793, %v2419, 0
      %v2425 = vsel %vm797, %v2420, 0
      %2427 = vmatprep.subr.bf16.mxu0 0
      %2428 = vmatpush1.bf16.msra.mxu0 %v2425
      %2429 = vmatprep.subr.bf16.mxu0 0
      %2430 = vmatpush1.bf16.msra.mxu0 0
      %2431 = vmatprep.subr.bf16.mxu0 0
      %2432 = vmatpush1.bf16.msra.mxu0 0
      %2433 = vmatprep.subr.bf16.mxu0 0
      %2434 = vmatpush1.bf16.msra.mxu0 0
      %2435 = vmatprep.subr.bf16.mxu0 0
      %2436 = vmatpush1.bf16.msra.mxu0 0
      %2437 = vmatprep.subr.bf16.mxu0 0
      %2438 = vmatpush1.bf16.msra.mxu0 0
      %2439 = vmatprep.subr.bf16.mxu0 0
      %2440 = vmatpush1.bf16.msra.mxu0 0
      %2441 = vmatprep.subr.bf16.mxu0 0
      %2442 = vmatpush1.bf16.msra.mxu0 0
      %2443 = vmatprep.subr.bf16.mxu0 0
      %2444 = vmatpush1.bf16.msra.mxu0 0
      %2445 = vmatprep.subr.bf16.mxu0 0
      %2446 = vmatpush1.bf16.msra.mxu0 0
      %2447 = vmatprep.subr.bf16.mxu0 0
      %2448 = vmatpush1.bf16.msra.mxu0 0
      %2449 = vmatprep.subr.bf16.mxu0 0
      %2450 = vmatpush1.bf16.msra.mxu0 0
      %2451 = vmatprep.subr.bf16.mxu0 0
      %2452 = vmatpush1.bf16.msra.mxu0 0
      %2453 = vmatprep.subr.bf16.mxu0 0
      %2454 = vmatpush1.bf16.msra.mxu0 0
      %2455 = vmatprep.subr.bf16.mxu0 0
      %2456 = vmatpush1.bf16.msra.mxu0 0
      %2457 = vmatprep.subr.bf16.mxu0 0
      %2458 = vmatpush1.bf16.msra.mxu0 0
      %2459 = vmatprep.mubr.bf16.mxu0 0
      %2460 = vmatmul.mubr.bf16.gmra.mrb[0].mxu0 %v2422
      %v2461 = vpop.f32.mrb[0].mxu0
      %v2462 = vadd.f32 0.0, %v2461
      %v2463 = vpop.f32.mrb[0].mxu0
      %v2464 = vpop.f32.mrb[0].mxu0
      %v2465 = vpop.f32.mrb[0].mxu0
      %2466 = vdwg.mxu0
      %v2467 = vpack.c.bf16 %v2462, %v2462
      %v2468 = vld [vmem:[%s14 + $0x4] sm:$0xf]
      %v2470 = vsel %vm793, %v2467, 0
      %v2473 = vsel %vm797, %v2468, 0
      %2475 = vmatprep.subr.bf16.mxu0 0
      %2476 = vmatpush1.bf16.msra.mxu0 %v2473
      %2477 = vmatprep.subr.bf16.mxu0 0
      %2478 = vmatpush1.bf16.msra.mxu0 0
      %2479 = vmatprep.subr.bf16.mxu0 0
      %2480 = vmatpush1.bf16.msra.mxu0 0
      %2481 = vmatprep.subr.bf16.mxu0 0
      %2482 = vmatpush1.bf16.msra.mxu0 0
      %2483 = vmatprep.subr.bf16.mxu0 0
      %2484 = vmatpush1.bf16.msra.mxu0 0
      %2485 = vmatprep.subr.bf16.mxu0 0
      %2486 = vmatpush1.bf16.msra.mxu0 0
      %2487 = vmatprep.subr.bf16.mxu0 0
      %2488 = vmatpush1.bf16.msra.mxu0 0
      %2489 = vmatprep.subr.bf16.mxu0 0
      %2490 = vmatpush1.bf16.msra.mxu0 0
      %2491 = vmatprep.subr.bf16.mxu0 0
      %2492 = vmatpush1.bf16.msra.mxu0 0
      %2493 = vmatprep.subr.bf16.mxu0 0
      %2494 = vmatpush1.bf16.msra.mxu0 0
      %2495 = vmatprep.subr.bf16.mxu0 0
      %2496 = vmatpush1.bf16.msra.mxu0 0
      %2497 = vmatprep.subr.bf16.mxu0 0
      %2498 = vmatpush1.bf16.msra.mxu0 0
      %2499 = vmatprep.subr.bf16.mxu0 0
      %2500 = vmatpush1.bf16.msra.mxu0 0
      %2501 = vmatprep.subr.bf16.mxu0 0
      %2502 = vmatpush1.bf16.msra.mxu0 0
      %2503 = vmatprep.subr.bf16.mxu0 0
      %2504 = vmatpush1.bf16.msra.mxu0 0
      %2505 = vmatprep.subr.bf16.mxu0 0
      %2506 = vmatpush1.bf16.msra.mxu0 0
      %2507 = vmatprep.mubr.bf16.mxu0 0
      %2508 = vmatmul.mubr.bf16.gmra.mrb[0].mxu0 %v2470
      %v2509 = vpop.f32.mrb[0].mxu0
      %v2510 = vadd.f32 0.0, %v2509
      %v2511 = vpop.f32.mrb[0].mxu0
      %v2512 = vpop.f32.mrb[0].mxu0
      %v2513 = vpop.f32.mrb[0].mxu0
      %2514 = vdwg.mxu0
      %v2516 = vsel %vm793, %v2224, 0
      %v2519 = vsel %vm797, %v2225, 0
      %2521 = vmatprep.subr.bf16.mxu0 0
      %2522 = vmatpush1.bf16.msra.mxu0 %v2519
      %2523 = vmatprep.subr.bf16.mxu0 0
      %2524 = vmatpush1.bf16.msra.mxu0 0
      %2525 = vmatprep.subr.bf16.mxu0 0
      %2526 = vmatpush1.bf16.msra.mxu0 0
      %2527 = vmatprep.subr.bf16.mxu0 0
      %2528 = vmatpush1.bf16.msra.mxu0 0
      %2529 = vmatprep.subr.bf16.mxu0 0
      %2530 = vmatpush1.bf16.msra.mxu0 0
      %2531 = vmatprep.subr.bf16.mxu0 0
      %2532 = vmatpush1.bf16.msra.mxu0 0
      %2533 = vmatprep.subr.bf16.mxu0 0
      %2534 = vmatpush1.bf16.msra.mxu0 0
      %2535 = vmatprep.subr.bf16.mxu0 0
      %2536 = vmatpush1.bf16.msra.mxu0 0
      %2537 = vmatprep.subr.bf16.mxu0 0
      %2538 = vmatpush1.bf16.msra.mxu0 0
      %2539 = vmatprep.subr.bf16.mxu0 0
      %2540 = vmatpush1.bf16.msra.mxu0 0
      %2541 = vmatprep.subr.bf16.mxu0 0
      %2542 = vmatpush1.bf16.msra.mxu0 0
      %2543 = vmatprep.subr.bf16.mxu0 0
      %2544 = vmatpush1.bf16.msra.mxu0 0
      %2545 = vmatprep.subr.bf16.mxu0 0
      %2546 = vmatpush1.bf16.msra.mxu0 0
      %2547 = vmatprep.subr.bf16.mxu0 0
      %2548 = vmatpush1.bf16.msra.mxu0 0
      %2549 = vmatprep.subr.bf16.mxu0 0
      %2550 = vmatpush1.bf16.msra.mxu0 0
      %2551 = vmatprep.subr.bf16.mxu0 0
      %2552 = vmatpush1.bf16.msra.mxu0 0
      %2553 = vmatprep.mubr.bf16.mxu0 0
      %2554 = vmatmul.mubr.bf16.gmra.mrb[0].mxu0 %v2516
      %v2555 = vpop.f32.mrb[0].mxu0
      %v2556 = vadd.f32 %v2510, %v2555
      %v2557 = vpop.f32.mrb[0].mxu0
      %v2558 = vpop.f32.mrb[0].mxu0
      %v2559 = vpop.f32.mrb[0].mxu0
      %2560 = vdwg.mxu0
      %2561 = vrot.lane.b32.xlu0 %v1977, 112
      %v2562 = vpop.permute.xlu0 %2561
      %v2564 = vsel %vm793, %v2562, 0
      %2566 = vmatprep.subr.bf16.mxu0 0
      %2567 = vmatpush1.bf16.msra.mxu0 %v1982
      %2568 = vmatprep.subr.bf16.mxu0 0
      %2569 = vmatpush1.bf16.msra.mxu0 0
      %2570 = vmatprep.subr.bf16.mxu0 0
      %2571 = vmatpush1.bf16.msra.mxu0 0
      %2572 = vmatprep.subr.bf16.mxu0 0
      %2573 = vmatpush1.bf16.msra.mxu0 0
      %2574 = vmatprep.subr.bf16.mxu0 0
      %2575 = vmatpush1.bf16.msra.mxu0 0
      %2576 = vmatprep.subr.bf16.mxu0 0
      %2577 = vmatpush1.bf16.msra.mxu0 0
      %2578 = vmatprep.subr.bf16.mxu0 0
      %2579 = vmatpush1.bf16.msra.mxu0 0
      %2580 = vmatprep.subr.bf16.mxu0 0
      %2581 = vmatpush1.bf16.msra.mxu0 0
      %2582 = vmatprep.subr.bf16.mxu0 0
      %2583 = vmatpush1.bf16.msra.mxu0 0
      %2584 = vmatprep.subr.bf16.mxu0 0
      %2585 = vmatpush1.bf16.msra.mxu0 0
      %2586 = vmatprep.subr.bf16.mxu0 0
      %2587 = vmatpush1.bf16.msra.mxu0 0
      %2588 = vmatprep.subr.bf16.mxu0 0
      %2589 = vmatpush1.bf16.msra.mxu0 0
      %2590 = vmatprep.subr.bf16.mxu0 0
      %2591 = vmatpush1.bf16.msra.mxu0 0
      %2592 = vmatprep.subr.bf16.mxu0 0
      %2593 = vmatpush1.bf16.msra.mxu0 0
      %2594 = vmatprep.subr.bf16.mxu0 0
      %2595 = vmatpush1.bf16.msra.mxu0 0
      %2596 = vmatprep.subr.bf16.mxu0 0
      %2597 = vmatpush1.bf16.msra.mxu0 0
      %2598 = vmatprep.mubr.bf16.mxu0 0
      %2599 = vmatmul.mubr.bf16.gmra.mrb[0].mxu0 %v2564
      %v2600 = vpop.f32.mrb[0].mxu0
      %v2601 = vadd.f32 0.0, %v2600
      %v2602 = vpop.f32.mrb[0].mxu0
      %v2603 = vpop.f32.mrb[0].mxu0
      %v2604 = vpop.f32.mrb[0].mxu0
      %2605 = vdwg.mxu0
      %2606 = vrot.lane.b32.xlu0 %v2024, 112
      %v2607 = vpop.permute.xlu0 %2606
      %v2609 = vsel %vm793, %v2607, 0
      %2611 = vmatprep.subr.bf16.mxu0 0
      %2612 = vmatpush1.bf16.msra.mxu0 %v2029
      %2613 = vmatprep.subr.bf16.mxu0 0
      %2614 = vmatpush1.bf16.msra.mxu0 0
      %2615 = vmatprep.subr.bf16.mxu0 0
      %2616 = vmatpush1.bf16.msra.mxu0 0
      %2617 = vmatprep.subr.bf16.mxu0 0
      %2618 = vmatpush1.bf16.msra.mxu0 0
      %2619 = vmatprep.subr.bf16.mxu0 0
      %2620 = vmatpush1.bf16.msra.mxu0 0
      %2621 = vmatprep.subr.bf16.mxu0 0
      %2622 = vmatpush1.bf16.msra.mxu0 0
      %2623 = vmatprep.subr.bf16.mxu0 0
      %2624 = vmatpush1.bf16.msra.mxu0 0
      %2625 = vmatprep.subr.bf16.mxu0 0
      %2626 = vmatpush1.bf16.msra.mxu0 0
      %2627 = vmatprep.subr.bf16.mxu0 0
      %2628 = vmatpush1.bf16.msra.mxu0 0
      %2629 = vmatprep.subr.bf16.mxu0 0
      %2630 = vmatpush1.bf16.msra.mxu0 0
      %2631 = vmatprep.subr.bf16.mxu0 0
      %2632 = vmatpush1.bf16.msra.mxu0 0
      %2633 = vmatprep.subr.bf16.mxu0 0
      %2634 = vmatpush1.bf16.msra.mxu0 0
      %2635 = vmatprep.subr.bf16.mxu0 0
      %2636 = vmatpush1.bf16.msra.mxu0 0
      %2637 = vmatprep.subr.bf16.mxu0 0
      %2638 = vmatpush1.bf16.msra.mxu0 0
      %2639 = vmatprep.subr.bf16.mxu0 0
      %2640 = vmatpush1.bf16.msra.mxu0 0
      %2641 = vmatprep.subr.bf16.mxu0 0
      %2642 = vmatpush1.bf16.msra.mxu0 0
      %2643 = vmatprep.mubr.bf16.mxu0 0
      %2644 = vmatmul.mubr.bf16.gmra.mrb[0].mxu0 %v2609
      %v2645 = vpop.f32.mrb[0].mxu0
      %v2646 = vadd.f32 0.0, %v2645
      %v2647 = vpop.f32.mrb[0].mxu0
      %v2648 = vpop.f32.mrb[0].mxu0
      %v2649 = vpop.f32.mrb[0].mxu0
      %2650 = vdwg.mxu0
      %2651 = vmatprep.subr.bf16.mxu0 0
      %2652 = vmatpush1.bf16.msra.mxu0 %v2072
      %2653 = vmatprep.subr.bf16.mxu0 0
      %2654 = vmatpush1.bf16.msra.mxu0 0
      %2655 = vmatprep.subr.bf16.mxu0 0
      %2656 = vmatpush1.bf16.msra.mxu0 0
      %2657 = vmatprep.subr.bf16.mxu0 0
      %2658 = vmatpush1.bf16.msra.mxu0 0
      %2659 = vmatprep.subr.bf16.mxu0 0
      %2660 = vmatpush1.bf16.msra.mxu0 0
      %2661 = vmatprep.subr.bf16.mxu0 0
      %2662 = vmatpush1.bf16.msra.mxu0 0
      %2663 = vmatprep.subr.bf16.mxu0 0
      %2664 = vmatpush1.bf16.msra.mxu0 0
      %2665 = vmatprep.subr.bf16.mxu0 0
      %2666 = vmatpush1.bf16.msra.mxu0 0
      %2667 = vmatprep.subr.bf16.mxu0 0
      %2668 = vmatpush1.bf16.msra.mxu0 0
      %2669 = vmatprep.subr.bf16.mxu0 0
      %2670 = vmatpush1.bf16.msra.mxu0 0
      %2671 = vmatprep.subr.bf16.mxu0 0
      %2672 = vmatpush1.bf16.msra.mxu0 0
      %2673 = vmatprep.subr.bf16.mxu0 0
      %2674 = vmatpush1.bf16.msra.mxu0 0
      %2675 = vmatprep.subr.bf16.mxu0 0
      %2676 = vmatpush1.bf16.msra.mxu0 0
      %2677 = vmatprep.subr.bf16.mxu0 0
      %2678 = vmatpush1.bf16.msra.mxu0 0
      %2679 = vmatprep.subr.bf16.mxu0 0
      %2680 = vmatpush1.bf16.msra.mxu0 0
      %2681 = vmatprep.subr.bf16.mxu0 0
      %2682 = vmatpush1.bf16.msra.mxu0 0
      %2683 = vmatprep.mubr.bf16.mxu0 0
      %2684 = vmatmul.mubr.bf16.gmra.mrb[0].mxu0 %v2609
      %v2685 = vpop.f32.mrb[0].mxu0
      %v2686 = vadd.f32 0.0, %v2685
      %v2687 = vpop.f32.mrb[0].mxu0
      %v2688 = vpop.f32.mrb[0].mxu0
      %v2689 = vpop.f32.mrb[0].mxu0
      %2690 = vdwg.mxu0
      %v2691 = vpack.c.bf16 %v2601, %v2601
      %v2692 = vpack.c.bf16 %v2646, %v2646
      %v2694 = vsel %vm793, %v2691, 0
      %v2697 = vsel %vm793, %v2692, 0
      %2699 = vmatprep.subr.bf16.mxu0 0
      %2700 = vmatpush1.bf16.xpose.msra.mxu0 %v2697
      %2701 = vmatprep.subr.bf16.mxu0 0
      %2702 = vmatpush1.bf16.xpose.msra.mxu0 0
      %2703 = vmatprep.subr.bf16.mxu0 0
      %2704 = vmatpush1.bf16.xpose.msra.mxu0 0
      %2705 = vmatprep.subr.bf16.mxu0 0
      %2706 = vmatpush1.bf16.xpose.msra.mxu0 0
      %2707 = vmatprep.subr.bf16.mxu0 0
      %2708 = vmatpush1.bf16.xpose.msra.mxu0 0
      %2709 = vmatprep.subr.bf16.mxu0 0
      %2710 = vmatpush1.bf16.xpose.msra.mxu0 0
      %2711 = vmatprep.subr.bf16.mxu0 0
      %2712 = vmatpush1.bf16.xpose.msra.mxu0 0
      %2713 = vmatprep.subr.bf16.mxu0 0
      %2714 = vmatpush1.bf16.xpose.msra.mxu0 0
      %2715 = vmatprep.subr.bf16.mxu0 0
      %2716 = vmatpush1.bf16.xpose.msra.mxu0 0
      %2717 = vmatprep.subr.bf16.mxu0 0
      %2718 = vmatpush1.bf16.xpose.msra.mxu0 0
      %2719 = vmatprep.subr.bf16.mxu0 0
      %2720 = vmatpush1.bf16.xpose.msra.mxu0 0
      %2721 = vmatprep.subr.bf16.mxu0 0
      %2722 = vmatpush1.bf16.xpose.msra.mxu0 0
      %2723 = vmatprep.subr.bf16.mxu0 0
      %2724 = vmatpush1.bf16.xpose.msra.mxu0 0
      %2725 = vmatprep.subr.bf16.mxu0 0
      %2726 = vmatpush1.bf16.xpose.msra.mxu0 0
      %2727 = vmatprep.subr.bf16.mxu0 0
      %2728 = vmatpush1.bf16.xpose.msra.mxu0 0
      %2729 = vmatprep.subr.bf16.mxu0 0
      %2730 = vmatpush1.bf16.xpose.msra.mxu0 0
      %2731 = vmatprep.mubr.bf16.mxu0 0
      %2732 = vmatmul.mubr.bf16.gmra.mrb[0].mxu0 %v2694
      %v2733 = vpop.f32.mrb[0].mxu0
      %v2734 = vadd.f32 0.0, %v2733
      %v2735 = vpop.f32.mrb[0].mxu0
      %v2736 = vpop.f32.mrb[0].mxu0
      %v2737 = vpop.f32.mrb[0].mxu0
      %2738 = vdwg.mxu0
      %v2739 = vsel %vm2162, -1e+20, %v2734
      %v2740 = vmul.f32 %v2739, 0.17677669
      %v2741 = vsel %vm793, %v2740, -inf
      %2742 = vmax.xlane.f32.xlu0 %v2741
      %v2743 = vpop.xlane.xlu0 %2742
      %v2744 = vsub.f32 %v2740, %v2743
      %v2745 = vmul.f32 %v2744, 1.442695
      %v2746 = vpow.pop %v2745
      %v2747 = vsel %vm793, %v2746, 0.0
      %2748 = vadd.xlane.f32.xlu0 %v2747
      %v2749 = vpop.xlane.xlu0 %2748
      %v2750 = vrcp.pop %v2749
      %v2751 = vmul.f32 %v2746, %v2750
      %v2752 = vpack.c.bf16 %v2751, %v2751
      %v2753 = vpack.c.bf16 %v2686, %v2686
      %v2755 = vsel %vm793, %v2752, 0
      %v2758 = vsel %vm797, %v2753, 0
      %2760 = vmatprep.subr.bf16.mxu0 0
      %2761 = vmatpush1.bf16.msra.mxu0 %v2758
      %2762 = vmatprep.subr.bf16.mxu0 0
      %2763 = vmatpush1.bf16.msra.mxu0 0
      %2764 = vmatprep.subr.bf16.mxu0 0
      %2765 = vmatpush1.bf16.msra.mxu0 0
      %2766 = vmatprep.subr.bf16.mxu0 0
      %2767 = vmatpush1.bf16.msra.mxu0 0
      %2768 = vmatprep.subr.bf16.mxu0 0
      %2769 = vmatpush1.bf16.msra.mxu0 0
      %2770 = vmatprep.subr.bf16.mxu0 0
      %2771 = vmatpush1.bf16.msra.mxu0 0
      %2772 = vmatprep.subr.bf16.mxu0 0
      %2773 = vmatpush1.bf16.msra.mxu0 0
      %2774 = vmatprep.subr.bf16.mxu0 0
      %2775 = vmatpush1.bf16.msra.mxu0 0
      %2776 = vmatprep.subr.bf16.mxu0 0
      %2777 = vmatpush1.bf16.msra.mxu0 0
      %2778 = vmatprep.subr.bf16.mxu0 0
      %2779 = vmatpush1.bf16.msra.mxu0 0
      %2780 = vmatprep.subr.bf16.mxu0 0
      %2781 = vmatpush1.bf16.msra.mxu0 0
      %2782 = vmatprep.subr.bf16.mxu0 0
      %2783 = vmatpush1.bf16.msra.mxu0 0
      %2784 = vmatprep.subr.bf16.mxu0 0
      %2785 = vmatpush1.bf16.msra.mxu0 0
      %2786 = vmatprep.subr.bf16.mxu0 0
      %2787 = vmatpush1.bf16.msra.mxu0 0
      %2788 = vmatprep.subr.bf16.mxu0 0
      %2789 = vmatpush1.bf16.msra.mxu0 0
      %2790 = vmatprep.subr.bf16.mxu0 0
      %2791 = vmatpush1.bf16.msra.mxu0 0
      %2792 = vmatprep.mubr.bf16.mxu0 0
      %2793 = vmatmul.mubr.bf16.gmra.mrb[0].mxu0 %v2755
      %v2794 = vpop.f32.mrb[0].mxu0
      %v2795 = vadd.f32 0.0, %v2794
      %v2796 = vpop.f32.mrb[0].mxu0
      %v2797 = vpop.f32.mrb[0].mxu0
      %v2798 = vpop.f32.mrb[0].mxu0
      %2799 = vdwg.mxu0
      %v2800 = vpack.c.bf16 %v2795, %v2795
      %v2801 = vld [vmem:[%s14 + $0x8] sm:$0xf]
      %v2803 = vsel %vm793, %v2800, 0
      %v2806 = vsel %vm797, %v2801, 0
      %2808 = vmatprep.subr.bf16.mxu0 0
      %2809 = vmatpush1.bf16.msra.mxu0 %v2806
      %2810 = vmatprep.subr.bf16.mxu0 0
      %2811 = vmatpush1.bf16.msra.mxu0 0
      %2812 = vmatprep.subr.bf16.mxu0 0
      %2813 = vmatpush1.bf16.msra.mxu0 0
      %2814 = vmatprep.subr.bf16.mxu0 0
      %2815 = vmatpush1.bf16.msra.mxu0 0
      %2816 = vmatprep.subr.bf16.mxu0 0
      %2817 = vmatpush1.bf16.msra.mxu0 0
      %2818 = vmatprep.subr.bf16.mxu0 0
      %2819 = vmatpush1.bf16.msra.mxu0 0
      %2820 = vmatprep.subr.bf16.mxu0 0
      %2821 = vmatpush1.bf16.msra.mxu0 0
      %2822 = vmatprep.subr.bf16.mxu0 0
      %2823 = vmatpush1.bf16.msra.mxu0 0
      %2824 = vmatprep.subr.bf16.mxu0 0
      %2825 = vmatpush1.bf16.msra.mxu0 0
      %2826 = vmatprep.subr.bf16.mxu0 0
      %2827 = vmatpush1.bf16.msra.mxu0 0
      %2828 = vmatprep.subr.bf16.mxu0 0
      %2829 = vmatpush1.bf16.msra.mxu0 0
      %2830 = vmatprep.subr.bf16.mxu0 0
      %2831 = vmatpush1.bf16.msra.mxu0 0
      %2832 = vmatprep.subr.bf16.mxu0 0
      %2833 = vmatpush1.bf16.msra.mxu0 0
      %2834 = vmatprep.subr.bf16.mxu0 0
      %2835 = vmatpush1.bf16.msra.mxu0 0
      %2836 = vmatprep.subr.bf16.mxu0 0
      %2837 = vmatpush1.bf16.msra.mxu0 0
      %2838 = vmatprep.subr.bf16.mxu0 0
      %2839 = vmatpush1.bf16.msra.mxu0 0
      %2840 = vmatprep.mubr.bf16.mxu0 0
      %2841 = vmatmul.mubr.bf16.gmra.mrb[0].mxu0 %v2803
      %v2842 = vpop.f32.mrb[0].mxu0
      %v2843 = vadd.f32 0.0, %v2842
      %v2844 = vpop.f32.mrb[0].mxu0
      %v2845 = vpop.f32.mrb[0].mxu0
      %v2846 = vpop.f32.mrb[0].mxu0
      %2847 = vdwg.mxu0
      %v2848 = vadd.f32 %v2556, %v2843
      %2849 = vrot.lane.b32.xlu0 %v1977, 104
      %v2850 = vpop.permute.xlu0 %2849
      %v2852 = vsel %vm793, %v2850, 0
      %2854 = vmatprep.subr.bf16.mxu0 0
      %2855 = vmatpush1.bf16.msra.mxu0 %v1982
      %2856 = vmatprep.subr.bf16.mxu0 0
      %2857 = vmatpush1.bf16.msra.mxu0 0
      %2858 = vmatprep.subr.bf16.mxu0 0
      %2859 = vmatpush1.bf16.msra.mxu0 0
      %2860 = vmatprep.subr.bf16.mxu0 0
      %2861 = vmatpush1.bf16.msra.mxu0 0
      %2862 = vmatprep.subr.bf16.mxu0 0
      %2863 = vmatpush1.bf16.msra.mxu0 0
      %2864 = vmatprep.subr.bf16.mxu0 0
      %2865 = vmatpush1.bf16.msra.mxu0 0
      %2866 = vmatprep.subr.bf16.mxu0 0
      %2867 = vmatpush1.bf16.msra.mxu0 0
      %2868 = vmatprep.subr.bf16.mxu0 0
      %2869 = vmatpush1.bf16.msra.mxu0 0
      %2870 = vmatprep.subr.bf16.mxu0 0
      %2871 = vmatpush1.bf16.msra.mxu0 0
      %2872 = vmatprep.subr.bf16.mxu0 0
      %2873 = vmatpush1.bf16.msra.mxu0 0
      %2874 = vmatprep.subr.bf16.mxu0 0
      %2875 = vmatpush1.bf16.msra.mxu0 0
      %2876 = vmatprep.subr.bf16.mxu0 0
      %2877 = vmatpush1.bf16.msra.mxu0 0
      %2878 = vmatprep.subr.bf16.mxu0 0
      %2879 = vmatpush1.bf16.msra.mxu0 0
      %2880 = vmatprep.subr.bf16.mxu0 0
      %2881 = vmatpush1.bf16.msra.mxu0 0
      %2882 = vmatprep.subr.bf16.mxu0 0
      %2883 = vmatpush1.bf16.msra.mxu0 0
      %2884 = vmatprep.subr.bf16.mxu0 0
      %2885 = vmatpush1.bf16.msra.mxu0 0
      %2886 = vmatprep.mubr.bf16.mxu0 0
      %2887 = vmatmul.mubr.bf16.gmra.mrb[0].mxu0 %v2852
      %v2888 = vpop.f32.mrb[0].mxu0
      %v2889 = vadd.f32 0.0, %v2888
      %v2890 = vpop.f32.mrb[0].mxu0
      %v2891 = vpop.f32.mrb[0].mxu0
      %v2892 = vpop.f32.mrb[0].mxu0
      %2893 = vdwg.mxu0
      %2894 = vrot.lane.b32.xlu0 %v2024, 104
      %v2895 = vpop.permute.xlu0 %2894
      %v2897 = vsel %vm793, %v2895, 0
      %2899 = vmatprep.subr.bf16.mxu0 0
      %2900 = vmatpush1.bf16.msra.mxu0 %v2029
      %2901 = vmatprep.subr.bf16.mxu0 0
      %2902 = vmatpush1.bf16.msra.mxu0 0
      %2903 = vmatprep.subr.bf16.mxu0 0
      %2904 = vmatpush1.bf16.msra.mxu0 0
      %2905 = vmatprep.subr.bf16.mxu0 0
      %2906 = vmatpush1.bf16.msra.mxu0 0
      %2907 = vmatprep.subr.bf16.mxu0 0
      %2908 = vmatpush1.bf16.msra.mxu0 0
      %2909 = vmatprep.subr.bf16.mxu0 0
      %2910 = vmatpush1.bf16.msra.mxu0 0
      %2911 = vmatprep.subr.bf16.mxu0 0
      %2912 = vmatpush1.bf16.msra.mxu0 0
      %2913 = vmatprep.subr.bf16.mxu0 0
      %2914 = vmatpush1.bf16.msra.mxu0 0
      %2915 = vmatprep.subr.bf16.mxu0 0
      %2916 = vmatpush1.bf16.msra.mxu0 0
      %2917 = vmatprep.subr.bf16.mxu0 0
      %2918 = vmatpush1.bf16.msra.mxu0 0
      %2919 = vmatprep.subr.bf16.mxu0 0
      %2920 = vmatpush1.bf16.msra.mxu0 0
      %2921 = vmatprep.subr.bf16.mxu0 0
      %2922 = vmatpush1.bf16.msra.mxu0 0
      %2923 = vmatprep.subr.bf16.mxu0 0
      %2924 = vmatpush1.bf16.msra.mxu0 0
      %2925 = vmatprep.subr.bf16.mxu0 0
      %2926 = vmatpush1.bf16.msra.mxu0 0
      %2927 = vmatprep.subr.bf16.mxu0 0
      %2928 = vmatpush1.bf16.msra.mxu0 0
      %2929 = vmatprep.subr.bf16.mxu0 0
      %2930 = vmatpush1.bf16.msra.mxu0 0
      %2931 = vmatprep.mubr.bf16.mxu0 0
      %2932 = vmatmul.mubr.bf16.gmra.mrb[0].mxu0 %v2897
      %v2933 = vpop.f32.mrb[0].mxu0
      %v2934 = vadd.f32 0.0, %v2933
      %v2935 = vpop.f32.mrb[0].mxu0
      %v2936 = vpop.f32.mrb[0].mxu0
      %v2937 = vpop.f32.mrb[0].mxu0
      %2938 = vdwg.mxu0
      %2939 = vmatprep.subr.bf16.mxu0 0
      %2940 = vmatpush1.bf16.msra.mxu0 %v2072
      %2941 = vmatprep.subr.bf16.mxu0 0
      %2942 = vmatpush1.bf16.msra.mxu0 0
      %2943 = vmatprep.subr.bf16.mxu0 0
      %2944 = vmatpush1.bf16.msra.mxu0 0
      %2945 = vmatprep.subr.bf16.mxu0 0
      %2946 = vmatpush1.bf16.msra.mxu0 0
      %2947 = vmatprep.subr.bf16.mxu0 0
      %2948 = vmatpush1.bf16.msra.mxu0 0
      %2949 = vmatprep.subr.bf16.mxu0 0
      %2950 = vmatpush1.bf16.msra.mxu0 0
      %2951 = vmatprep.subr.bf16.mxu0 0
      %2952 = vmatpush1.bf16.msra.mxu0 0
      %2953 = vmatprep.subr.bf16.mxu0 0
      %2954 = vmatpush1.bf16.msra.mxu0 0
      %2955 = vmatprep.subr.bf16.mxu0 0
      %2956 = vmatpush1.bf16.msra.mxu0 0
      %2957 = vmatprep.subr.bf16.mxu0 0
      %2958 = vmatpush1.bf16.msra.mxu0 0
      %2959 = vmatprep.subr.bf16.mxu0 0
      %2960 = vmatpush1.bf16.msra.mxu0 0
      %2961 = vmatprep.subr.bf16.mxu0 0
      %2962 = vmatpush1.bf16.msra.mxu0 0
      %2963 = vmatprep.subr.bf16.mxu0 0
      %2964 = vmatpush1.bf16.msra.mxu0 0
      %2965 = vmatprep.subr.bf16.mxu0 0
      %2966 = vmatpush1.bf16.msra.mxu0 0
      %2967 = vmatprep.subr.bf16.mxu0 0
      %2968 = vmatpush1.bf16.msra.mxu0 0
      %2969 = vmatprep.subr.bf16.mxu0 0
      %2970 = vmatpush1.bf16.msra.mxu0 0
      %2971 = vmatprep.mubr.bf16.mxu0 0
      %2972 = vmatmul.mubr.bf16.gmra.mrb[0].mxu0 %v2897
      %v2973 = vpop.f32.mrb[0].mxu0
      %v2974 = vadd.f32 0.0, %v2973
      %v2975 = vpop.f32.mrb[0].mxu0
      %v2976 = vpop.f32.mrb[0].mxu0
      %v2977 = vpop.f32.mrb[0].mxu0
      %2978 = vdwg.mxu0
      %v2979 = vpack.c.bf16 %v2889, %v2889
      %v2980 = vpack.c.bf16 %v2934, %v2934
      %v2982 = vsel %vm793, %v2979, 0
      %v2985 = vsel %vm793, %v2980, 0
      %2987 = vmatprep.subr.bf16.mxu0 0
      %2988 = vmatpush1.bf16.xpose.msra.mxu0 %v2985
      %2989 = vmatprep.subr.bf16.mxu0 0
      %2990 = vmatpush1.bf16.xpose.msra.mxu0 0
      %2991 = vmatprep.subr.bf16.mxu0 0
      %2992 = vmatpush1.bf16.xpose.msra.mxu0 0
      %2993 = vmatprep.subr.bf16.mxu0 0
      %2994 = vmatpush1.bf16.xpose.msra.mxu0 0
      %2995 = vmatprep.subr.bf16.mxu0 0
      %2996 = vmatpush1.bf16.xpose.msra.mxu0 0
      %2997 = vmatprep.subr.bf16.mxu0 0
      %2998 = vmatpush1.bf16.xpose.msra.mxu0 0
      %2999 = vmatprep.subr.bf16.mxu0 0
      %3000 = vmatpush1.bf16.xpose.msra.mxu0 0
      %3001 = vmatprep.subr.bf16.mxu0 0
      %3002 = vmatpush1.bf16.xpose.msra.mxu0 0
      %3003 = vmatprep.subr.bf16.mxu0 0
      %3004 = vmatpush1.bf16.xpose.msra.mxu0 0
      %3005 = vmatprep.subr.bf16.mxu0 0
      %3006 = vmatpush1.bf16.xpose.msra.mxu0 0
      %3007 = vmatprep.subr.bf16.mxu0 0
      %3008 = vmatpush1.bf16.xpose.msra.mxu0 0
      %3009 = vmatprep.subr.bf16.mxu0 0
      %3010 = vmatpush1.bf16.xpose.msra.mxu0 0
      %3011 = vmatprep.subr.bf16.mxu0 0
      %3012 = vmatpush1.bf16.xpose.msra.mxu0 0
      %3013 = vmatprep.subr.bf16.mxu0 0
      %3014 = vmatpush1.bf16.xpose.msra.mxu0 0
      %3015 = vmatprep.subr.bf16.mxu0 0
      %3016 = vmatpush1.bf16.xpose.msra.mxu0 0
      %3017 = vmatprep.subr.bf16.mxu0 0
      %3018 = vmatpush1.bf16.xpose.msra.mxu0 0
      %3019 = vmatprep.mubr.bf16.mxu0 0
      %3020 = vmatmul.mubr.bf16.gmra.mrb[0].mxu0 %v2982
      %v3021 = vpop.f32.mrb[0].mxu0
      %v3022 = vadd.f32 0.0, %v3021
      %v3023 = vpop.f32.mrb[0].mxu0
      %v3024 = vpop.f32.mrb[0].mxu0
      %v3025 = vpop.f32.mrb[0].mxu0
      %3026 = vdwg.mxu0
      %v3027 = vsel %vm2162, -1e+20, %v3022
      %v3028 = vmul.f32 %v3027, 0.17677669
      %v3029 = vsel %vm793, %v3028, -inf
      %3030 = vmax.xlane.f32.xlu0 %v3029
      %v3031 = vpop.xlane.xlu0 %3030
      %v3032 = vsub.f32 %v3028, %v3031
      %v3033 = vmul.f32 %v3032, 1.442695
      %v3034 = vpow.pop %v3033
      %v3035 = vsel %vm793, %v3034, 0.0
      %3036 = vadd.xlane.f32.xlu0 %v3035
      %v3037 = vpop.xlane.xlu0 %3036
      %v3038 = vrcp.pop %v3037
      %v3039 = vmul.f32 %v3034, %v3038
      %v3040 = vpack.c.bf16 %v3039, %v3039
      %v3041 = vpack.c.bf16 %v2974, %v2974
      %v3043 = vsel %vm793, %v3040, 0
      %v3046 = vsel %vm797, %v3041, 0
      %3048 = vmatprep.subr.bf16.mxu0 0
      %3049 = vmatpush1.bf16.msra.mxu0 %v3046
      %3050 = vmatprep.subr.bf16.mxu0 0
      %3051 = vmatpush1.bf16.msra.mxu0 0
      %3052 = vmatprep.subr.bf16.mxu0 0
      %3053 = vmatpush1.bf16.msra.mxu0 0
      %3054 = vmatprep.subr.bf16.mxu0 0
      %3055 = vmatpush1.bf16.msra.mxu0 0
      %3056 = vmatprep.subr.bf16.mxu0 0
      %3057 = vmatpush1.bf16.msra.mxu0 0
      %3058 = vmatprep.subr.bf16.mxu0 0
      %3059 = vmatpush1.bf16.msra.mxu0 0
      %3060 = vmatprep.subr.bf16.mxu0 0
      %3061 = vmatpush1.bf16.msra.mxu0 0
      %3062 = vmatprep.subr.bf16.mxu0 0
      %3063 = vmatpush1.bf16.msra.mxu0 0
      %3064 = vmatprep.subr.bf16.mxu0 0
      %3065 = vmatpush1.bf16.msra.mxu0 0
      %3066 = vmatprep.subr.bf16.mxu0 0
      %3067 = vmatpush1.bf16.msra.mxu0 0
      %3068 = vmatprep.subr.bf16.mxu0 0
      %3069 = vmatpush1.bf16.msra.mxu0 0
      %3070 = vmatprep.subr.bf16.mxu0 0
      %3071 = vmatpush1.bf16.msra.mxu0 0
      %3072 = vmatprep.subr.bf16.mxu0 0
      %3073 = vmatpush1.bf16.msra.mxu0 0
      %3074 = vmatprep.subr.bf16.mxu0 0
      %3075 = vmatpush1.bf16.msra.mxu0 0
      %3076 = vmatprep.subr.bf16.mxu0 0
      %3077 = vmatpush1.bf16.msra.mxu0 0
      %3078 = vmatprep.subr.bf16.mxu0 0
      %3079 = vmatpush1.bf16.msra.mxu0 0
      %3080 = vmatprep.mubr.bf16.mxu0 0
      %3081 = vmatmul.mubr.bf16.gmra.mrb[0].mxu0 %v3043
      %v3082 = vpop.f32.mrb[0].mxu0
      %v3083 = vadd.f32 0.0, %v3082
      %v3084 = vpop.f32.mrb[0].mxu0
      %v3085 = vpop.f32.mrb[0].mxu0
      %v3086 = vpop.f32.mrb[0].mxu0
      %3087 = vdwg.mxu0
      %v3088 = vpack.c.bf16 %v3083, %v3083
      %v3089 = vld [vmem:[%s14 + $0xc] sm:$0xf]
      %v3091 = vsel %vm793, %v3088, 0
      %v3094 = vsel %vm797, %v3089, 0
      %3096 = vmatprep.subr.bf16.mxu0 0
      %3097 = vmatpush1.bf16.msra.mxu0 %v3094
      %3098 = vmatprep.subr.bf16.mxu0 0
      %3099 = vmatpush1.bf16.msra.mxu0 0
      %3100 = vmatprep.subr.bf16.mxu0 0
      %3101 = vmatpush1.bf16.msra.mxu0 0
      %3102 = vmatprep.subr.bf16.mxu0 0
      %3103 = vmatpush1.bf16.msra.mxu0 0
      %3104 = vmatprep.subr.bf16.mxu0 0
      %3105 = vmatpush1.bf16.msra.mxu0 0
      %3106 = vmatprep.subr.bf16.mxu0 0
      %3107 = vmatpush1.bf16.msra.mxu0 0
      %3108 = vmatprep.subr.bf16.mxu0 0
      %3109 = vmatpush1.bf16.msra.mxu0 0
      %3110 = vmatprep.subr.bf16.mxu0 0
      %3111 = vmatpush1.bf16.msra.mxu0 0
      %3112 = vmatprep.subr.bf16.mxu0 0
      %3113 = vmatpush1.bf16.msra.mxu0 0
      %3114 = vmatprep.subr.bf16.mxu0 0
      %3115 = vmatpush1.bf16.msra.mxu0 0
      %3116 = vmatprep.subr.bf16.mxu0 0
      %3117 = vmatpush1.bf16.msra.mxu0 0
      %3118 = vmatprep.subr.bf16.mxu0 0
      %3119 = vmatpush1.bf16.msra.mxu0 0
      %3120 = vmatprep.subr.bf16.mxu0 0
      %3121 = vmatpush1.bf16.msra.mxu0 0
      %3122 = vmatprep.subr.bf16.mxu0 0
      %3123 = vmatpush1.bf16.msra.mxu0 0
      %3124 = vmatprep.subr.bf16.mxu0 0
      %3125 = vmatpush1.bf16.msra.mxu0 0
      %3126 = vmatprep.subr.bf16.mxu0 0
      %3127 = vmatpush1.bf16.msra.mxu0 0
      %3128 = vmatprep.mubr.bf16.mxu0 0
      %3129 = vmatmul.mubr.bf16.gmra.mrb[0].mxu0 %v3091
      %v3130 = vpop.f32.mrb[0].mxu0
      %v3131 = vadd.f32 0.0, %v3130
      %v3132 = vpop.f32.mrb[0].mxu0
      %v3133 = vpop.f32.mrb[0].mxu0
      %v3134 = vpop.f32.mrb[0].mxu0
      %3135 = vdwg.mxu0
      %v3136 = vadd.f32 %v2848, %v3131
      %v3137 = vld [vmem:[%s15] sm:$0x1]
      %v3139 = vlaneseq
      %v3140 = vshrl.u32 %v3139, 7
      %v3141 = vsub.s32 0, %v3140
      %v3142 = vrot.slane %v3137, %v3141
      %v3144 = vadd.f32 %v3136, %v3142
      %v3145 = vadd.f32 %v3144, %v1973
      %v3146 = vsel %vm1943, %v3145, 0.0
      %3147 = vadd.xlane.f32.xlu0 %v3146
      %v3148 = vpop.xlane.xlu0 %3147
      %v3149 = vmul.f32 %v3148, %v1947
      %v3150 = vsub.f32 %v3145, %v3149
      %v3151 = vmul.f32 %v3150, %v3150
      %v3152 = vsel %vm1943, %v3151, 0.0
      %3153 = vadd.xlane.f32.xlu0 %v3152
      %v3154 = vpop.xlane.xlu0 %3153
      %v3155 = vmul.f32 %v3154, %v1947
      %v3156 = vadd.f32 %v3155, 1e-05
      %v3157 = vrsqrt.pop %v3156
      %v3158 = vmul.f32 %v3150, %v3157
      %v3159 = vld [vmem:[%s16] sm:$0x1]
      %v3161 = vlaneseq
      %v3162 = vshrl.u32 %v3161, 7
      %v3163 = vsub.s32 0, %v3162
      %v3164 = vrot.slane %v3159, %v3163
      %v3166 = vmul.f32 %v3158, %v3164
      %v3167 = vld [vmem:[%s17] sm:$0x1]
      %v3169 = vlaneseq
      %v3170 = vshrl.u32 %v3169, 7
      %v3171 = vsub.s32 0, %v3170
      %v3172 = vrot.slane %v3167, %v3171
      %v3174 = vadd.f32 %v3166, %v3172
      %v3175 = vpack.c.bf16 %v3174, %v3174
      %v3176 = vld [vmem:[%s18] sm:$0xf]
      %v3177 = vld [vmem:[%s18 + $0x4] sm:$0xf]
      %v3178 = vld [vmem:[%s18 + $0x8] sm:$0xf]
      %v3179 = vld [vmem:[%s18 + $0xc] sm:$0xf]
      %v3180 = vld [vmem:[%s19] sm:$0x1]
      %v3182 = vlaneseq
      %v3183 = vshrl.u32 %v3182, 7
      %v3184 = vsub.s32 0, %v3183
      %v3185 = vrot.slane %v3180, %v3184
      %v3191 = vunpack.c.l.b16 %v3176
      %v3192 = vunpack.c.l.b16 %v3177
      %v3193 = vunpack.c.l.b16 %v3178
      %v3194 = vunpack.c.l.b16 %v3179
      %v3195 = vpack.c.b16 %v3192, %v3191
      %v3196 = vpack.c.b16 %v3194, %v3193
      %v3200 = vsel %vm1943, %v3175, 0
      %3202 = vmatprep.subr.bf16.mxu0 0
      %3203 = vmatpush1.bf16.msra.mxu0 %v3195
      %3204 = vmatprep.subr.bf16.mxu0 0
      %3205 = vmatpush1.bf16.msra.mxu0 %v3196
      %3206 = vmatprep.subr.bf16.mxu0 0
      %3207 = vmatpush1.bf16.msra.mxu0 0
      %3208 = vmatprep.subr.bf16.mxu0 0
      %3209 = vmatpush1.bf16.msra.mxu0 0
      %3210 = vmatprep.subr.bf16.mxu0 0
      %3211 = vmatpush1.bf16.msra.mxu0 0
      %3212 = vmatprep.subr.bf16.mxu0 0
      %3213 = vmatpush1.bf16.msra.mxu0 0
      %3214 = vmatprep.subr.bf16.mxu0 0
      %3215 = vmatpush1.bf16.msra.mxu0 0
      %3216 = vmatprep.subr.bf16.mxu0 0
      %3217 = vmatpush1.bf16.msra.mxu0 0
      %3218 = vmatprep.subr.bf16.mxu0 0
      %3219 = vmatpush1.bf16.msra.mxu0 0
      %3220 = vmatprep.subr.bf16.mxu0 0
      %3221 = vmatpush1.bf16.msra.mxu0 0
      %3222 = vmatprep.subr.bf16.mxu0 0
      %3223 = vmatpush1.bf16.msra.mxu0 0
      %3224 = vmatprep.subr.bf16.mxu0 0
      %3225 = vmatpush1.bf16.msra.mxu0 0
      %3226 = vmatprep.subr.bf16.mxu0 0
      %3227 = vmatpush1.bf16.msra.mxu0 0
      %3228 = vmatprep.subr.bf16.mxu0 0
      %3229 = vmatpush1.bf16.msra.mxu0 0
      %3230 = vmatprep.subr.bf16.mxu0 0
      %3231 = vmatpush1.bf16.msra.mxu0 0
      %3232 = vmatprep.subr.bf16.mxu0 0
      %3233 = vmatpush1.bf16.msra.mxu0 0
      %3234 = vmatprep.mubr.bf16.mxu0 0
      %3235 = vmatmul.mubr.bf16.gmra.mrb[0].mxu0 %v3200
      %v3236 = vpop.f32.mrb[0].mxu0
      %v3237 = vadd.f32 %v3185, %v3236
      %v3238 = vpop.f32.mrb[0].mxu0
      %v3239 = vpop.f32.mrb[0].mxu0
      %v3240 = vpop.f32.mrb[0].mxu0
      %3241 = vdwg.mxu0
      %v3242 = vmax.f32 %v3237, 0.0
      %v3243 = vpack.c.bf16 %v3242, %v3242
      %v3244 = vld [vmem:[%s20] sm:$0xf]
      %v3245 = vld [vmem:[%s20 + $0x4] sm:$0xf]
      %v3246 = vld [vmem:[%s20 + $0x8] sm:$0xf]
      %v3247 = vld [vmem:[%s20 + $0xc] sm:$0xf]
      %v3248 = vld [vmem:[%s20 + $0x10] sm:$0xf]
      %v3249 = vld [vmem:[%s20 + $0x14] sm:$0xf]
      %v3250 = vld [vmem:[%s20 + $0x18] sm:$0xf]
      %v3251 = vld [vmem:[%s20 + $0x1c] sm:$0xf]
      %v3252 = vld [vmem:[%s20 + $0x20] sm:$0xf]
      %v3253 = vld [vmem:[%s20 + $0x24] sm:$0xf]
      %v3254 = vld [vmem:[%s20 + $0x28] sm:$0xf]
      %v3255 = vld [vmem:[%s20 + $0x2c] sm:$0xf]
      %v3256 = vld [vmem:[%s20 + $0x30] sm:$0xf]
      %v3257 = vld [vmem:[%s20 + $0x34] sm:$0xf]
      %v3258 = vld [vmem:[%s20 + $0x38] sm:$0xf]
      %v3259 = vld [vmem:[%s20 + $0x3c] sm:$0xf]
      %v3260 = vld [vmem:[%s21] sm:$0x1]
      %v3262 = vlaneseq
      %v3263 = vshrl.u32 %v3262, 7
      %v3264 = vsub.s32 0, %v3263
      %v3265 = vrot.slane %v3260, %v3264
      %v3283 = vunpack.c.l.b16 %v3244
      %v3284 = vunpack.c.l.b16 %v3245
      %v3285 = vunpack.c.l.b16 %v3246
      %v3286 = vunpack.c.l.b16 %v3247
      %v3287 = vunpack.c.l.b16 %v3248
      %v3288 = vunpack.c.l.b16 %v3249
      %v3289 = vunpack.c.l.b16 %v3250
      %v3290 = vunpack.c.l.b16 %v3251
      %v3291 = vunpack.c.l.b16 %v3252
      %v3292 = vunpack.c.l.b16 %v3253
      %v3293 = vunpack.c.l.b16 %v3254
      %v3294 = vunpack.c.l.b16 %v3255
      %v3295 = vunpack.c.l.b16 %v3256
      %v3296 = vunpack.c.l.b16 %v3257
      %v3297 = vunpack.c.l.b16 %v3258
      %v3298 = vunpack.c.l.b16 %v3259
      %v3299 = vpack.c.b16 %v3284, %v3283
      %v3300 = vpack.c.b16 %v3286, %v3285
      %v3301 = vpack.c.b16 %v3288, %v3287
      %v3302 = vpack.c.b16 %v3290, %v3289
      %v3303 = vpack.c.b16 %v3292, %v3291
      %v3304 = vpack.c.b16 %v3294, %v3293
      %v3305 = vpack.c.b16 %v3296, %v3295
      %v3306 = vpack.c.b16 %v3298, %v3297
      %3315 = vmatprep.subr.bf16.mxu0 0
      %3316 = vmatpush1.bf16.msra.mxu0 %v3299
      %3317 = vmatprep.subr.bf16.mxu0 0
      %3318 = vmatpush1.bf16.msra.mxu0 %v3300
      %3319 = vmatprep.subr.bf16.mxu0 0
      %3320 = vmatpush1.bf16.msra.mxu0 %v3301
      %3321 = vmatprep.subr.bf16.mxu0 0
      %3322 = vmatpush1.bf16.msra.mxu0 %v3302
      %3323 = vmatprep.subr.bf16.mxu0 0
      %3324 = vmatpush1.bf16.msra.mxu0 %v3303
      %3325 = vmatprep.subr.bf16.mxu0 0
      %3326 = vmatpush1.bf16.msra.mxu0 %v3304
      %3327 = vmatprep.subr.bf16.mxu0 0
      %3328 = vmatpush1.bf16.msra.mxu0 %v3305
      %3329 = vmatprep.subr.bf16.mxu0 0
      %3330 = vmatpush1.bf16.msra.mxu0 %v3306
      %3331 = vmatprep.subr.bf16.mxu0 0
      %3332 = vmatpush1.bf16.msra.mxu0 0
      %3333 = vmatprep.subr.bf16.mxu0 0
      %3334 = vmatpush1.bf16.msra.mxu0 0
      %3335 = vmatprep.subr.bf16.mxu0 0
      %3336 = vmatpush1.bf16.msra.mxu0 0
      %3337 = vmatprep.subr.bf16.mxu0 0
      %3338 = vmatpush1.bf16.msra.mxu0 0
      %3339 = vmatprep.subr.bf16.mxu0 0
      %3340 = vmatpush1.bf16.msra.mxu0 0
      %3341 = vmatprep.subr.bf16.mxu0 0
      %3342 = vmatpush1.bf16.msra.mxu0 0
      %3343 = vmatprep.subr.bf16.mxu0 0
      %3344 = vmatpush1.bf16.msra.mxu0 0
      %3345 = vmatprep.subr.bf16.mxu0 0
      %3346 = vmatpush1.bf16.msra.mxu0 0
      %3347 = vmatprep.mubr.bf16.mxu0 0
      %3348 = vmatmul.mubr.bf16.gmra.mrb[0].mxu0 %v3243
      %v3349 = vpop.f32.mrb[0].mxu0
      %v3350 = vadd.f32 %v3265, %v3349
      %v3351 = vpop.f32.mrb[0].mxu0
      %v3352 = vpop.f32.mrb[0].mxu0
      %v3353 = vpop.f32.mrb[0].mxu0
      %3354 = vdwg.mxu0
      %v3355 = vadd.f32 %v3350, %v3174
      %v3356 = vsel %vm1943, %v3355, 0.0
      %3357 = vadd.xlane.f32.xlu0 %v3356
      %v3358 = vpop.xlane.xlu0 %3357
      %v3359 = vmul.f32 %v3358, %v1947
      %v3360 = vsub.f32 %v3355, %v3359
      %v3361 = vmul.f32 %v3360, %v3360
      %v3362 = vsel %vm1943, %v3361, 0.0
      %3363 = vadd.xlane.f32.xlu0 %v3362
      %v3364 = vpop.xlane.xlu0 %3363
      %v3365 = vmul.f32 %v3364, %v1947
      %v3366 = vadd.f32 %v3365, 1e-05
      %v3367 = vrsqrt.pop %v3366
      %v3368 = vmul.f32 %v3360, %v3367
      %v3369 = vld [vmem:[%s22] sm:$0x1]
      %v3371 = vlaneseq
      %v3372 = vshrl.u32 %v3371, 7
      %v3373 = vsub.s32 0, %v3372
      %v3374 = vrot.slane %v3369, %v3373
      %v3376 = vmul.f32 %v3368, %v3374
      %v3377 = vld [vmem:[%s23] sm:$0x1]
      %v3379 = vlaneseq
      %v3380 = vshrl.u32 %v3379, 7
      %v3381 = vsub.s32 0, %v3380
      %v3382 = vrot.slane %v3377, %v3381
      %v3384 = vadd.f32 %v3376, %v3382
      %3385 = vst.msk [vmem:[%s783] sm:$0xff] %vm1943, %v3384
      %p3386 = scmp.lt.s32.totalorder %s35, 1
      %s3387 = scalar_select %p3386, %s35, 1
      %s3388 = smul.addr %s3387, 8
      %s3389 = scalar_lea.vmem %s24, %s3388
      // Predicated region
      $region117: #{decoder_forward.5} parent=115 // pred_check
        %p3390 = pneg %p577
      $region118: #{decoder_forward.5} parent=115 // pred_check_branch
        %3392 = sbr.rel (%p3390) target = $region120
      $region119: #{decoder_forward.5} parent=115 // pred_region
        _
      $region120: #{decoder_forward.5} parent=115 // pred_fallthru
        _
    $region116: #{decoder_forward.5} parent=5 // pred_fallthru
      _
    %p3393 = scmp.le.s32.totalorder 2, %s30
    // Predicated region
    $region121: #{decoder_forward.5} parent=5 // pred_check
      %p3394 = pneg %p3393
    $region122: #{decoder_forward.5} parent=5 // pred_check_branch
      %3396 = sbr.rel (%p3394) target = $region124
    $region123: #{decoder_forward.5} parent=5 // pred_region
      %s3397 = ssub.s32 %s30, 2
      // Predicated region
      $region125: #{decoder_forward.5} parent=123 // pred_check
        %p3398 = pneg %p583
      $region126: #{decoder_forward.5} parent=123 // pred_check_branch
        %3400 = sbr.rel (%p3398) target = $region128
      $region127: #{decoder_forward.5} parent=123 // pred_region
        %p3401 = scmp.lt.s32.totalorder %s36, 1
        %s3402 = scalar_select %p3401, %s36, 1
        %s3403 = smul.addr %s3402, 8
        %s3404 = scalar_lea.vmem %s24, %s3403
      $region128: #{decoder_forward.5} parent=123 // pred_fallthru
        _
    $region124: #{decoder_forward.5} parent=5 // pred_fallthru
      _
  $region6: #{decoder_forward.5} parent=0 // loop_footer
    %s34 = sadd.s32 1, %s30
  $region7: #{decoder_forward.5} parent=0 // loop_footer_branch
    %29 = sbr.rel target = $region3
  $region8: #{decoder_forward.5} parent=0 // loop_exit
    _

</llo_original>
